<compile_context>
chip_gen: v6e
topology: v6e:2x2x1
jax: 0.10.0
libtpu: 0.0.40
codegen_flags: <defaults>
</compile_context>

<pallas_src>
import numpy as np
import jax
import jax.numpy as jnp
from jax import lax
from jax.experimental import pallas as pl
from jax.experimental.pallas import tpu as pltpu

# MXU operand dtype.  Set to jnp.bfloat16 on v6e/v7x for ~2x MXU rate and half the DMA bytes
# (accumulation stays f32, SiLU/sigmoid stay f32); kept f32 here so the strict 2e-2 check
# against the f32 reference holds at every box scale.
MATMUL_DTYPE = jnp.float32
NO_PAD = 128          # lane-dense padded output width (sliced back to 4 + 1 + nc in wrapper)


def _round_up(x, m):
    return (x + m - 1) // m * m


def _silu(x):
    return x * jax.nn.sigmoid(x)


# ----------------------------- Pallas kernel (all FPN levels fused) -----------------------------

def _build_detect_call(B, C, nc, levels, strides):
    """levels: list of (H, W, L, row_offset).  Returns a callable producing (B, sumL, NO_PAD)."""
    sum_l = sum(l for (_, _, l, _) in levels)
    no = 4 + 1 + nc
    assert no <= NO_PAD
    pads = [_round_up(w + 1, 8) for (_, w, _, _) in levels]
    nl = len(levels)

    def kernel(x_ref, ws_ref, bs_ref, wc_ref, bc_ref, wh_ref, bh_ref, out_ref, *pb_refs):
        col = lax.broadcasted_iota(jnp.int32, (1, NO_PAD), 1)
        cls_mask = jnp.logical_and(col >= 5, col < 5 + nc)       # class lanes [5, 5+nc)

        for i, ((H, W, L, off), stride, pad) in enumerate(zip(levels, strides, pads)):
            pb = pb_refs[i]
            sf = float(stride)

            # ---- stem: 1x1 conv (BN folded) + SiLU ----
            x = x_ref[0, off:off + L, :]                          # (L, C)
            f = _silu(jnp.dot(x, ws_ref[i], preferred_element_type=jnp.float32) + bs_ref[i])

            # Zero-padded flat buffer: re-zero only the two halos; interior is overwritten.
            pb[0:pad, :] = jnp.zeros((pad, C), pb.dtype)
            pb[pad + L:pad + L + pad, :] = jnp.zeros((pad, C), pb.dtype)
            pb[pad:pad + L, :] = f.astype(pb.dtype)

            # Grid coords / column-wrap masks derived from an in-kernel iota (no extra DMAs).
            ridx = lax.broadcasted_iota(jnp.int32, (L, 1), 0).astype(jnp.float32)
            yrow = jnp.floor(ridx / float(W))
            xcol = ridx - yrow * float(W)
            m_first = (xcol != 0.0).astype(pb.dtype)              # x == 0   cannot read dx = -1
            m_last = (xcol != float(W - 1)).astype(pb.dtype)      # x == W-1 cannot read dx = +1

            # ---- cls_conv & reg_conv 3x3 fused: stack 9 shifted taps -> one wide-K matmul ----
            taps = []
            for dy in (-1, 0, 1):
                for dx in (-1, 0, 1):
                    s = dy * W + dx
                    t = pb[pad + s:pad + s + L, :]                # (L, C)
                    if dx == 1:
                        t = t * m_last
                    elif dx == -1:
                        t = t * m_first
                    taps.append(t)
            taps = jnp.concatenate(taps, axis=-1)                 # (L, 9C)
            feat2 = _silu(jnp.dot(taps, wc_ref[i], preferred_element_type=jnp.float32)
                          + bc_ref[i])                            # (L, 2C) = [cls_feat | reg_feat]

            # ---- fused prediction head: one (2C, NO_PAD) block matmul ----
            # box lanes 0:4 already hold stride * dist2bbox(lrtb) (minus the anchor shift),
            # lane 4 is the objectness placeholder bias (1.0), lanes 5:5+nc are class logits.
            head = jnp.dot(feat2.astype(MATMUL_DTYPE), wh_ref[i],
                           preferred_element_type=jnp.float32) + bh_ref[i]   # (L, NO_PAD)

            gx = (xcol + 0.5) * sf                                # anchor_x * stride, (L, 1)
            gy = (yrow + 0.5) * sf
            anchor_shift = (jnp.where(col == 0, gx, 0.0) +
                            jnp.where(col == 1, gy, 0.0))         # (L, NO_PAD)

            # Single lane-dense store of the finished slab for this level.
            out_ref[0, off:off + L, :] = jnp.where(
                cls_mask, jax.nn.sigmoid(head), head + anchor_shift)

    def full_spec(shape):
        n = len(shape)
        return pl.BlockSpec(shape, lambda b, _n=n: (0,) * _n)

    return pl.pallas_call(
        kernel,
        out_shape=jax.ShapeDtypeStruct((B, sum_l, NO_PAD), jnp.float32),
        grid=(B,),
        in_specs=[
            pl.BlockSpec((1, sum_l, C), lambda b: (b, 0, 0)),     # features (all levels)
            full_spec((nl, C, C)), full_spec((nl, 1, C)),         # stem
            full_spec((nl, 9 * C, 2 * C)), full_spec((nl, 1, 2 * C)),  # fused 3x3 convs
            full_spec((nl, 2 * C, NO_PAD)), full_spec((nl, 1, NO_PAD)),  # fused heads
        ],
        out_specs=pl.BlockSpec((1, sum_l, NO_PAD), lambda b: (b, 0, 0)),
        scratch_shapes=[pltpu.VMEM((l + 2 * p, C), MATMUL_DTYPE)
                        for (_, _, l, _), p in zip(levels, pads)],
        compiler_params=pltpu.CompilerParams(dimension_semantics=("parallel",)),
    )


# ----------------------------- parameter packing for the fused kernel -----------------------------

def _pack_params(params, strides, dtype):
    C = params[0]["w_stem"].shape[0]
    nc = params[0]["w_clsp"].shape[1]
    # dist2bbox (xywh) as a linear map on d = [lt_x, lt_y, rb_x, rb_y]:
    #   [cx_rel, cy_rel, w, h] = d @ M ;  box = stride * (d @ M) + stride * [ax, ay, 0, 0]
    M = jnp.array([[-0.5, 0.0, 1.0, 0.0],
                   [0.0, -0.5, 0.0, 1.0],
                   [0.5, 0.0, 1.0, 0.0],
                   [0.0, 0.5, 0.0, 1.0]], jnp.float32)
    ws, bs, wc, bc, wh, bh = [], [], [], [], [], []
    for p, s in zip(params, strides):
        assert p["w_stem"].shape[0] == C and p["w_clsp"].shape[1] == nc
        ws.append(p["w_stem"].astype(dtype))
        bs.append(p["b_stem"].astype(jnp.float32))
        wc.append(jnp.concatenate([p["w_cls3"], p["w_reg3"]], axis=-1)
                  .reshape(9 * C, 2 * C).astype(dtype))
        bc.append(jnp.concatenate([p["b_cls3"], p["b_reg3"]], axis=-1).astype(jnp.float32))

        w_lrtb = jnp.concatenate([p["w_lt"], p["w_rb"]], axis=-1)     # (C, 4)
        b_lrtb = jnp.concatenate([p["b_lt"], p["b_rb"]], axis=-1)     # (1, 4)
        w_box = float(s) * (w_lrtb @ M)
        b_box = float(s) * (b_lrtb @ M)
        w_head = jnp.zeros((2 * C, NO_PAD), jnp.float32)
        w_head = w_head.at[C:, 0:4].set(w_box)                        # reg_feat -> box
        w_head = w_head.at[:C, 5:5 + nc].set(p["w_clsp"])             # cls_feat -> class logits
        b_head = jnp.zeros((1, NO_PAD), jnp.float32)
        b_head = b_head.at[:, 0:4].set(b_box)
        b_head = b_head.at[:, 4].set(1.0)                             # objectness placeholder
        b_head = b_head.at[:, 5:5 + nc].set(p["b_clsp"])
        wh.append(w_head.astype(dtype))
        bh.append(b_head.astype(jnp.float32))
    return (jnp.stack(ws), jnp.stack(bs), jnp.stack(wc), jnp.stack(bc),
            jnp.stack(wh), jnp.stack(bh)), C, nc


# ----------------------------- wrapper -----------------------------

def detect_forward(xs_nchw, params, strides=(8, 16, 32)):
    B, C = xs_nchw[0].shape[0], xs_nchw[0].shape[1]
    levels, flats, off = [], [], 0
    for x in xs_nchw:
        b, c, h, w = x.shape
        assert b == B and c == C, "fused-level kernel assumes equal head width per level"
        l = h * w
        flats.append(jnp.transpose(x, (0, 2, 3, 1)).reshape(B, l, C))
        levels.append((h, w, l, off))
        off += l
    x_all = jnp.concatenate(flats, axis=1).astype(MATMUL_DTYPE)       # (B, sumL, C)
    packed, _, nc = _pack_params(params, strides, MATMUL_DTYPE)
    out_padded = _build_detect_call(B, C, nc, levels, strides)(x_all, *packed)
    return out_padded[:, :, :4 + 1 + nc]                              # (B, sumL, 4 + 1 + nc)


# ----------------------------- deterministic synthetic parameters -----------------------------

def _conv_bn_folded(key, ksize, cin, cout):
    k1, k2, k3, k4, k5 = jax.random.split(key, 5)
    if ksize == 1:
        w = jax.random.normal(k1, (cin, cout), jnp.float32) / np.sqrt(cin)
    else:
        w = jax.random.normal(k1, (ksize * ksize, cin, cout), jnp.float32) / np.sqrt(cin * ksize * ksize)
    gamma = jax.random.uniform(k2, (cout,), jnp.float32, 0.5, 1.5)
    beta = jax.random.normal(k3, (cout,), jnp.float32) * 0.1
    mean = jax.random.normal(k4, (cout,), jnp.float32) * 0.1
    var = jax.random.uniform(k5, (cout,), jnp.float32, 0.5, 1.5)
    scale = gamma / jnp.sqrt(var + 1e-5)
    return w * scale, (beta - mean * scale).reshape(1, cout)


def _conv_1x1_bias(key, cin, cout):
    k1, k2 = jax.random.split(key)
    w = jax.random.normal(k1, (cin, cout), jnp.float32) / np.sqrt(cin)
    b = jax.random.normal(k2, (1, cout), jnp.float32) * 0.1
    return w, b


def init_params(key, channels, nc):
    params = []
    for C in channels:
        key, k0, k1, k2, k3, k4 = jax.random.split(key, 6)
        w_stem, b_stem = _conv_bn_folded(k0, 1, C, C)
        w_cls3, b_cls3 = _conv_bn_folded(k1, 3, C, C)
        w_reg3, b_reg3 = _conv_bn_folded(k2, 3, C, C)
        w_clsp, b_clsp = _conv_1x1_bias(k3, C, nc)
        w_lrtb, b_lrtb = _conv_1x1_bias(k4, C, 4)
        params.append(dict(
            w_stem=w_stem, b_stem=b_stem,
            w_cls3=w_cls3, b_cls3=b_cls3,
            w_reg3=w_reg3, b_reg3=b_reg3,
            w_clsp=w_clsp, b_clsp=b_clsp,
            w_lt=w_lrtb[:, 0:2], b_lt=b_lrtb[:, 0:2],
            w_rb=w_lrtb[:, 2:4], b_rb=b_lrtb[:, 2:4],
        ))
    return params


# ----------------------------- pure-JAX reference (for verification) -----------------------------

def reference_forward(xs_nchw, params, strides=(8, 16, 32)):
    outs = []
    hp = dict(precision="highest")
    for x, p, stride in zip(xs_nchw, params, strides):
        B, C, H, W = x.shape
        L = H * W
        xn = jnp.transpose(x, (0, 2, 3, 1))
        f = jax.nn.silu(jnp.einsum("bhwc,cd->bhwd", xn, p["w_stem"], **hp) + p["b_stem"][0])

        def conv3(feat, w9, b):
            fp = jnp.pad(feat, ((0, 0), (1, 1), (1, 1), (0, 0)))
            acc = jnp.zeros(feat.shape[:3] + (w9.shape[-1],), jnp.float32)
            for i in range(3):
                for j in range(3):
                    acc = acc + jnp.einsum("bhwc,cd->bhwd", fp[:, i:i + H, j:j + W, :],
                                           w9[i * 3 + j], **hp)
            return jax.nn.silu(acc + b[0])

        cls_feat = conv3(f, p["w_cls3"], p["b_cls3"])
        reg_feat = conv3(f, p["w_reg3"], p["b_reg3"])
        cls_out = jax.nn.sigmoid(jnp.einsum("bhwc,cd->bhwd", cls_feat, p["w_clsp"], **hp)
                                 + p["b_clsp"][0]).reshape(B, L, -1)
        lt = (jnp.einsum("bhwc,cd->bhwd", reg_feat, p["w_lt"], **hp) + p["b_lt"][0]).reshape(B, L, 2)
        rb = (jnp.einsum("bhwc,cd->bhwd", reg_feat, p["w_rb"], **hp) + p["b_rb"][0]).reshape(B, L, 2)
        sy, sx = jnp.meshgrid(jnp.arange(H, dtype=jnp.float32) + 0.5,
                              jnp.arange(W, dtype=jnp.float32) + 0.5, indexing="ij")
        anchors = jnp.stack([sx, sy], axis=-1).reshape(L, 2)
        cxy = (anchors[None] + 0.5 * (rb - lt)) * stride
        wh = (lt + rb) * stride
        ones = jnp.ones((B, L, 1), jnp.float32)
        outs.append(jnp.concatenate([cxy, wh, ones, cls_out], axis=-1))
    return jnp.concatenate(outs, axis=1)


# ----------------------------- main -----------------------------

if __name__ == "__main__":
    key = jax.random.PRNGKey(0)
    B = 2
    nc = 16                      # small num_classes for the synthetic test
    channels = [32, 32, 32]      # head channels per level
    strides = (8, 16, 32)
    img = 128                    # -> feature maps 16x16, 8x8, 4x4

    kx, kp = jax.random.split(key)
    xs = []
    for i, s in enumerate(strides):
        kx, sub = jax.random.split(kx)
        xs.append(jax.random.normal(sub, (B, channels[i], img // s, img // s), jnp.float32))

    params = init_params(kp, channels, nc)

    out = detect_forward(xs, params, strides)
    out = jax.block_until_ready(out)
    assert out.shape == (B, sum((img // s) ** 2 for s in strides), 4 + 1 + nc)

    ref = reference_forward(xs, params, strides)
    np.testing.assert_allclose(np.asarray(out), np.asarray(ref), rtol=2e-2, atol=2e-2)

    print("KERNEL_OK")
</pallas_src>

<mosaic_0001>
module attributes {stable_mosaic.version = 11 : i64} {
  func.func @kernel(%arg0: i32, %arg1: memref<1x336x32xf32, #tpu.memory_space<vmem>>, %arg2: memref<3x32x32xf32, #tpu.memory_space<vmem>>, %arg3: memref<3x1x32xf32, #tpu.memory_space<vmem>>, %arg4: memref<3x288x64xf32, #tpu.memory_space<vmem>>, %arg5: memref<3x1x64xf32, #tpu.memory_space<vmem>>, %arg6: memref<3x64x128xf32, #tpu.memory_space<vmem>>, %arg7: memref<3x1x128xf32, #tpu.memory_space<vmem>>, %arg8: memref<1x336x128xf32, #tpu.memory_space<vmem>>, %arg9: memref<304x32xf32, #tpu.memory_space<vmem>>, %arg10: memref<96x32xf32, #tpu.memory_space<vmem>>, %arg11: memref<32x32xf32, #tpu.memory_space<vmem>>) attributes {dimension_semantics = [#tpu.dimension_semantics<parallel>], iteration_bounds = array<i64: 2>, scalar_prefetch = 0 : i64, scratch_operands = 3 : i64, tpu.core_type = #tpu.core_type<tc>, window_params = [{transform_indices = @transform_0, window_bounds = array<i64: 1, 336, 32>}, {pipeline_mode = #tpu.pipeline_mode<synchronous>, transform_indices = @transform_1, window_bounds = array<i64: 3, 32, 32>}, {pipeline_mode = #tpu.pipeline_mode<synchronous>, transform_indices = @transform_2, window_bounds = array<i64: 3, 1, 32>}, {pipeline_mode = #tpu.pipeline_mode<synchronous>, transform_indices = @transform_3, window_bounds = array<i64: 3, 288, 64>}, {pipeline_mode = #tpu.pipeline_mode<synchronous>, transform_indices = @transform_4, window_bounds = array<i64: 3, 1, 64>}, {pipeline_mode = #tpu.pipeline_mode<synchronous>, transform_indices = @transform_5, window_bounds = array<i64: 3, 64, 128>}, {pipeline_mode = #tpu.pipeline_mode<synchronous>, transform_indices = @transform_6, window_bounds = array<i64: 3, 1, 128>}, {transform_indices = @transform_7, window_bounds = array<i64: 1, 336, 128>}]} {
    %0 = tpu.iota {dimensions = array<i32: 1>} : vector<1x128xi32>
    %c5_i32 = arith.constant 5 : i32
    %1 = vector.broadcast %c5_i32 : i32 to vector<1x128xi32>
    %2 = arith.cmpi sge, %0, %1 : vector<1x128xi32>
    %c21_i32 = arith.constant 21 : i32
    %3 = vector.broadcast %c21_i32 : i32 to vector<1x128xi32>
    %4 = arith.cmpi slt, %0, %3 : vector<1x128xi32>
    %5 = arith.andi %2, %4 : vector<1x128xi1>
    %c0 = arith.constant 0 : index
    %c0_0 = arith.constant 0 : index
    %c0_1 = arith.constant 0 : index
    %6 = vector.load %arg1[%c0, %c0_0, %c0_1] : memref<1x336x32xf32, #tpu.memory_space<vmem>>, vector<1x256x32xf32>
    %7 = vector.shape_cast %6 : vector<1x256x32xf32> to vector<256x32xf32>
    %c0_2 = arith.constant 0 : index
    %c0_3 = arith.constant 0 : index
    %c0_4 = arith.constant 0 : index
    %8 = vector.load %arg2[%c0_2, %c0_3, %c0_4] : memref<3x32x32xf32, #tpu.memory_space<vmem>>, vector<1x32x32xf32>
    %9 = vector.shape_cast %8 : vector<1x32x32xf32> to vector<32x32xf32>
    %cst = arith.constant dense<0.000000e+00> : vector<256x32xf32>
    %10 = tpu.matmul %7, %9, %cst {dimension_numbers = #tpu.dot_dimension_numbers<[1], [0], [0], [1], [0, 0, 1, 1], [], []>} : vector<256x32xf32>, vector<32x32xf32>, vector<256x32xf32> -> vector<256x32xf32>
    %c0_5 = arith.constant 0 : index
    %c0_6 = arith.constant 0 : index
    %c0_7 = arith.constant 0 : index
    %11 = vector.load %arg3[%c0_5, %c0_6, %c0_7] : memref<3x1x32xf32, #tpu.memory_space<vmem>>, vector<1x1x32xf32>
    %12 = vector.shape_cast %11 : vector<1x1x32xf32> to vector<1x32xf32>
    %13 = vector.broadcast %12 : vector<1x32xf32> to vector<256x32xf32>
    %14 = arith.addf %10, %13 : vector<256x32xf32>
    %15 = arith.negf %14 : vector<256x32xf32>
    %16 = math.exp %15 : vector<256x32xf32>
    %cst_8 = arith.constant 1.000000e+00 : f32
    %17 = vector.broadcast %cst_8 : f32 to vector<256x32xf32>
    %18 = arith.addf %17, %16 : vector<256x32xf32>
    %19 = arith.divf %17, %18 : vector<256x32xf32>
    %20 = arith.mulf %14, %19 : vector<256x32xf32>
    %cst_9 = arith.constant 0.000000e+00 : f32
    %21 = vector.broadcast %cst_9 : f32 to vector<24x32xf32>
    %c0_10 = arith.constant 0 : index
    %c0_11 = arith.constant 0 : index
    %22 = vector.load %arg9[%c0_10, %c0_11] : memref<304x32xf32, #tpu.memory_space<vmem>>, vector<24x32xf32>
    tpu.vector_store %arg9[%c0_10, %c0_11], %21 {strides = array<i32>} : memref<304x32xf32, #tpu.memory_space<vmem>>, vector<24x32xf32>,
    %cst_12 = arith.constant 0.000000e+00 : f32
    %23 = vector.broadcast %cst_12 : f32 to vector<24x32xf32>
    %c280 = arith.constant 280 : index
    %c0_13 = arith.constant 0 : index
    %24 = vector.load %arg9[%c280, %c0_13] : memref<304x32xf32, #tpu.memory_space<vmem>>, vector<24x32xf32>
    tpu.vector_store %arg9[%c280, %c0_13], %23 {strides = array<i32>} : memref<304x32xf32, #tpu.memory_space<vmem>>, vector<24x32xf32>,
    %c24 = arith.constant 24 : index
    %c0_14 = arith.constant 0 : index
    %25 = vector.load %arg9[%c24, %c0_14] : memref<304x32xf32, #tpu.memory_space<vmem>>, vector<256x32xf32>
    tpu.vector_store %arg9[%c24, %c0_14], %20 {strides = array<i32>} : memref<304x32xf32, #tpu.memory_space<vmem>>, vector<256x32xf32>,
    %26 = tpu.iota {dimensions = array<i32: 0>} : vector<256x1xi32>
    %27 = arith.sitofp %26 : vector<256x1xi32> to vector<256x1xf32>
    %cst_15 = arith.constant 1.600000e+01 : f32
    %28 = vector.broadcast %cst_15 : f32 to vector<256x1xf32>
    %29 = arith.divf %27, %28 : vector<256x1xf32>
    %30 = math.floor %29 : vector<256x1xf32>
    %cst_16 = arith.constant 1.600000e+01 : f32
    %31 = vector.broadcast %cst_16 : f32 to vector<256x1xf32>
    %32 = arith.mulf %30, %31 : vector<256x1xf32>
    %33 = arith.subf %27, %32 : vector<256x1xf32>
    %cst_17 = arith.constant 0.000000e+00 : f32
    %34 = vector.broadcast %cst_17 : f32 to vector<256x1xf32>
    %35 = arith.cmpf one, %33, %34 : vector<256x1xf32>
    %36 = arith.extui %35 : vector<256x1xi1> to vector<256x1xi32>
    %37 = arith.sitofp %36 : vector<256x1xi32> to vector<256x1xf32>
    %cst_18 = arith.constant 1.500000e+01 : f32
    %38 = vector.broadcast %cst_18 : f32 to vector<256x1xf32>
    %39 = arith.cmpf one, %33, %38 : vector<256x1xf32>
    %40 = arith.extui %39 : vector<256x1xi1> to vector<256x1xi32>
    %41 = arith.sitofp %40 : vector<256x1xi32> to vector<256x1xf32>
    %c7 = arith.constant 7 : index
    %c0_19 = arith.constant 0 : index
    %42 = vector.load %arg9[%c7, %c0_19] : memref<304x32xf32, #tpu.memory_space<vmem>>, vector<256x32xf32>
    %43 = vector.broadcast %37 : vector<256x1xf32> to vector<256x32xf32>
    %44 = arith.mulf %42, %43 : vector<256x32xf32>
    %c8 = arith.constant 8 : index
    %c0_20 = arith.constant 0 : index
    %45 = vector.load %arg9[%c8, %c0_20] : memref<304x32xf32, #tpu.memory_space<vmem>>, vector<256x32xf32>
    %c9 = arith.constant 9 : index
    %c0_21 = arith.constant 0 : index
    %46 = vector.load %arg9[%c9, %c0_21] : memref<304x32xf32, #tpu.memory_space<vmem>>, vector<256x32xf32>
    %47 = vector.broadcast %41 : vector<256x1xf32> to vector<256x32xf32>
    %48 = arith.mulf %46, %47 : vector<256x32xf32>
    %c23 = arith.constant 23 : index
    %c0_22 = arith.constant 0 : index
    %49 = vector.load %arg9[%c23, %c0_22] : memref<304x32xf32, #tpu.memory_space<vmem>>, vector<256x32xf32>
    %50 = vector.broadcast %37 : vector<256x1xf32> to vector<256x32xf32>
    %51 = arith.mulf %49, %50 : vector<256x32xf32>
    %c24_23 = arith.constant 24 : index
    %c0_24 = arith.constant 0 : index
    %52 = vector.load %arg9[%c24_23, %c0_24] : memref<304x32xf32, #tpu.memory_space<vmem>>, vector<256x32xf32>
    %c25 = arith.constant 25 : index
    %c0_25 = arith.constant 0 : index
    %53 = vector.load %arg9[%c25, %c0_25] : memref<304x32xf32, #tpu.memory_space<vmem>>, vector<256x32xf32>
    %54 = vector.broadcast %41 : vector<256x1xf32> to vector<256x32xf32>
    %55 = arith.mulf %53, %54 : vector<256x32xf32>
    %c39 = arith.constant 39 : index
    %c0_26 = arith.constant 0 : index
    %56 = vector.load %arg9[%c39, %c0_26] : memref<304x32xf32, #tpu.memory_space<vmem>>, vector<256x32xf32>
    %57 = vector.broadcast %37 : vector<256x1xf32> to vector<256x32xf32>
    %58 = arith.mulf %56, %57 : vector<256x32xf32>
    %c40 = arith.constant 40 : index
    %c0_27 = arith.constant 0 : index
    %59 = vector.load %arg9[%c40, %c0_27] : memref<304x32xf32, #tpu.memory_space<vmem>>, vector<256x32xf32>
    %c41 = arith.constant 41 : index
    %c0_28 = arith.constant 0 : index
    %60 = vector.load %arg9[%c41, %c0_28] : memref<304x32xf32, #tpu.memory_space<vmem>>, vector<256x32xf32>
    %61 = vector.broadcast %41 : vector<256x1xf32> to vector<256x32xf32>
    %62 = arith.mulf %60, %61 : vector<256x32xf32>
    %63 = tpu.concatenate %44, %45, %48, %51, %52, %55, %58, %59, %62 in 1 : vector<256x32xf32>, vector<256x32xf32>, vector<256x32xf32>, vector<256x32xf32>, vector<256x32xf32>, vector<256x32xf32>, vector<256x32xf32>, vector<256x32xf32>, vector<256x32xf32> -> vector<256x288xf32>
    %c0_29 = arith.constant 0 : index
    %c0_30 = arith.constant 0 : index
    %c0_31 = arith.constant 0 : index
    %64 = vector.load %arg4[%c0_29, %c0_30, %c0_31] : memref<3x288x64xf32, #tpu.memory_space<vmem>>, vector<1x288x64xf32>
    %65 = vector.shape_cast %64 : vector<1x288x64xf32> to vector<288x64xf32>
    %cst_32 = arith.constant dense<0.000000e+00> : vector<256x64xf32>
    %66 = tpu.matmul %63, %65, %cst_32 {dimension_numbers = #tpu.dot_dimension_numbers<[1], [0], [0], [1], [0, 0, 1, 1], [], []>} : vector<256x288xf32>, vector<288x64xf32>, vector<256x64xf32> -> vector<256x64xf32>
    %c0_33 = arith.constant 0 : index
    %c0_34 = arith.constant 0 : index
    %c0_35 = arith.constant 0 : index
    %67 = vector.load %arg5[%c0_33, %c0_34, %c0_35] : memref<3x1x64xf32, #tpu.memory_space<vmem>>, vector<1x1x64xf32>
    %68 = vector.shape_cast %67 : vector<1x1x64xf32> to vector<1x64xf32>
    %69 = vector.broadcast %68 : vector<1x64xf32> to vector<256x64xf32>
    %70 = arith.addf %66, %69 : vector<256x64xf32>
    %71 = arith.negf %70 : vector<256x64xf32>
    %72 = math.exp %71 : vector<256x64xf32>
    %cst_36 = arith.constant 1.000000e+00 : f32
    %73 = vector.broadcast %cst_36 : f32 to vector<256x64xf32>
    %74 = arith.addf %73, %72 : vector<256x64xf32>
    %75 = arith.divf %73, %74 : vector<256x64xf32>
    %76 = arith.mulf %70, %75 : vector<256x64xf32>
    %c0_37 = arith.constant 0 : index
    %c0_38 = arith.constant 0 : index
    %c0_39 = arith.constant 0 : index
    %77 = vector.load %arg6[%c0_37, %c0_38, %c0_39] : memref<3x64x128xf32, #tpu.memory_space<vmem>>, vector<1x64x128xf32>
    %78 = vector.shape_cast %77 : vector<1x64x128xf32> to vector<64x128xf32>
    %cst_40 = arith.constant dense<0.000000e+00> : vector<256x128xf32>
    %79 = tpu.matmul %76, %78, %cst_40 {dimension_numbers = #tpu.dot_dimension_numbers<[1], [0], [0], [1], [0, 0, 1, 1], [], []>} : vector<256x64xf32>, vector<64x128xf32>, vector<256x128xf32> -> vector<256x128xf32>
    %c0_41 = arith.constant 0 : index
    %c0_42 = arith.constant 0 : index
    %c0_43 = arith.constant 0 : index
    %80 = vector.load %arg7[%c0_41, %c0_42, %c0_43] : memref<3x1x128xf32, #tpu.memory_space<vmem>>, vector<1x1x128xf32>
    %81 = vector.shape_cast %80 : vector<1x1x128xf32> to vector<1x128xf32>
    %82 = vector.broadcast %81 : vector<1x128xf32> to vector<256x128xf32>
    %83 = arith.addf %79, %82 : vector<256x128xf32>
    %cst_44 = arith.constant 5.000000e-01 : f32
    %84 = vector.broadcast %cst_44 : f32 to vector<256x1xf32>
    %85 = arith.addf %33, %84 : vector<256x1xf32>
    %cst_45 = arith.constant 8.000000e+00 : f32
    %86 = vector.broadcast %cst_45 : f32 to vector<256x1xf32>
    %87 = arith.mulf %85, %86 : vector<256x1xf32>
    %cst_46 = arith.constant 5.000000e-01 : f32
    %88 = vector.broadcast %cst_46 : f32 to vector<256x1xf32>
    %89 = arith.addf %30, %88 : vector<256x1xf32>
    %cst_47 = arith.constant 8.000000e+00 : f32
    %90 = vector.broadcast %cst_47 : f32 to vector<256x1xf32>
    %91 = arith.mulf %89, %90 : vector<256x1xf32>
    %c0_i32 = arith.constant 0 : i32
    %92 = vector.broadcast %c0_i32 : i32 to vector<1x128xi32>
    %93 = arith.cmpi eq, %0, %92 : vector<1x128xi32>
    %cst_48 = arith.constant 0.000000e+00 : f32
    %94 = vector.shape_cast %93 : vector<1x128xi1> to vector<1x128xi1>
    %95 = vector.broadcast %94 : vector<1x128xi1> to vector<256x128xi1>
    %96 = vector.shape_cast %87 : vector<256x1xf32> to vector<256x1xf32>
    %97 = vector.broadcast %96 : vector<256x1xf32> to vector<256x128xf32>
    %98 = vector.broadcast %cst_48 : f32 to vector<256x128xf32>
    %99 = arith.select %95, %97, %98 : vector<256x128xi1>, vector<256x128xf32>
    %c1_i32 = arith.constant 1 : i32
    %100 = vector.broadcast %c1_i32 : i32 to vector<1x128xi32>
    %101 = arith.cmpi eq, %0, %100 : vector<1x128xi32>
    %cst_49 = arith.constant 0.000000e+00 : f32
    %102 = vector.shape_cast %101 : vector<1x128xi1> to vector<1x128xi1>
    %103 = vector.broadcast %102 : vector<1x128xi1> to vector<256x128xi1>
    %104 = vector.shape_cast %91 : vector<256x1xf32> to vector<256x1xf32>
    %105 = vector.broadcast %104 : vector<256x1xf32> to vector<256x128xf32>
    %106 = vector.broadcast %cst_49 : f32 to vector<256x128xf32>
    %107 = arith.select %103, %105, %106 : vector<256x128xi1>, vector<256x128xf32>
    %108 = arith.addf %99, %107 : vector<256x128xf32>
    %109 = arith.negf %83 : vector<256x128xf32>
    %110 = math.exp %109 : vector<256x128xf32>
    %cst_50 = arith.constant 1.000000e+00 : f32
    %111 = vector.broadcast %cst_50 : f32 to vector<256x128xf32>
    %112 = arith.addf %111, %110 : vector<256x128xf32>
    %113 = arith.divf %111, %112 : vector<256x128xf32>
    %114 = arith.addf %83, %108 : vector<256x128xf32>
    %115 = vector.shape_cast %5 : vector<1x128xi1> to vector<1x128xi1>
    %116 = vector.broadcast %115 : vector<1x128xi1> to vector<256x128xi1>
    %117 = arith.select %116, %113, %114 : vector<256x128xi1>, vector<256x128xf32>
    %c0_51 = arith.constant 0 : index
    %c0_52 = arith.constant 0 : index
    %c0_53 = arith.constant 0 : index
    %118 = vector.load %arg8[%c0_51, %c0_52, %c0_53] : memref<1x336x128xf32, #tpu.memory_space<vmem>>, vector<1x256x128xf32>
    %119 = vector.shape_cast %118 : vector<1x256x128xf32> to vector<256x128xf32>
    %120 = vector.shape_cast %117 : vector<256x128xf32> to vector<1x256x128xf32>
    tpu.vector_store %arg8[%c0_51, %c0_52, %c0_53], %120 {strides = array<i32>} : memref<1x336x128xf32, #tpu.memory_space<vmem>>, vector<1x256x128xf32>,
    %c0_54 = arith.constant 0 : index
    %c256 = arith.constant 256 : index
    %c0_55 = arith.constant 0 : index
    %121 = vector.load %arg1[%c0_54, %c256, %c0_55] : memref<1x336x32xf32, #tpu.memory_space<vmem>>, vector<1x64x32xf32>
    %122 = vector.shape_cast %121 : vector<1x64x32xf32> to vector<64x32xf32>
    %c1 = arith.constant 1 : index
    %c0_56 = arith.constant 0 : index
    %c0_57 = arith.constant 0 : index
    %123 = vector.load %arg2[%c1, %c0_56, %c0_57] : memref<3x32x32xf32, #tpu.memory_space<vmem>>, vector<1x32x32xf32>
    %124 = vector.shape_cast %123 : vector<1x32x32xf32> to vector<32x32xf32>
    %cst_58 = arith.constant dense<0.000000e+00> : vector<64x32xf32>
    %125 = tpu.matmul %122, %124, %cst_58 {dimension_numbers = #tpu.dot_dimension_numbers<[1], [0], [0], [1], [0, 0, 1, 1], [], []>} : vector<64x32xf32>, vector<32x32xf32>, vector<64x32xf32> -> vector<64x32xf32>
    %c1_59 = arith.constant 1 : index
    %c0_60 = arith.constant 0 : index
    %c0_61 = arith.constant 0 : index
    %126 = vector.load %arg3[%c1_59, %c0_60, %c0_61] : memref<3x1x32xf32, #tpu.memory_space<vmem>>, vector<1x1x32xf32>
    %127 = vector.shape_cast %126 : vector<1x1x32xf32> to vector<1x32xf32>
    %128 = vector.broadcast %127 : vector<1x32xf32> to vector<64x32xf32>
    %129 = arith.addf %125, %128 : vector<64x32xf32>
    %130 = arith.negf %129 : vector<64x32xf32>
    %131 = math.exp %130 : vector<64x32xf32>
    %cst_62 = arith.constant 1.000000e+00 : f32
    %132 = vector.broadcast %cst_62 : f32 to vector<64x32xf32>
    %133 = arith.addf %132, %131 : vector<64x32xf32>
    %134 = arith.divf %132, %133 : vector<64x32xf32>
    %135 = arith.mulf %129, %134 : vector<64x32xf32>
    %cst_63 = arith.constant 0.000000e+00 : f32
    %136 = vector.broadcast %cst_63 : f32 to vector<16x32xf32>
    %c0_64 = arith.constant 0 : index
    %c0_65 = arith.constant 0 : index
    %137 = vector.load %arg10[%c0_64, %c0_65] : memref<96x32xf32, #tpu.memory_space<vmem>>, vector<16x32xf32>
    tpu.vector_store %arg10[%c0_64, %c0_65], %136 {strides = array<i32>} : memref<96x32xf32, #tpu.memory_space<vmem>>, vector<16x32xf32>,
    %cst_66 = arith.constant 0.000000e+00 : f32
    %138 = vector.broadcast %cst_66 : f32 to vector<16x32xf32>
    %c80 = arith.constant 80 : index
    %c0_67 = arith.constant 0 : index
    %139 = vector.load %arg10[%c80, %c0_67] : memref<96x32xf32, #tpu.memory_space<vmem>>, vector<16x32xf32>
    tpu.vector_store %arg10[%c80, %c0_67], %138 {strides = array<i32>} : memref<96x32xf32, #tpu.memory_space<vmem>>, vector<16x32xf32>,
    %c16 = arith.constant 16 : index
    %c0_68 = arith.constant 0 : index
    %140 = vector.load %arg10[%c16, %c0_68] : memref<96x32xf32, #tpu.memory_space<vmem>>, vector<64x32xf32>
    tpu.vector_store %arg10[%c16, %c0_68], %135 {strides = array<i32>} : memref<96x32xf32, #tpu.memory_space<vmem>>, vector<64x32xf32>,
    %141 = tpu.iota {dimensions = array<i32: 0>} : vector<64x1xi32>
    %142 = arith.sitofp %141 : vector<64x1xi32> to vector<64x1xf32>
    %cst_69 = arith.constant 8.000000e+00 : f32
    %143 = vector.broadcast %cst_69 : f32 to vector<64x1xf32>
    %144 = arith.divf %142, %143 : vector<64x1xf32>
    %145 = math.floor %144 : vector<64x1xf32>
    %cst_70 = arith.constant 8.000000e+00 : f32
    %146 = vector.broadcast %cst_70 : f32 to vector<64x1xf32>
    %147 = arith.mulf %145, %146 : vector<64x1xf32>
    %148 = arith.subf %142, %147 : vector<64x1xf32>
    %cst_71 = arith.constant 0.000000e+00 : f32
    %149 = vector.broadcast %cst_71 : f32 to vector<64x1xf32>
    %150 = arith.cmpf one, %148, %149 : vector<64x1xf32>
    %151 = arith.extui %150 : vector<64x1xi1> to vector<64x1xi32>
    %152 = arith.sitofp %151 : vector<64x1xi32> to vector<64x1xf32>
    %cst_72 = arith.constant 7.000000e+00 : f32
    %153 = vector.broadcast %cst_72 : f32 to vector<64x1xf32>
    %154 = arith.cmpf one, %148, %153 : vector<64x1xf32>
    %155 = arith.extui %154 : vector<64x1xi1> to vector<64x1xi32>
    %156 = arith.sitofp %155 : vector<64x1xi32> to vector<64x1xf32>
    %c7_73 = arith.constant 7 : index
    %c0_74 = arith.constant 0 : index
    %157 = vector.load %arg10[%c7_73, %c0_74] : memref<96x32xf32, #tpu.memory_space<vmem>>, vector<64x32xf32>
    %158 = vector.broadcast %152 : vector<64x1xf32> to vector<64x32xf32>
    %159 = arith.mulf %157, %158 : vector<64x32xf32>
    %c8_75 = arith.constant 8 : index
    %c0_76 = arith.constant 0 : index
    %160 = vector.load %arg10[%c8_75, %c0_76] : memref<96x32xf32, #tpu.memory_space<vmem>>, vector<64x32xf32>
    %c9_77 = arith.constant 9 : index
    %c0_78 = arith.constant 0 : index
    %161 = vector.load %arg10[%c9_77, %c0_78] : memref<96x32xf32, #tpu.memory_space<vmem>>, vector<64x32xf32>
    %162 = vector.broadcast %156 : vector<64x1xf32> to vector<64x32xf32>
    %163 = arith.mulf %161, %162 : vector<64x32xf32>
    %c15 = arith.constant 15 : index
    %c0_79 = arith.constant 0 : index
    %164 = vector.load %arg10[%c15, %c0_79] : memref<96x32xf32, #tpu.memory_space<vmem>>, vector<64x32xf32>
    %165 = vector.broadcast %152 : vector<64x1xf32> to vector<64x32xf32>
    %166 = arith.mulf %164, %165 : vector<64x32xf32>
    %c16_80 = arith.constant 16 : index
    %c0_81 = arith.constant 0 : index
    %167 = vector.load %arg10[%c16_80, %c0_81] : memref<96x32xf32, #tpu.memory_space<vmem>>, vector<64x32xf32>
    %c17 = arith.constant 17 : index
    %c0_82 = arith.constant 0 : index
    %168 = vector.load %arg10[%c17, %c0_82] : memref<96x32xf32, #tpu.memory_space<vmem>>, vector<64x32xf32>
    %169 = vector.broadcast %156 : vector<64x1xf32> to vector<64x32xf32>
    %170 = arith.mulf %168, %169 : vector<64x32xf32>
    %c23_83 = arith.constant 23 : index
    %c0_84 = arith.constant 0 : index
    %171 = vector.load %arg10[%c23_83, %c0_84] : memref<96x32xf32, #tpu.memory_space<vmem>>, vector<64x32xf32>
    %172 = vector.broadcast %152 : vector<64x1xf32> to vector<64x32xf32>
    %173 = arith.mulf %171, %172 : vector<64x32xf32>
    %c24_85 = arith.constant 24 : index
    %c0_86 = arith.constant 0 : index
    %174 = vector.load %arg10[%c24_85, %c0_86] : memref<96x32xf32, #tpu.memory_space<vmem>>, vector<64x32xf32>
    %c25_87 = arith.constant 25 : index
    %c0_88 = arith.constant 0 : index
    %175 = vector.load %arg10[%c25_87, %c0_88] : memref<96x32xf32, #tpu.memory_space<vmem>>, vector<64x32xf32>
    %176 = vector.broadcast %156 : vector<64x1xf32> to vector<64x32xf32>
    %177 = arith.mulf %175, %176 : vector<64x32xf32>
    %178 = tpu.concatenate %159, %160, %163, %166, %167, %170, %173, %174, %177 in 1 : vector<64x32xf32>, vector<64x32xf32>, vector<64x32xf32>, vector<64x32xf32>, vector<64x32xf32>, vector<64x32xf32>, vector<64x32xf32>, vector<64x32xf32>, vector<64x32xf32> -> vector<64x288xf32>
    %c1_89 = arith.constant 1 : index
    %c0_90 = arith.constant 0 : index
    %c0_91 = arith.constant 0 : index
    %179 = vector.load %arg4[%c1_89, %c0_90, %c0_91] : memref<3x288x64xf32, #tpu.memory_space<vmem>>, vector<1x288x64xf32>
    %180 = vector.shape_cast %179 : vector<1x288x64xf32> to vector<288x64xf32>
    %cst_92 = arith.constant dense<0.000000e+00> : vector<64x64xf32>
    %181 = tpu.matmul %178, %180, %cst_92 {dimension_numbers = #tpu.dot_dimension_numbers<[1], [0], [0], [1], [0, 0, 1, 1], [], []>} : vector<64x288xf32>, vector<288x64xf32>, vector<64x64xf32> -> vector<64x64xf32>
    %c1_93 = arith.constant 1 : index
    %c0_94 = arith.constant 0 : index
    %c0_95 = arith.constant 0 : index
    %182 = vector.load %arg5[%c1_93, %c0_94, %c0_95] : memref<3x1x64xf32, #tpu.memory_space<vmem>>, vector<1x1x64xf32>
    %183 = vector.shape_cast %182 : vector<1x1x64xf32> to vector<1x64xf32>
    %184 = vector.broadcast %183 : vector<1x64xf32> to vector<64x64xf32>
    %185 = arith.addf %181, %184 : vector<64x64xf32>
    %186 = arith.negf %185 : vector<64x64xf32>
    %187 = math.exp %186 : vector<64x64xf32>
    %cst_96 = arith.constant 1.000000e+00 : f32
    %188 = vector.broadcast %cst_96 : f32 to vector<64x64xf32>
    %189 = arith.addf %188, %187 : vector<64x64xf32>
    %190 = arith.divf %188, %189 : vector<64x64xf32>
    %191 = arith.mulf %185, %190 : vector<64x64xf32>
    %c1_97 = arith.constant 1 : index
    %c0_98 = arith.constant 0 : index
    %c0_99 = arith.constant 0 : index
    %192 = vector.load %arg6[%c1_97, %c0_98, %c0_99] : memref<3x64x128xf32, #tpu.memory_space<vmem>>, vector<1x64x128xf32>
    %193 = vector.shape_cast %192 : vector<1x64x128xf32> to vector<64x128xf32>
    %cst_100 = arith.constant dense<0.000000e+00> : vector<64x128xf32>
    %194 = tpu.matmul %191, %193, %cst_100 {dimension_numbers = #tpu.dot_dimension_numbers<[1], [0], [0], [1], [0, 0, 1, 1], [], []>} : vector<64x64xf32>, vector<64x128xf32>, vector<64x128xf32> -> vector<64x128xf32>
    %c1_101 = arith.constant 1 : index
    %c0_102 = arith.constant 0 : index
    %c0_103 = arith.constant 0 : index
    %195 = vector.load %arg7[%c1_101, %c0_102, %c0_103] : memref<3x1x128xf32, #tpu.memory_space<vmem>>, vector<1x1x128xf32>
    %196 = vector.shape_cast %195 : vector<1x1x128xf32> to vector<1x128xf32>
    %197 = vector.broadcast %196 : vector<1x128xf32> to vector<64x128xf32>
    %198 = arith.addf %194, %197 : vector<64x128xf32>
    %cst_104 = arith.constant 5.000000e-01 : f32
    %199 = vector.broadcast %cst_104 : f32 to vector<64x1xf32>
    %200 = arith.addf %148, %199 : vector<64x1xf32>
    %cst_105 = arith.constant 1.600000e+01 : f32
    %201 = vector.broadcast %cst_105 : f32 to vector<64x1xf32>
    %202 = arith.mulf %200, %201 : vector<64x1xf32>
    %cst_106 = arith.constant 5.000000e-01 : f32
    %203 = vector.broadcast %cst_106 : f32 to vector<64x1xf32>
    %204 = arith.addf %145, %203 : vector<64x1xf32>
    %cst_107 = arith.constant 1.600000e+01 : f32
    %205 = vector.broadcast %cst_107 : f32 to vector<64x1xf32>
    %206 = arith.mulf %204, %205 : vector<64x1xf32>
    %c0_i32_108 = arith.constant 0 : i32
    %207 = vector.broadcast %c0_i32_108 : i32 to vector<1x128xi32>
    %208 = arith.cmpi eq, %0, %207 : vector<1x128xi32>
    %cst_109 = arith.constant 0.000000e+00 : f32
    %209 = vector.shape_cast %208 : vector<1x128xi1> to vector<1x128xi1>
    %210 = vector.broadcast %209 : vector<1x128xi1> to vector<64x128xi1>
    %211 = vector.shape_cast %202 : vector<64x1xf32> to vector<64x1xf32>
    %212 = vector.broadcast %211 : vector<64x1xf32> to vector<64x128xf32>
    %213 = vector.broadcast %cst_109 : f32 to vector<64x128xf32>
    %214 = arith.select %210, %212, %213 : vector<64x128xi1>, vector<64x128xf32>
    %c1_i32_110 = arith.constant 1 : i32
    %215 = vector.broadcast %c1_i32_110 : i32 to vector<1x128xi32>
    %216 = arith.cmpi eq, %0, %215 : vector<1x128xi32>
    %cst_111 = arith.constant 0.000000e+00 : f32
    %217 = vector.shape_cast %216 : vector<1x128xi1> to vector<1x128xi1>
    %218 = vector.broadcast %217 : vector<1x128xi1> to vector<64x128xi1>
    %219 = vector.shape_cast %206 : vector<64x1xf32> to vector<64x1xf32>
    %220 = vector.broadcast %219 : vector<64x1xf32> to vector<64x128xf32>
    %221 = vector.broadcast %cst_111 : f32 to vector<64x128xf32>
    %222 = arith.select %218, %220, %221 : vector<64x128xi1>, vector<64x128xf32>
    %223 = arith.addf %214, %222 : vector<64x128xf32>
    %224 = arith.negf %198 : vector<64x128xf32>
    %225 = math.exp %224 : vector<64x128xf32>
    %cst_112 = arith.constant 1.000000e+00 : f32
    %226 = vector.broadcast %cst_112 : f32 to vector<64x128xf32>
    %227 = arith.addf %226, %225 : vector<64x128xf32>
    %228 = arith.divf %226, %227 : vector<64x128xf32>
    %229 = arith.addf %198, %223 : vector<64x128xf32>
    %230 = vector.shape_cast %5 : vector<1x128xi1> to vector<1x128xi1>
    %231 = vector.broadcast %230 : vector<1x128xi1> to vector<64x128xi1>
    %232 = arith.select %231, %228, %229 : vector<64x128xi1>, vector<64x128xf32>
    %c0_113 = arith.constant 0 : index
    %c256_114 = arith.constant 256 : index
    %c0_115 = arith.constant 0 : index
    %233 = vector.load %arg8[%c0_113, %c256_114, %c0_115] : memref<1x336x128xf32, #tpu.memory_space<vmem>>, vector<1x64x128xf32>
    %234 = vector.shape_cast %233 : vector<1x64x128xf32> to vector<64x128xf32>
    %235 = vector.shape_cast %232 : vector<64x128xf32> to vector<1x64x128xf32>
    tpu.vector_store %arg8[%c0_113, %c256_114, %c0_115], %235 {strides = array<i32>} : memref<1x336x128xf32, #tpu.memory_space<vmem>>, vector<1x64x128xf32>,
    %c0_116 = arith.constant 0 : index
    %c320 = arith.constant 320 : index
    %c0_117 = arith.constant 0 : index
    %236 = vector.load %arg1[%c0_116, %c320, %c0_117] : memref<1x336x32xf32, #tpu.memory_space<vmem>>, vector<1x16x32xf32>
    %237 = vector.shape_cast %236 : vector<1x16x32xf32> to vector<16x32xf32>
    %c2 = arith.constant 2 : index
    %c0_118 = arith.constant 0 : index
    %c0_119 = arith.constant 0 : index
    %238 = vector.load %arg2[%c2, %c0_118, %c0_119] : memref<3x32x32xf32, #tpu.memory_space<vmem>>, vector<1x32x32xf32>
    %239 = vector.shape_cast %238 : vector<1x32x32xf32> to vector<32x32xf32>
    %cst_120 = arith.constant dense<0.000000e+00> : vector<16x32xf32>
    %240 = tpu.matmul %237, %239, %cst_120 {dimension_numbers = #tpu.dot_dimension_numbers<[1], [0], [0], [1], [0, 0, 1, 1], [], []>} : vector<16x32xf32>, vector<32x32xf32>, vector<16x32xf32> -> vector<16x32xf32>
    %c2_121 = arith.constant 2 : index
    %c0_122 = arith.constant 0 : index
    %c0_123 = arith.constant 0 : index
    %241 = vector.load %arg3[%c2_121, %c0_122, %c0_123] : memref<3x1x32xf32, #tpu.memory_space<vmem>>, vector<1x1x32xf32>
    %242 = vector.shape_cast %241 : vector<1x1x32xf32> to vector<1x32xf32>
    %243 = vector.broadcast %242 : vector<1x32xf32> to vector<16x32xf32>
    %244 = arith.addf %240, %243 : vector<16x32xf32>
    %245 = arith.negf %244 : vector<16x32xf32>
    %246 = math.exp %245 : vector<16x32xf32>
    %cst_124 = arith.constant 1.000000e+00 : f32
    %247 = vector.broadcast %cst_124 : f32 to vector<16x32xf32>
    %248 = arith.addf %247, %246 : vector<16x32xf32>
    %249 = arith.divf %247, %248 : vector<16x32xf32>
    %250 = arith.mulf %244, %249 : vector<16x32xf32>
    %cst_125 = arith.constant 0.000000e+00 : f32
    %251 = vector.broadcast %cst_125 : f32 to vector<8x32xf32>
    %c0_126 = arith.constant 0 : index
    %c0_127 = arith.constant 0 : index
    %252 = vector.load %arg11[%c0_126, %c0_127] : memref<32x32xf32, #tpu.memory_space<vmem>>, vector<8x32xf32>
    tpu.vector_store %arg11[%c0_126, %c0_127], %251 {strides = array<i32>} : memref<32x32xf32, #tpu.memory_space<vmem>>, vector<8x32xf32>,
    %cst_128 = arith.constant 0.000000e+00 : f32
    %253 = vector.broadcast %cst_128 : f32 to vector<8x32xf32>
    %c24_129 = arith.constant 24 : index
    %c0_130 = arith.constant 0 : index
    %254 = vector.load %arg11[%c24_129, %c0_130] : memref<32x32xf32, #tpu.memory_space<vmem>>, vector<8x32xf32>
    tpu.vector_store %arg11[%c24_129, %c0_130], %253 {strides = array<i32>} : memref<32x32xf32, #tpu.memory_space<vmem>>, vector<8x32xf32>,
    %c8_131 = arith.constant 8 : index
    %c0_132 = arith.constant 0 : index
    %255 = vector.load %arg11[%c8_131, %c0_132] : memref<32x32xf32, #tpu.memory_space<vmem>>, vector<16x32xf32>
    tpu.vector_store %arg11[%c8_131, %c0_132], %250 {strides = array<i32>} : memref<32x32xf32, #tpu.memory_space<vmem>>, vector<16x32xf32>,
    %256 = tpu.iota {dimensions = array<i32: 0>} : vector<16x1xi32>
    %257 = arith.sitofp %256 : vector<16x1xi32> to vector<16x1xf32>
    %cst_133 = arith.constant 4.000000e+00 : f32
    %258 = vector.broadcast %cst_133 : f32 to vector<16x1xf32>
    %259 = arith.divf %257, %258 : vector<16x1xf32>
    %260 = math.floor %259 : vector<16x1xf32>
    %cst_134 = arith.constant 4.000000e+00 : f32
    %261 = vector.broadcast %cst_134 : f32 to vector<16x1xf32>
    %262 = arith.mulf %260, %261 : vector<16x1xf32>
    %263 = arith.subf %257, %262 : vector<16x1xf32>
    %cst_135 = arith.constant 0.000000e+00 : f32
    %264 = vector.broadcast %cst_135 : f32 to vector<16x1xf32>
    %265 = arith.cmpf one, %263, %264 : vector<16x1xf32>
    %266 = arith.extui %265 : vector<16x1xi1> to vector<16x1xi32>
    %267 = arith.sitofp %266 : vector<16x1xi32> to vector<16x1xf32>
    %cst_136 = arith.constant 3.000000e+00 : f32
    %268 = vector.broadcast %cst_136 : f32 to vector<16x1xf32>
    %269 = arith.cmpf one, %263, %268 : vector<16x1xf32>
    %270 = arith.extui %269 : vector<16x1xi1> to vector<16x1xi32>
    %271 = arith.sitofp %270 : vector<16x1xi32> to vector<16x1xf32>
    %c3 = arith.constant 3 : index
    %c0_137 = arith.constant 0 : index
    %272 = vector.load %arg11[%c3, %c0_137] : memref<32x32xf32, #tpu.memory_space<vmem>>, vector<16x32xf32>
    %273 = vector.broadcast %267 : vector<16x1xf32> to vector<16x32xf32>
    %274 = arith.mulf %272, %273 : vector<16x32xf32>
    %c4 = arith.constant 4 : index
    %c0_138 = arith.constant 0 : index
    %275 = vector.load %arg11[%c4, %c0_138] : memref<32x32xf32, #tpu.memory_space<vmem>>, vector<16x32xf32>
    %c5 = arith.constant 5 : index
    %c0_139 = arith.constant 0 : index
    %276 = vector.load %arg11[%c5, %c0_139] : memref<32x32xf32, #tpu.memory_space<vmem>>, vector<16x32xf32>
    %277 = vector.broadcast %271 : vector<16x1xf32> to vector<16x32xf32>
    %278 = arith.mulf %276, %277 : vector<16x32xf32>
    %c7_140 = arith.constant 7 : index
    %c0_141 = arith.constant 0 : index
    %279 = vector.load %arg11[%c7_140, %c0_141] : memref<32x32xf32, #tpu.memory_space<vmem>>, vector<16x32xf32>
    %280 = vector.broadcast %267 : vector<16x1xf32> to vector<16x32xf32>
    %281 = arith.mulf %279, %280 : vector<16x32xf32>
    %c8_142 = arith.constant 8 : index
    %c0_143 = arith.constant 0 : index
    %282 = vector.load %arg11[%c8_142, %c0_143] : memref<32x32xf32, #tpu.memory_space<vmem>>, vector<16x32xf32>
    %c9_144 = arith.constant 9 : index
    %c0_145 = arith.constant 0 : index
    %283 = vector.load %arg11[%c9_144, %c0_145] : memref<32x32xf32, #tpu.memory_space<vmem>>, vector<16x32xf32>
    %284 = vector.broadcast %271 : vector<16x1xf32> to vector<16x32xf32>
    %285 = arith.mulf %283, %284 : vector<16x32xf32>
    %c11 = arith.constant 11 : index
    %c0_146 = arith.constant 0 : index
    %286 = vector.load %arg11[%c11, %c0_146] : memref<32x32xf32, #tpu.memory_space<vmem>>, vector<16x32xf32>
    %287 = vector.broadcast %267 : vector<16x1xf32> to vector<16x32xf32>
    %288 = arith.mulf %286, %287 : vector<16x32xf32>
    %c12 = arith.constant 12 : index
    %c0_147 = arith.constant 0 : index
    %289 = vector.load %arg11[%c12, %c0_147] : memref<32x32xf32, #tpu.memory_space<vmem>>, vector<16x32xf32>
    %c13 = arith.constant 13 : index
    %c0_148 = arith.constant 0 : index
    %290 = vector.load %arg11[%c13, %c0_148] : memref<32x32xf32, #tpu.memory_space<vmem>>, vector<16x32xf32>
    %291 = vector.broadcast %271 : vector<16x1xf32> to vector<16x32xf32>
    %292 = arith.mulf %290, %291 : vector<16x32xf32>
    %293 = tpu.concatenate %274, %275, %278, %281, %282, %285, %288, %289, %292 in 1 : vector<16x32xf32>, vector<16x32xf32>, vector<16x32xf32>, vector<16x32xf32>, vector<16x32xf32>, vector<16x32xf32>, vector<16x32xf32>, vector<16x32xf32>, vector<16x32xf32> -> vector<16x288xf32>
    %c2_149 = arith.constant 2 : index
    %c0_150 = arith.constant 0 : index
    %c0_151 = arith.constant 0 : index
    %294 = vector.load %arg4[%c2_149, %c0_150, %c0_151] : memref<3x288x64xf32, #tpu.memory_space<vmem>>, vector<1x288x64xf32>
    %295 = vector.shape_cast %294 : vector<1x288x64xf32> to vector<288x64xf32>
    %cst_152 = arith.constant dense<0.000000e+00> : vector<16x64xf32>
    %296 = tpu.matmul %293, %295, %cst_152 {dimension_numbers = #tpu.dot_dimension_numbers<[1], [0], [0], [1], [0, 0, 1, 1], [], []>} : vector<16x288xf32>, vector<288x64xf32>, vector<16x64xf32> -> vector<16x64xf32>
    %c2_153 = arith.constant 2 : index
    %c0_154 = arith.constant 0 : index
    %c0_155 = arith.constant 0 : index
    %297 = vector.load %arg5[%c2_153, %c0_154, %c0_155] : memref<3x1x64xf32, #tpu.memory_space<vmem>>, vector<1x1x64xf32>
    %298 = vector.shape_cast %297 : vector<1x1x64xf32> to vector<1x64xf32>
    %299 = vector.broadcast %298 : vector<1x64xf32> to vector<16x64xf32>
    %300 = arith.addf %296, %299 : vector<16x64xf32>
    %301 = arith.negf %300 : vector<16x64xf32>
    %302 = math.exp %301 : vector<16x64xf32>
    %cst_156 = arith.constant 1.000000e+00 : f32
    %303 = vector.broadcast %cst_156 : f32 to vector<16x64xf32>
    %304 = arith.addf %303, %302 : vector<16x64xf32>
    %305 = arith.divf %303, %304 : vector<16x64xf32>
    %306 = arith.mulf %300, %305 : vector<16x64xf32>
    %c2_157 = arith.constant 2 : index
    %c0_158 = arith.constant 0 : index
    %c0_159 = arith.constant 0 : index
    %307 = vector.load %arg6[%c2_157, %c0_158, %c0_159] : memref<3x64x128xf32, #tpu.memory_space<vmem>>, vector<1x64x128xf32>
    %308 = vector.shape_cast %307 : vector<1x64x128xf32> to vector<64x128xf32>
    %cst_160 = arith.constant dense<0.000000e+00> : vector<16x128xf32>
    %309 = tpu.matmul %306, %308, %cst_160 {dimension_numbers = #tpu.dot_dimension_numbers<[1], [0], [0], [1], [0, 0, 1, 1], [], []>} : vector<16x64xf32>, vector<64x128xf32>, vector<16x128xf32> -> vector<16x128xf32>
    %c2_161 = arith.constant 2 : index
    %c0_162 = arith.constant 0 : index
    %c0_163 = arith.constant 0 : index
    %310 = vector.load %arg7[%c2_161, %c0_162, %c0_163] : memref<3x1x128xf32, #tpu.memory_space<vmem>>, vector<1x1x128xf32>
    %311 = vector.shape_cast %310 : vector<1x1x128xf32> to vector<1x128xf32>
    %312 = vector.broadcast %311 : vector<1x128xf32> to vector<16x128xf32>
    %313 = arith.addf %309, %312 : vector<16x128xf32>
    %cst_164 = arith.constant 5.000000e-01 : f32
    %314 = vector.broadcast %cst_164 : f32 to vector<16x1xf32>
    %315 = arith.addf %263, %314 : vector<16x1xf32>
    %cst_165 = arith.constant 3.200000e+01 : f32
    %316 = vector.broadcast %cst_165 : f32 to vector<16x1xf32>
    %317 = arith.mulf %315, %316 : vector<16x1xf32>
    %cst_166 = arith.constant 5.000000e-01 : f32
    %318 = vector.broadcast %cst_166 : f32 to vector<16x1xf32>
    %319 = arith.addf %260, %318 : vector<16x1xf32>
    %cst_167 = arith.constant 3.200000e+01 : f32
    %320 = vector.broadcast %cst_167 : f32 to vector<16x1xf32>
    %321 = arith.mulf %319, %320 : vector<16x1xf32>
    %c0_i32_168 = arith.constant 0 : i32
    %322 = vector.broadcast %c0_i32_168 : i32 to vector<1x128xi32>
    %323 = arith.cmpi eq, %0, %322 : vector<1x128xi32>
    %cst_169 = arith.constant 0.000000e+00 : f32
    %324 = vector.shape_cast %323 : vector<1x128xi1> to vector<1x128xi1>
    %325 = vector.broadcast %324 : vector<1x128xi1> to vector<16x128xi1>
    %326 = vector.shape_cast %317 : vector<16x1xf32> to vector<16x1xf32>
    %327 = vector.broadcast %326 : vector<16x1xf32> to vector<16x128xf32>
    %328 = vector.broadcast %cst_169 : f32 to vector<16x128xf32>
    %329 = arith.select %325, %327, %328 : vector<16x128xi1>, vector<16x128xf32>
    %c1_i32_170 = arith.constant 1 : i32
    %330 = vector.broadcast %c1_i32_170 : i32 to vector<1x128xi32>
    %331 = arith.cmpi eq, %0, %330 : vector<1x128xi32>
    %cst_171 = arith.constant 0.000000e+00 : f32
    %332 = vector.shape_cast %331 : vector<1x128xi1> to vector<1x128xi1>
    %333 = vector.broadcast %332 : vector<1x128xi1> to vector<16x128xi1>
    %334 = vector.shape_cast %321 : vector<16x1xf32> to vector<16x1xf32>
    %335 = vector.broadcast %334 : vector<16x1xf32> to vector<16x128xf32>
    %336 = vector.broadcast %cst_171 : f32 to vector<16x128xf32>
    %337 = arith.select %333, %335, %336 : vector<16x128xi1>, vector<16x128xf32>
    %338 = arith.addf %329, %337 : vector<16x128xf32>
    %339 = arith.negf %313 : vector<16x128xf32>
    %340 = math.exp %339 : vector<16x128xf32>
    %cst_172 = arith.constant 1.000000e+00 : f32
    %341 = vector.broadcast %cst_172 : f32 to vector<16x128xf32>
    %342 = arith.addf %341, %340 : vector<16x128xf32>
    %343 = arith.divf %341, %342 : vector<16x128xf32>
    %344 = arith.addf %313, %338 : vector<16x128xf32>
    %345 = vector.shape_cast %5 : vector<1x128xi1> to vector<1x128xi1>
    %346 = vector.broadcast %345 : vector<1x128xi1> to vector<16x128xi1>
    %347 = arith.select %346, %343, %344 : vector<16x128xi1>, vector<16x128xf32>
    %c0_173 = arith.constant 0 : index
    %c320_174 = arith.constant 320 : index
    %c0_175 = arith.constant 0 : index
    %348 = vector.load %arg8[%c0_173, %c320_174, %c0_175] : memref<1x336x128xf32, #tpu.memory_space<vmem>>, vector<1x16x128xf32>
    %349 = vector.shape_cast %348 : vector<1x16x128xf32> to vector<16x128xf32>
    %350 = vector.shape_cast %347 : vector<16x128xf32> to vector<1x16x128xf32>
    tpu.vector_store %arg8[%c0_173, %c320_174, %c0_175], %350 {strides = array<i32>} : memref<1x336x128xf32, #tpu.memory_space<vmem>>, vector<1x16x128xf32>,
    return
  }
  func.func @transform_0(%arg0: i32) -> (i32, i32, i32) {
    %c0_i32 = arith.constant 0 : i32
    %c0_i32_0 = arith.constant 0 : i32
    %c0_i32_1 = arith.constant 0 : i32
    return %arg0, %c0_i32, %c0_i32_0 : i32, i32, i32
  }
  func.func @transform_1(%arg0: i32) -> (i32, i32, i32) {
    %c0_i32 = arith.constant 0 : i32
    %c0_i32_0 = arith.constant 0 : i32
    %c0_i32_1 = arith.constant 0 : i32
    %c0_i32_2 = arith.constant 0 : i32
    return %c0_i32, %c0_i32_0, %c0_i32_1 : i32, i32, i32
  }
  func.func @transform_2(%arg0: i32) -> (i32, i32, i32) {
    %c0_i32 = arith.constant 0 : i32
    %c0_i32_0 = arith.constant 0 : i32
    %c0_i32_1 = arith.constant 0 : i32
    %c0_i32_2 = arith.constant 0 : i32
    return %c0_i32, %c0_i32_0, %c0_i32_1 : i32, i32, i32
  }
  func.func @transform_3(%arg0: i32) -> (i32, i32, i32) {
    %c0_i32 = arith.constant 0 : i32
    %c0_i32_0 = arith.constant 0 : i32
    %c0_i32_1 = arith.constant 0 : i32
    %c0_i32_2 = arith.constant 0 : i32
    return %c0_i32, %c0_i32_0, %c0_i32_1 : i32, i32, i32
  }
  func.func @transform_4(%arg0: i32) -> (i32, i32, i32) {
    %c0_i32 = arith.constant 0 : i32
    %c0_i32_0 = arith.constant 0 : i32
    %c0_i32_1 = arith.constant 0 : i32
    %c0_i32_2 = arith.constant 0 : i32
    return %c0_i32, %c0_i32_0, %c0_i32_1 : i32, i32, i32
  }
  func.func @transform_5(%arg0: i32) -> (i32, i32, i32) {
    %c0_i32 = arith.constant 0 : i32
    %c0_i32_0 = arith.constant 0 : i32
    %c0_i32_1 = arith.constant 0 : i32
    %c0_i32_2 = arith.constant 0 : i32
    return %c0_i32, %c0_i32_0, %c0_i32_1 : i32, i32, i32
  }
  func.func @transform_6(%arg0: i32) -> (i32, i32, i32) {
    %c0_i32 = arith.constant 0 : i32
    %c0_i32_0 = arith.constant 0 : i32
    %c0_i32_1 = arith.constant 0 : i32
    %c0_i32_2 = arith.constant 0 : i32
    return %c0_i32, %c0_i32_0, %c0_i32_1 : i32, i32, i32
  }
  func.func @transform_7(%arg0: i32) -> (i32, i32, i32) {
    %c0_i32 = arith.constant 0 : i32
    %c0_i32_0 = arith.constant 0 : i32
    %c0_i32_1 = arith.constant 0 : i32
    return %arg0, %c0_i32, %c0_i32_0 : i32, i32, i32
  }
}

</mosaic_0001>

<llo_original>
// kernel: tpu_custom_call.1
$region0: #{tpu_custom_call.1}
  #allocation0 [shape = 'u32[]', space=smem, size = 0x4, offset = 0x4, fixed_abs, tag = 'smem constant byte address 0x4 - core index']
  #allocation1 [shape = 'u32[144,128]{1,0:T(1,128)}', space=vmem, size = 0x12000, scoped, tag = 'internal scratch']
  #allocation2 [shape = 'f32[304,32]{1,0:T(8,128)}', space=vmem, size = 0x26000, scoped, tag = 'scratch operand']
  #allocation3 [shape = 'f32[96,32]{1,0:T(8,128)}', space=vmem, size = 0xc000, scoped, tag = 'scratch operand']
  #allocation4 [shape = 'f32[32,32]{1,0:T(8,128)}', space=vmem, size = 0x4000, scoped, tag = 'scratch operand']
  %s0 = inlined_call_operand.vmem [shape: f32[2,336,32], index: 0, kind: input, shape index: {}]
  %s1 = inlined_call_operand.vmem [shape: f32[3,32,32], index: 1, kind: input, shape index: {}]
  %s2 = inlined_call_operand.vmem [shape: f32[3,1,32], index: 2, kind: input, shape index: {}]
  %s3 = inlined_call_operand.vmem [shape: f32[3,288,64], index: 3, kind: input, shape index: {}]
  %s4 = inlined_call_operand.vmem [shape: f32[3,1,64], index: 4, kind: input, shape index: {}]
  %s5 = inlined_call_operand.vmem [shape: f32[3,64,128], index: 5, kind: input, shape index: {}]
  %s6 = inlined_call_operand.vmem [shape: f32[3,1,128], index: 6, kind: input, shape index: {}]
  %s7 = inlined_call_operand.hbm [shape: f32[2,336,128], index: 7, kind: output, shape index: {}]
  %s8 = sld [smem:[#allocation0]]
  $region61: #{tpu_custom_call.1} parent=0
    _
  %s10 = ssub.s32 1, %s8
  %s11 = scalar_select 0, %s10, %s8
  $region1: #{tpu_custom_call.1} parent=0
    #allocation5 [shape = 'u8[344064]{0}', space=vmem, size = 0x54000, scoped, tag = 'output window, operand 0']
    #allocation6 [shape = 's32[2]{0}', space=sflag, size = 0x8, scoped, tag = 'scoped memory for tpu_custom_call.1']
    %12 = vsyncpa [#allocation6], 0
    %s13 = scalar_lea.sflag [#allocation6], 1
    %14 = vsyncpa %s13, 0
    loop: start=0, step=1, limit=4
    $region2: #{tpu_custom_call.1} parent=1 // loop_pre_header
      _
    $region3: #{tpu_custom_call.1} parent=1 // loop_header
      %s16 = sphi 0, %s20
      %p17 = scmp.ge.s32.totalorder %s16, 4
      %s26 = sphi 0, %s28
      %s29 = sphi 0, %s26
      %s30 = sphi 0, %s29
      %s46 = sphi 0, %s30
      %s50 = sphi 0, %s50
      %s52 = sphi 0, %s50
      %s53 = sphi 0, %s52
      %s67 = sphi 0, %s53
      %s71 = sphi 0, %s71
      %s73 = sphi 0, %s71
      %s74 = sphi 0, %s73
      %s88 = sphi 0, %s74
      %s92 = sphi 0, %s92
      %s94 = sphi 0, %s92
      %s95 = sphi 0, %s94
      %s109 = sphi 0, %s95
      %s113 = sphi 0, %s113
      %s115 = sphi 0, %s113
      %s116 = sphi 0, %s115
      %s130 = sphi 0, %s116
      %s134 = sphi 0, %s134
      %s136 = sphi 0, %s134
      %s137 = sphi 0, %s136
      %s151 = sphi 0, %s137
      %s155 = sphi 0, %s155
      %s157 = sphi 0, %s155
      %s158 = sphi 0, %s157
      %s172 = sphi 0, %s158
      %s178 = sphi 0, %s180
      %s181 = sphi 0, %s178
      %s182 = sphi 0, %s181
      %s198 = sphi 0, %s182
    $region4: #{tpu_custom_call.1} parent=1 // loop_header_branch
      %19 = sbr.rel (%p17) target = $region8
    $region5: #{tpu_custom_call.1} parent=1 // loop_body
      %s21 = ssub.s32 %s16, 1
      %s22 = ssub.s32 %s16, 2
      %s23 = sadd.s32 %s16, 1
      %s24 = ssub.s32 %s16, %s23
      %p25 = scmp.eq.s32.totalorder %s24, 0
      %s27 = sadd.s32 %s26, 1
      %s28 = scalar_select %p25, %s26, %s27
      %p31 = pneg %p25
      %p32 = scmp.eq.s32.totalorder %s16, 1
      %p33 = por %p31, %p32
      %p34 = scmp.ne.s32.totalorder %s26, %s29
      %p35 = scmp.eq.s32.totalorder %s16, 0
      %p36 = por %p34, %p35
      %p37 = scmp.ne.s32.totalorder %s26, %s29
      %p38 = scmp.eq.s32.totalorder %s21, 1
      %p39 = por %p37, %p38
      %p40 = scmp.ne.s32.totalorder %s29, %s30
      %p41 = scmp.eq.s32.totalorder %s21, 0
      %p42 = por %p40, %p41
      %p43 = scmp.ne.s32.totalorder %s29, %s30
      %p44 = scmp.eq.s32.totalorder %s22, 1
      %p45 = por %p43, %p44
      %p47 = scmp.ne.s32.totalorder %s30, %s46
      %p48 = scmp.eq.s32.totalorder %s22, 0
      %p49 = por %p47, %p48
      %s51 = sadd.s32 %s50, 1
      %p54 = scmp.eq.s32.totalorder %s16, 1
      %p55 = scmp.ne.s32.totalorder %s50, %s52
      %p56 = scmp.eq.s32.totalorder %s16, 0
      %p57 = por %p55, %p56
      %p58 = scmp.ne.s32.totalorder %s50, %s52
      %p59 = scmp.eq.s32.totalorder %s21, 1
      %p60 = por %p58, %p59
      %p61 = scmp.ne.s32.totalorder %s52, %s53
      %p62 = scmp.eq.s32.totalorder %s21, 0
      %p63 = por %p61, %p62
      %p64 = scmp.ne.s32.totalorder %s52, %s53
      %p65 = scmp.eq.s32.totalorder %s22, 1
      %p66 = por %p64, %p65
      %p68 = scmp.ne.s32.totalorder %s53, %s67
      %p69 = scmp.eq.s32.totalorder %s22, 0
      %p70 = por %p68, %p69
      %s72 = sadd.s32 %s71, 1
      %p75 = scmp.eq.s32.totalorder %s16, 1
      %p76 = scmp.ne.s32.totalorder %s71, %s73
      %p77 = scmp.eq.s32.totalorder %s16, 0
      %p78 = por %p76, %p77
      %p79 = scmp.ne.s32.totalorder %s71, %s73
      %p80 = scmp.eq.s32.totalorder %s21, 1
      %p81 = por %p79, %p80
      %p82 = scmp.ne.s32.totalorder %s73, %s74
      %p83 = scmp.eq.s32.totalorder %s21, 0
      %p84 = por %p82, %p83
      %p85 = scmp.ne.s32.totalorder %s73, %s74
      %p86 = scmp.eq.s32.totalorder %s22, 1
      %p87 = por %p85, %p86
      %p89 = scmp.ne.s32.totalorder %s74, %s88
      %p90 = scmp.eq.s32.totalorder %s22, 0
      %p91 = por %p89, %p90
      %s93 = sadd.s32 %s92, 1
      %p96 = scmp.eq.s32.totalorder %s16, 1
      %p97 = scmp.ne.s32.totalorder %s92, %s94
      %p98 = scmp.eq.s32.totalorder %s16, 0
      %p99 = por %p97, %p98
      %p100 = scmp.ne.s32.totalorder %s92, %s94
      %p101 = scmp.eq.s32.totalorder %s21, 1
      %p102 = por %p100, %p101
      %p103 = scmp.ne.s32.totalorder %s94, %s95
      %p104 = scmp.eq.s32.totalorder %s21, 0
      %p105 = por %p103, %p104
      %p106 = scmp.ne.s32.totalorder %s94, %s95
      %p107 = scmp.eq.s32.totalorder %s22, 1
      %p108 = por %p106, %p107
      %p110 = scmp.ne.s32.totalorder %s95, %s109
      %p111 = scmp.eq.s32.totalorder %s22, 0
      %p112 = por %p110, %p111
      %s114 = sadd.s32 %s113, 1
      %p117 = scmp.eq.s32.totalorder %s16, 1
      %p118 = scmp.ne.s32.totalorder %s113, %s115
      %p119 = scmp.eq.s32.totalorder %s16, 0
      %p120 = por %p118, %p119
      %p121 = scmp.ne.s32.totalorder %s113, %s115
      %p122 = scmp.eq.s32.totalorder %s21, 1
      %p123 = por %p121, %p122
      %p124 = scmp.ne.s32.totalorder %s115, %s116
      %p125 = scmp.eq.s32.totalorder %s21, 0
      %p126 = por %p124, %p125
      %p127 = scmp.ne.s32.totalorder %s115, %s116
      %p128 = scmp.eq.s32.totalorder %s22, 1
      %p129 = por %p127, %p128
      %p131 = scmp.ne.s32.totalorder %s116, %s130
      %p132 = scmp.eq.s32.totalorder %s22, 0
      %p133 = por %p131, %p132
      %s135 = sadd.s32 %s134, 1
      %p138 = scmp.eq.s32.totalorder %s16, 1
      %p139 = scmp.ne.s32.totalorder %s134, %s136
      %p140 = scmp.eq.s32.totalorder %s16, 0
      %p141 = por %p139, %p140
      %p142 = scmp.ne.s32.totalorder %s134, %s136
      %p143 = scmp.eq.s32.totalorder %s21, 1
      %p144 = por %p142, %p143
      %p145 = scmp.ne.s32.totalorder %s136, %s137
      %p146 = scmp.eq.s32.totalorder %s21, 0
      %p147 = por %p145, %p146
      %p148 = scmp.ne.s32.totalorder %s136, %s137
      %p149 = scmp.eq.s32.totalorder %s22, 1
      %p150 = por %p148, %p149
      %p152 = scmp.ne.s32.totalorder %s137, %s151
      %p153 = scmp.eq.s32.totalorder %s22, 0
      %p154 = por %p152, %p153
      %s156 = sadd.s32 %s155, 1
      %p159 = scmp.eq.s32.totalorder %s16, 1
      %p160 = scmp.ne.s32.totalorder %s155, %s157
      %p161 = scmp.eq.s32.totalorder %s16, 0
      %p162 = por %p160, %p161
      %p163 = scmp.ne.s32.totalorder %s155, %s157
      %p164 = scmp.eq.s32.totalorder %s21, 1
      %p165 = por %p163, %p164
      %p166 = scmp.ne.s32.totalorder %s157, %s158
      %p167 = scmp.eq.s32.totalorder %s21, 0
      %p168 = por %p166, %p167
      %p169 = scmp.ne.s32.totalorder %s157, %s158
      %p170 = scmp.eq.s32.totalorder %s22, 1
      %p171 = por %p169, %p170
      %p173 = scmp.ne.s32.totalorder %s158, %s172
      %p174 = scmp.eq.s32.totalorder %s22, 0
      %p175 = por %p173, %p174
      %s176 = ssub.s32 %s16, %s23
      %p177 = scmp.eq.s32.totalorder %s176, 0
      %s179 = sadd.s32 %s178, 1
      %s180 = scalar_select %p177, %s178, %s179
      %p183 = pneg %p177
      %p184 = scmp.eq.s32.totalorder %s16, 1
      %p185 = por %p183, %p184
      %p186 = scmp.ne.s32.totalorder %s178, %s181
      %p187 = scmp.eq.s32.totalorder %s16, 0
      %p188 = por %p186, %p187
      %p189 = scmp.ne.s32.totalorder %s178, %s181
      %p190 = scmp.eq.s32.totalorder %s21, 1
      %p191 = por %p189, %p190
      %p192 = scmp.ne.s32.totalorder %s181, %s182
      %p193 = scmp.eq.s32.totalorder %s21, 0
      %p194 = por %p192, %p193
      %p195 = scmp.ne.s32.totalorder %s181, %s182
      %p196 = scmp.eq.s32.totalorder %s22, 1
      %p197 = por %p195, %p196
      %p199 = scmp.ne.s32.totalorder %s182, %s198
      %p200 = scmp.eq.s32.totalorder %s22, 0
      %p201 = por %p199, %p200
      %p202 = scmp.le.s32.totalorder 1, %s16
      %p203 = scmp.lt.s32.totalorder %s16, 3
      %p204 = pnand %p202, %p203
      %p205 = pneg %p204
      // Predicated region
      $region9: #{tpu_custom_call.1} parent=5 // pred_check
        _
      $region10: #{tpu_custom_call.1} parent=5 // pred_check_branch
        %207 = sbr.rel (%p204) target = $region12
      $region11: #{tpu_custom_call.1} parent=5 // pred_region
        %s208 = ssub.s32 %s16, 1
        // Predicated region
        $region13: #{tpu_custom_call.1} parent=11 // pred_check
          %p209 = pneg %p63
        $region14: #{tpu_custom_call.1} parent=11 // pred_check_branch
          %211 = sbr.rel (%p209) target = $region16
        $region15: #{tpu_custom_call.1} parent=11 // pred_region
          _
        $region16: #{tpu_custom_call.1} parent=11 // pred_fallthru
          _
        // Predicated region
        $region17: #{tpu_custom_call.1} parent=11 // pred_check
          %p212 = pneg %p84
        $region18: #{tpu_custom_call.1} parent=11 // pred_check_branch
          %214 = sbr.rel (%p212) target = $region20
        $region19: #{tpu_custom_call.1} parent=11 // pred_region
          _
        $region20: #{tpu_custom_call.1} parent=11 // pred_fallthru
          _
        // Predicated region
        $region21: #{tpu_custom_call.1} parent=11 // pred_check
          %p215 = pneg %p105
        $region22: #{tpu_custom_call.1} parent=11 // pred_check_branch
          %217 = sbr.rel (%p215) target = $region24
        $region23: #{tpu_custom_call.1} parent=11 // pred_region
          _
        $region24: #{tpu_custom_call.1} parent=11 // pred_fallthru
          _
        // Predicated region
        $region25: #{tpu_custom_call.1} parent=11 // pred_check
          %p218 = pneg %p126
        $region26: #{tpu_custom_call.1} parent=11 // pred_check_branch
          %220 = sbr.rel (%p218) target = $region28
        $region27: #{tpu_custom_call.1} parent=11 // pred_region
          _
        $region28: #{tpu_custom_call.1} parent=11 // pred_fallthru
          _
        // Predicated region
        $region29: #{tpu_custom_call.1} parent=11 // pred_check
          %p221 = pneg %p147
        $region30: #{tpu_custom_call.1} parent=11 // pred_check_branch
          %223 = sbr.rel (%p221) target = $region32
        $region31: #{tpu_custom_call.1} parent=11 // pred_region
          _
        $region32: #{tpu_custom_call.1} parent=11 // pred_fallthru
          _
        // Predicated region
        $region33: #{tpu_custom_call.1} parent=11 // pred_check
          %p224 = pneg %p168
        $region34: #{tpu_custom_call.1} parent=11 // pred_check_branch
          %226 = sbr.rel (%p224) target = $region36
        $region35: #{tpu_custom_call.1} parent=11 // pred_region
          _
        $region36: #{tpu_custom_call.1} parent=11 // pred_fallthru
          _
      $region12: #{tpu_custom_call.1} parent=5 // pred_fallthru
        _
      %p227 = scmp.lt.s32.totalorder %s16, 2
      // Predicated region
      $region37: #{tpu_custom_call.1} parent=5 // pred_check
        %p228 = pneg %p227
      $region38: #{tpu_custom_call.1} parent=5 // pred_check_branch
        %230 = sbr.rel (%p228) target = $region40
      $region39: #{tpu_custom_call.1} parent=5 // pred_region
        // Predicated region
        $region41: #{tpu_custom_call.1} parent=39 // pred_check
          %p231 = pneg %p36
        $region42: #{tpu_custom_call.1} parent=39 // pred_check_branch
          %233 = sbr.rel (%p231) target = $region44
        $region43: #{tpu_custom_call.1} parent=39 // pred_region
          %p234 = scmp.lt.s32.totalorder %s16, 1
          %s235 = scalar_select %p234, %s16, 1
          %s236 = smul.addr %s235, 42
          %s237 = smul.addr %s236, 8
          %s238 = scalar_lea.vmem %s0, %s237
        $region44: #{tpu_custom_call.1} parent=39 // pred_fallthru
          _
      $region40: #{tpu_custom_call.1} parent=5 // pred_fallthru
        _
      %p239 = scmp.le.s32.totalorder 1, %s16
      %p240 = scmp.lt.s32.totalorder %s16, 3
      %p241 = pnand %p239, %p240
      %p242 = pneg %p241
      // Predicated region
      $region45: #{tpu_custom_call.1} parent=5 // pred_check
        _
      $region46: #{tpu_custom_call.1} parent=5 // pred_check_branch
        %244 = sbr.rel (%p241) target = $region48
      $region47: #{tpu_custom_call.1} parent=5 // pred_region
        %s245 = ssub.s32 %s16, 1
        %p246 = scmp.lt.s32.totalorder %s21, 1
        %s247 = scalar_select %p246, %s21, 1
        %s248 = smul.addr %s247, 42
        %s249 = smul.addr %s248, 8
        %s250 = scalar_lea.vmem %s0, %s249
        %p251 = pneg %p42
        %p252 = pneg %p39
        %p253 = pneg %p63
        %p254 = pneg %p60
        %p255 = pneg %p84
        %p256 = pneg %p81
        %p257 = pneg %p105
        %p258 = pneg %p102
        %p259 = pneg %p126
        %p260 = pneg %p123
        %p261 = pneg %p147
        %p262 = pneg %p144
        %p263 = pneg %p168
        %p264 = pneg %p165
        %p265 = pneg %p194
        %p266 = pneg %p191
        %s267 = sand.u32 %s181, 1
        %s268 = scalar_lea.sflag [#allocation6], %s267
        %s269 = sand.u32 %s181, 1
        %s270 = smul.addr %s269, 336
        %s271 = scalar_lea.vmem [#allocation5], %s270
        %p272 = scmp.lt.s32.totalorder %s21, 1
        %s273 = scalar_select %p272, %s21, 1
        %s274 = smul.addr %s273, 42
        %s275 = smul.addr %s274, 8
        %s276 = scalar_lea.vmem %s0, %s275
        %v277 = vlaneseq
        %v278 = vand.u32 %v277, 127
        %vm279 = vcmp.ge.s32.totalorder %v278, 5
        %vm280 = vcmp.lt.s32.totalorder %v278, 21
        %vm281 = vmand %vm279, %vm280
        %v282 = vld [vmem:[%s276] sm:$0xff]
        %v283 = vld [vmem:[%s276 + $0x8] sm:$0xff]
        %v284 = vld [vmem:[%s276 + $0x10] sm:$0xff]
        %v285 = vld [vmem:[%s276 + $0x18] sm:$0xff]
        %v286 = vld [vmem:[%s276 + $0x20] sm:$0xff]
        %v287 = vld [vmem:[%s276 + $0x28] sm:$0xff]
        %v288 = vld [vmem:[%s276 + $0x30] sm:$0xff]
        %v289 = vld [vmem:[%s276 + $0x38] sm:$0xff]
        %v290 = vld [vmem:[%s276 + $0x40] sm:$0xff]
        %v291 = vld [vmem:[%s276 + $0x48] sm:$0xff]
        %v292 = vld [vmem:[%s276 + $0x50] sm:$0xff]
        %v293 = vld [vmem:[%s276 + $0x58] sm:$0xff]
        %v294 = vld [vmem:[%s276 + $0x60] sm:$0xff]
        %v295 = vld [vmem:[%s276 + $0x68] sm:$0xff]
        %v296 = vld [vmem:[%s276 + $0x70] sm:$0xff]
        %v297 = vld [vmem:[%s276 + $0x78] sm:$0xff]
        %v298 = vld [vmem:[%s276 + $0x80] sm:$0xff]
        %v299 = vld [vmem:[%s276 + $0x88] sm:$0xff]
        %v300 = vld [vmem:[%s276 + $0x90] sm:$0xff]
        %v301 = vld [vmem:[%s276 + $0x98] sm:$0xff]
        %v302 = vld [vmem:[%s276 + $0xa0] sm:$0xff]
        %v303 = vld [vmem:[%s276 + $0xa8] sm:$0xff]
        %v304 = vld [vmem:[%s276 + $0xb0] sm:$0xff]
        %v305 = vld [vmem:[%s276 + $0xb8] sm:$0xff]
        %v306 = vld [vmem:[%s276 + $0xc0] sm:$0xff]
        %v307 = vld [vmem:[%s276 + $0xc8] sm:$0xff]
        %v308 = vld [vmem:[%s276 + $0xd0] sm:$0xff]
        %v309 = vld [vmem:[%s276 + $0xd8] sm:$0xff]
        %v310 = vld [vmem:[%s276 + $0xe0] sm:$0xff]
        %v311 = vld [vmem:[%s276 + $0xe8] sm:$0xff]
        %v312 = vld [vmem:[%s276 + $0xf0] sm:$0xff]
        %v313 = vld [vmem:[%s276 + $0xf8] sm:$0xff]
        %v314 = vld [vmem:[%s1] sm:$0xff]
        %v315 = vld [vmem:[%s1 + $0x8] sm:$0xff]
        %v316 = vld [vmem:[%s1 + $0x10] sm:$0xff]
        %v317 = vld [vmem:[%s1 + $0x18] sm:$0xff]
        %v318 = vld [vmem:[%s2] sm:$0x1]
        %v320 = vlaneseq
        %v321 = vshrl.u32 %v320, 7
        %v322 = vsub.s32 0, %v321
        %v323 = vrot.slane %v318, %v322
        %vm325 = vcmask 261120
        %v327 = vsel %vm325, %v282, 0
        %v330 = vsel %vm325, %v283, 0
        %v333 = vsel %vm325, %v284, 0
        %v336 = vsel %vm325, %v285, 0
        %v339 = vsel %vm325, %v286, 0
        %v342 = vsel %vm325, %v287, 0
        %v345 = vsel %vm325, %v288, 0
        %v348 = vsel %vm325, %v289, 0
        %v351 = vsel %vm325, %v290, 0
        %v354 = vsel %vm325, %v291, 0
        %v357 = vsel %vm325, %v292, 0
        %v360 = vsel %vm325, %v293, 0
        %v363 = vsel %vm325, %v294, 0
        %v366 = vsel %vm325, %v295, 0
        %v369 = vsel %vm325, %v296, 0
        %v372 = vsel %vm325, %v297, 0
        %v375 = vsel %vm325, %v298, 0
        %v378 = vsel %vm325, %v299, 0
        %v381 = vsel %vm325, %v300, 0
        %v384 = vsel %vm325, %v301, 0
        %v387 = vsel %vm325, %v302, 0
        %v390 = vsel %vm325, %v303, 0
        %v393 = vsel %vm325, %v304, 0
        %v396 = vsel %vm325, %v305, 0
        %v399 = vsel %vm325, %v306, 0
        %v402 = vsel %vm325, %v307, 0
        %v405 = vsel %vm325, %v308, 0
        %v408 = vsel %vm325, %v309, 0
        %v411 = vsel %vm325, %v310, 0
        %v414 = vsel %vm325, %v311, 0
        %v417 = vsel %vm325, %v312, 0
        %v420 = vsel %vm325, %v313, 0
        %422 = vmatprep.subr.mxu0 0.0
        %423 = vmatpush1.msra.mxu0 0.0
        %424 = vmatprep.subr.mxu0 0.0
        %425 = vmatpush1.msra.mxu0 0.0
        %426 = vmatprep.subr.mxu0 0.0
        %427 = vmatpush1.msra.mxu0 0.0
        %428 = vmatprep.subr.mxu0 0.0
        %429 = vmatpush1.msra.mxu0 0.0
        %430 = vmatprep.subr.mxu0 0.0
        %431 = vmatpush1.msra.mxu0 0.0
        %432 = vmatprep.subr.mxu0 0.0
        %433 = vmatpush1.msra.mxu0 0.0
        %434 = vmatprep.subr.mxu0 0.0
        %435 = vmatpush1.msra.mxu0 0.0
        %436 = vmatprep.subr.mxu0 0.0
        %437 = vmatpush1.msra.mxu0 0.0
        %438 = vmatprep.subr.mxu0 0.0
        %439 = vmatpush1.msra.mxu0 0.0
        %440 = vmatprep.subr.mxu0 0.0
        %441 = vmatpush1.msra.mxu0 0.0
        %442 = vmatprep.subr.mxu0 0.0
        %443 = vmatpush1.msra.mxu0 0.0
        %444 = vmatprep.subr.mxu0 0.0
        %445 = vmatpush1.msra.mxu0 0.0
        %446 = vmatprep.subr.mxu0 0.0
        %447 = vmatpush1.msra.mxu0 %v317
        %448 = vmatprep.subr.mxu0 0.0
        %449 = vmatpush1.msra.mxu0 %v316
        %450 = vmatprep.subr.mxu0 0.0
        %451 = vmatpush1.msra.mxu0 %v315
        %452 = vmatprep.subr.mxu0 0.0
        %453 = vmatpush1.msra.mxu0 %v314
        %454 = vmatprep.subr.mxu0 0.0
        %455 = vmatpush2.msra.mxu0 0.0
        %456 = vmatprep.subr.mxu0 0.0
        %457 = vmatpush2.msra.mxu0 0.0
        %458 = vmatprep.subr.mxu0 0.0
        %459 = vmatpush2.msra.mxu0 0.0
        %460 = vmatprep.subr.mxu0 0.0
        %461 = vmatpush2.msra.mxu0 0.0
        %462 = vmatprep.subr.mxu0 0.0
        %463 = vmatpush2.msra.mxu0 0.0
        %464 = vmatprep.subr.mxu0 0.0
        %465 = vmatpush2.msra.mxu0 0.0
        %466 = vmatprep.subr.mxu0 0.0
        %467 = vmatpush2.msra.mxu0 0.0
        %468 = vmatprep.subr.mxu0 0.0
        %469 = vmatpush2.msra.mxu0 0.0
        %470 = vmatprep.subr.mxu0 0.0
        %471 = vmatpush2.msra.mxu0 0.0
        %472 = vmatprep.subr.mxu0 0.0
        %473 = vmatpush2.msra.mxu0 0.0
        %474 = vmatprep.subr.mxu0 0.0
        %475 = vmatpush2.msra.mxu0 0.0
        %476 = vmatprep.subr.mxu0 0.0
        %477 = vmatpush2.msra.mxu0 0.0
        %478 = vmatprep.subr.mxu0 0.0
        %479 = vmatpush2.msra.mxu0 0.0
        %480 = vmatprep.subr.mxu0 0.0
        %481 = vmatpush2.msra.mxu0 0.0
        %482 = vmatprep.subr.mxu0 0.0
        %483 = vmatpush2.msra.mxu0 0.0
        %484 = vmatprep.subr.mxu0 0.0
        %485 = vmatpush2.msra.mxu0 0.0
        %486 = vmatprep.mubr.f32.mxu0 0.0
        %487 = vmatmul.mubr.f32.gmra.mxu0 %v327
        %v488 = vpop.f32.mrf.mxu0
        %v489 = vadd.f32 %v323, %v488
        %v490 = vpop.f32.mrf.mxu0
        %491 = vmatprep.mubr.f32.mxu0 0.0
        %492 = vmatmul.mubr.f32.gmra.mxu0 %v330
        %v493 = vpop.f32.mrf.mxu0
        %v494 = vadd.f32 %v323, %v493
        %v495 = vpop.f32.mrf.mxu0
        %496 = vmatprep.mubr.f32.mxu0 0.0
        %497 = vmatmul.mubr.f32.gmra.mxu0 %v333
        %v498 = vpop.f32.mrf.mxu0
        %v499 = vadd.f32 %v323, %v498
        %v500 = vpop.f32.mrf.mxu0
        %501 = vmatprep.mubr.f32.mxu0 0.0
        %502 = vmatmul.mubr.f32.gmra.mxu0 %v336
        %v503 = vpop.f32.mrf.mxu0
        %v504 = vadd.f32 %v323, %v503
        %v505 = vpop.f32.mrf.mxu0
        %506 = vmatprep.mubr.f32.mxu0 0.0
        %507 = vmatmul.mubr.f32.gmra.mxu0 %v339
        %v508 = vpop.f32.mrf.mxu0
        %v509 = vadd.f32 %v323, %v508
        %v510 = vpop.f32.mrf.mxu0
        %511 = vmatprep.mubr.f32.mxu0 0.0
        %512 = vmatmul.mubr.f32.gmra.mxu0 %v342
        %v513 = vpop.f32.mrf.mxu0
        %v514 = vadd.f32 %v323, %v513
        %v515 = vpop.f32.mrf.mxu0
        %516 = vmatprep.mubr.f32.mxu0 0.0
        %517 = vmatmul.mubr.f32.gmra.mxu0 %v345
        %v518 = vpop.f32.mrf.mxu0
        %v519 = vadd.f32 %v323, %v518
        %v520 = vpop.f32.mrf.mxu0
        %521 = vmatprep.mubr.f32.mxu0 0.0
        %522 = vmatmul.mubr.f32.gmra.mxu0 %v348
        %v523 = vpop.f32.mrf.mxu0
        %v524 = vadd.f32 %v323, %v523
        %v525 = vpop.f32.mrf.mxu0
        %526 = vmatprep.mubr.f32.mxu0 0.0
        %527 = vmatmul.mubr.f32.gmra.mxu0 %v351
        %v528 = vpop.f32.mrf.mxu0
        %v529 = vadd.f32 %v323, %v528
        %v530 = vpop.f32.mrf.mxu0
        %531 = vmatprep.mubr.f32.mxu0 0.0
        %532 = vmatmul.mubr.f32.gmra.mxu0 %v354
        %v533 = vpop.f32.mrf.mxu0
        %v534 = vadd.f32 %v323, %v533
        %v535 = vpop.f32.mrf.mxu0
        %536 = vmatprep.mubr.f32.mxu0 0.0
        %537 = vmatmul.mubr.f32.gmra.mxu0 %v357
        %v538 = vpop.f32.mrf.mxu0
        %v539 = vadd.f32 %v323, %v538
        %v540 = vpop.f32.mrf.mxu0
        %541 = vmatprep.mubr.f32.mxu0 0.0
        %542 = vmatmul.mubr.f32.gmra.mxu0 %v360
        %v543 = vpop.f32.mrf.mxu0
        %v544 = vadd.f32 %v323, %v543
        %v545 = vpop.f32.mrf.mxu0
        %546 = vmatprep.mubr.f32.mxu0 0.0
        %547 = vmatmul.mubr.f32.gmra.mxu0 %v363
        %v548 = vpop.f32.mrf.mxu0
        %v549 = vadd.f32 %v323, %v548
        %v550 = vpop.f32.mrf.mxu0
        %551 = vmatprep.mubr.f32.mxu0 0.0
        %552 = vmatmul.mubr.f32.gmra.mxu0 %v366
        %v553 = vpop.f32.mrf.mxu0
        %v554 = vadd.f32 %v323, %v553
        %v555 = vpop.f32.mrf.mxu0
        %556 = vmatprep.mubr.f32.mxu0 0.0
        %557 = vmatmul.mubr.f32.gmra.mxu0 %v369
        %v558 = vpop.f32.mrf.mxu0
        %v559 = vadd.f32 %v323, %v558
        %v560 = vpop.f32.mrf.mxu0
        %561 = vmatprep.mubr.f32.mxu0 0.0
        %562 = vmatmul.mubr.f32.gmra.mxu0 %v372
        %v563 = vpop.f32.mrf.mxu0
        %v564 = vadd.f32 %v323, %v563
        %v565 = vpop.f32.mrf.mxu0
        %566 = vmatprep.mubr.f32.mxu0 0.0
        %567 = vmatmul.mubr.f32.gmra.mxu0 %v375
        %v568 = vpop.f32.mrf.mxu0
        %v569 = vadd.f32 %v323, %v568
        %v570 = vpop.f32.mrf.mxu0
        %571 = vmatprep.mubr.f32.mxu0 0.0
        %572 = vmatmul.mubr.f32.gmra.mxu0 %v378
        %v573 = vpop.f32.mrf.mxu0
        %v574 = vadd.f32 %v323, %v573
        %v575 = vpop.f32.mrf.mxu0
        %576 = vmatprep.mubr.f32.mxu0 0.0
        %577 = vmatmul.mubr.f32.gmra.mxu0 %v381
        %v578 = vpop.f32.mrf.mxu0
        %v579 = vadd.f32 %v323, %v578
        %v580 = vpop.f32.mrf.mxu0
        %581 = vmatprep.mubr.f32.mxu0 0.0
        %582 = vmatmul.mubr.f32.gmra.mxu0 %v384
        %v583 = vpop.f32.mrf.mxu0
        %v584 = vadd.f32 %v323, %v583
        %v585 = vpop.f32.mrf.mxu0
        %586 = vmatprep.mubr.f32.mxu0 0.0
        %587 = vmatmul.mubr.f32.gmra.mxu0 %v387
        %v588 = vpop.f32.mrf.mxu0
        %v589 = vadd.f32 %v323, %v588
        %v590 = vpop.f32.mrf.mxu0
        %591 = vmatprep.mubr.f32.mxu0 0.0
        %592 = vmatmul.mubr.f32.gmra.mxu0 %v390
        %v593 = vpop.f32.mrf.mxu0
        %v594 = vadd.f32 %v323, %v593
        %v595 = vpop.f32.mrf.mxu0
        %596 = vmatprep.mubr.f32.mxu0 0.0
        %597 = vmatmul.mubr.f32.gmra.mxu0 %v393
        %v598 = vpop.f32.mrf.mxu0
        %v599 = vadd.f32 %v323, %v598
        %v600 = vpop.f32.mrf.mxu0
        %601 = vmatprep.mubr.f32.mxu0 0.0
        %602 = vmatmul.mubr.f32.gmra.mxu0 %v396
        %v603 = vpop.f32.mrf.mxu0
        %v604 = vadd.f32 %v323, %v603
        %v605 = vpop.f32.mrf.mxu0
        %606 = vmatprep.mubr.f32.mxu0 0.0
        %607 = vmatmul.mubr.f32.gmra.mxu0 %v399
        %v608 = vpop.f32.mrf.mxu0
        %v609 = vadd.f32 %v323, %v608
        %v610 = vpop.f32.mrf.mxu0
        %611 = vmatprep.mubr.f32.mxu0 0.0
        %612 = vmatmul.mubr.f32.gmra.mxu0 %v402
        %v613 = vpop.f32.mrf.mxu0
        %v614 = vadd.f32 %v323, %v613
        %v615 = vpop.f32.mrf.mxu0
        %616 = vmatprep.mubr.f32.mxu0 0.0
        %617 = vmatmul.mubr.f32.gmra.mxu0 %v405
        %v618 = vpop.f32.mrf.mxu0
        %v619 = vadd.f32 %v323, %v618
        %v620 = vpop.f32.mrf.mxu0
        %621 = vmatprep.mubr.f32.mxu0 0.0
        %622 = vmatmul.mubr.f32.gmra.mxu0 %v408
        %v623 = vpop.f32.mrf.mxu0
        %v624 = vadd.f32 %v323, %v623
        %v625 = vpop.f32.mrf.mxu0
        %626 = vmatprep.mubr.f32.mxu0 0.0
        %627 = vmatmul.mubr.f32.gmra.mxu0 %v411
        %v628 = vpop.f32.mrf.mxu0
        %v629 = vadd.f32 %v323, %v628
        %v630 = vpop.f32.mrf.mxu0
        %631 = vmatprep.mubr.f32.mxu0 0.0
        %632 = vmatmul.mubr.f32.gmra.mxu0 %v414
        %v633 = vpop.f32.mrf.mxu0
        %v634 = vadd.f32 %v323, %v633
        %v635 = vpop.f32.mrf.mxu0
        %636 = vmatprep.mubr.f32.mxu0 0.0
        %637 = vmatmul.mubr.f32.gmra.mxu0 %v417
        %v638 = vpop.f32.mrf.mxu0
        %v639 = vadd.f32 %v323, %v638
        %v640 = vpop.f32.mrf.mxu0
        %641 = vmatprep.mubr.f32.mxu0 0.0
        %642 = vmatmul.mubr.f32.gmra.mxu0 %v420
        %v643 = vpop.f32.mrf.mxu0
        %v644 = vadd.f32 %v323, %v643
        %v645 = vpop.f32.mrf.mxu0
        %646 = vdwg.mxu0
        %v647 = vxor.u32 %v489, 2147483648
        %v648 = vxor.u32 %v494, 2147483648
        %v649 = vxor.u32 %v499, 2147483648
        %v650 = vxor.u32 %v504, 2147483648
        %v651 = vxor.u32 %v509, 2147483648
        %v652 = vxor.u32 %v514, 2147483648
        %v653 = vxor.u32 %v519, 2147483648
        %v654 = vxor.u32 %v524, 2147483648
        %v655 = vxor.u32 %v529, 2147483648
        %v656 = vxor.u32 %v534, 2147483648
        %v657 = vxor.u32 %v539, 2147483648
        %v658 = vxor.u32 %v544, 2147483648
        %v659 = vxor.u32 %v549, 2147483648
        %v660 = vxor.u32 %v554, 2147483648
        %v661 = vxor.u32 %v559, 2147483648
        %v662 = vxor.u32 %v564, 2147483648
        %v663 = vxor.u32 %v569, 2147483648
        %v664 = vxor.u32 %v574, 2147483648
        %v665 = vxor.u32 %v579, 2147483648
        %v666 = vxor.u32 %v584, 2147483648
        %v667 = vxor.u32 %v589, 2147483648
        %v668 = vxor.u32 %v594, 2147483648
        %v669 = vxor.u32 %v599, 2147483648
        %v670 = vxor.u32 %v604, 2147483648
        %v671 = vxor.u32 %v609, 2147483648
        %v672 = vxor.u32 %v614, 2147483648
        %v673 = vxor.u32 %v619, 2147483648
        %v674 = vxor.u32 %v624, 2147483648
        %v675 = vxor.u32 %v629, 2147483648
        %v676 = vxor.u32 %v634, 2147483648
        %v677 = vxor.u32 %v639, 2147483648
        %v678 = vxor.u32 %v644, 2147483648
        %v679 = vmul.f32 %v647, 1.442695
        %v680 = vpow.pop %v679
        %v681 = vmul.f32 %v648, 1.442695
        %v682 = vpow.pop %v681
        %v683 = vmul.f32 %v649, 1.442695
        %v684 = vpow.pop %v683
        %v685 = vmul.f32 %v650, 1.442695
        %v686 = vpow.pop %v685
        %v687 = vmul.f32 %v651, 1.442695
        %v688 = vpow.pop %v687
        %v689 = vmul.f32 %v652, 1.442695
        %v690 = vpow.pop %v689
        %v691 = vmul.f32 %v653, 1.442695
        %v692 = vpow.pop %v691
        %v693 = vmul.f32 %v654, 1.442695
        %v694 = vpow.pop %v693
        %v695 = vmul.f32 %v655, 1.442695
        %v696 = vpow.pop %v695
        %v697 = vmul.f32 %v656, 1.442695
        %v698 = vpow.pop %v697
        %v699 = vmul.f32 %v657, 1.442695
        %v700 = vpow.pop %v699
        %v701 = vmul.f32 %v658, 1.442695
        %v702 = vpow.pop %v701
        %v703 = vmul.f32 %v659, 1.442695
        %v704 = vpow.pop %v703
        %v705 = vmul.f32 %v660, 1.442695
        %v706 = vpow.pop %v705
        %v707 = vmul.f32 %v661, 1.442695
        %v708 = vpow.pop %v707
        %v709 = vmul.f32 %v662, 1.442695
        %v710 = vpow.pop %v709
        %v711 = vmul.f32 %v663, 1.442695
        %v712 = vpow.pop %v711
        %v713 = vmul.f32 %v664, 1.442695
        %v714 = vpow.pop %v713
        %v715 = vmul.f32 %v665, 1.442695
        %v716 = vpow.pop %v715
        %v717 = vmul.f32 %v666, 1.442695
        %v718 = vpow.pop %v717
        %v719 = vmul.f32 %v667, 1.442695
        %v720 = vpow.pop %v719
        %v721 = vmul.f32 %v668, 1.442695
        %v722 = vpow.pop %v721
        %v723 = vmul.f32 %v669, 1.442695
        %v724 = vpow.pop %v723
        %v725 = vmul.f32 %v670, 1.442695
        %v726 = vpow.pop %v725
        %v727 = vmul.f32 %v671, 1.442695
        %v728 = vpow.pop %v727
        %v729 = vmul.f32 %v672, 1.442695
        %v730 = vpow.pop %v729
        %v731 = vmul.f32 %v673, 1.442695
        %v732 = vpow.pop %v731
        %v733 = vmul.f32 %v674, 1.442695
        %v734 = vpow.pop %v733
        %v735 = vmul.f32 %v675, 1.442695
        %v736 = vpow.pop %v735
        %v737 = vmul.f32 %v676, 1.442695
        %v738 = vpow.pop %v737
        %v739 = vmul.f32 %v677, 1.442695
        %v740 = vpow.pop %v739
        %v741 = vmul.f32 %v678, 1.442695
        %v742 = vpow.pop %v741
        %v743 = vadd.f32 %v680, 1.0
        %v744 = vadd.f32 %v682, 1.0
        %v745 = vadd.f32 %v684, 1.0
        %v746 = vadd.f32 %v686, 1.0
        %v747 = vadd.f32 %v688, 1.0
        %v748 = vadd.f32 %v690, 1.0
        %v749 = vadd.f32 %v692, 1.0
        %v750 = vadd.f32 %v694, 1.0
        %v751 = vadd.f32 %v696, 1.0
        %v752 = vadd.f32 %v698, 1.0
        %v753 = vadd.f32 %v700, 1.0
        %v754 = vadd.f32 %v702, 1.0
        %v755 = vadd.f32 %v704, 1.0
        %v756 = vadd.f32 %v706, 1.0
        %v757 = vadd.f32 %v708, 1.0
        %v758 = vadd.f32 %v710, 1.0
        %v759 = vadd.f32 %v712, 1.0
        %v760 = vadd.f32 %v714, 1.0
        %v761 = vadd.f32 %v716, 1.0
        %v762 = vadd.f32 %v718, 1.0
        %v763 = vadd.f32 %v720, 1.0
        %v764 = vadd.f32 %v722, 1.0
        %v765 = vadd.f32 %v724, 1.0
        %v766 = vadd.f32 %v726, 1.0
        %v767 = vadd.f32 %v728, 1.0
        %v768 = vadd.f32 %v730, 1.0
        %v769 = vadd.f32 %v732, 1.0
        %v770 = vadd.f32 %v734, 1.0
        %v771 = vadd.f32 %v736, 1.0
        %v772 = vadd.f32 %v738, 1.0
        %v773 = vadd.f32 %v740, 1.0
        %v774 = vadd.f32 %v742, 1.0
        %v775 = vrcp.pop %v743
        %v776 = vmul.f32 1.0, %v775
        %v777 = vrcp.pop %v744
        %v778 = vmul.f32 1.0, %v777
        %v779 = vrcp.pop %v745
        %v780 = vmul.f32 1.0, %v779
        %v781 = vrcp.pop %v746
        %v782 = vmul.f32 1.0, %v781
        %v783 = vrcp.pop %v747
        %v784 = vmul.f32 1.0, %v783
        %v785 = vrcp.pop %v748
        %v786 = vmul.f32 1.0, %v785
        %v787 = vrcp.pop %v749
        %v788 = vmul.f32 1.0, %v787
        %v789 = vrcp.pop %v750
        %v790 = vmul.f32 1.0, %v789
        %v791 = vrcp.pop %v751
        %v792 = vmul.f32 1.0, %v791
        %v793 = vrcp.pop %v752
        %v794 = vmul.f32 1.0, %v793
        %v795 = vrcp.pop %v753
        %v796 = vmul.f32 1.0, %v795
        %v797 = vrcp.pop %v754
        %v798 = vmul.f32 1.0, %v797
        %v799 = vrcp.pop %v755
        %v800 = vmul.f32 1.0, %v799
        %v801 = vrcp.pop %v756
        %v802 = vmul.f32 1.0, %v801
        %v803 = vrcp.pop %v757
        %v804 = vmul.f32 1.0, %v803
        %v805 = vrcp.pop %v758
        %v806 = vmul.f32 1.0, %v805
        %v807 = vrcp.pop %v759
        %v808 = vmul.f32 1.0, %v807
        %v809 = vrcp.pop %v760
        %v810 = vmul.f32 1.0, %v809
        %v811 = vrcp.pop %v761
        %v812 = vmul.f32 1.0, %v811
        %v813 = vrcp.pop %v762
        %v814 = vmul.f32 1.0, %v813
        %v815 = vrcp.pop %v763
        %v816 = vmul.f32 1.0, %v815
        %v817 = vrcp.pop %v764
        %v818 = vmul.f32 1.0, %v817
        %v819 = vrcp.pop %v765
        %v820 = vmul.f32 1.0, %v819
        %v821 = vrcp.pop %v766
        %v822 = vmul.f32 1.0, %v821
        %v823 = vrcp.pop %v767
        %v824 = vmul.f32 1.0, %v823
        %v825 = vrcp.pop %v768
        %v826 = vmul.f32 1.0, %v825
        %v827 = vrcp.pop %v769
        %v828 = vmul.f32 1.0, %v827
        %v829 = vrcp.pop %v770
        %v830 = vmul.f32 1.0, %v829
        %v831 = vrcp.pop %v771
        %v832 = vmul.f32 1.0, %v831
        %v833 = vrcp.pop %v772
        %v834 = vmul.f32 1.0, %v833
        %v835 = vrcp.pop %v773
        %v836 = vmul.f32 1.0, %v835
        %v837 = vrcp.pop %v774
        %v838 = vmul.f32 1.0, %v837
        %v839 = vmul.f32 %v489, %v776
        %v840 = vmul.f32 %v494, %v778
        %v841 = vmul.f32 %v499, %v780
        %v842 = vmul.f32 %v504, %v782
        %v843 = vmul.f32 %v509, %v784
        %v844 = vmul.f32 %v514, %v786
        %v845 = vmul.f32 %v519, %v788
        %v846 = vmul.f32 %v524, %v790
        %v847 = vmul.f32 %v529, %v792
        %v848 = vmul.f32 %v534, %v794
        %v849 = vmul.f32 %v539, %v796
        %v850 = vmul.f32 %v544, %v798
        %v851 = vmul.f32 %v549, %v800
        %v852 = vmul.f32 %v554, %v802
        %v853 = vmul.f32 %v559, %v804
        %v854 = vmul.f32 %v564, %v806
        %v855 = vmul.f32 %v569, %v808
        %v856 = vmul.f32 %v574, %v810
        %v857 = vmul.f32 %v579, %v812
        %v858 = vmul.f32 %v584, %v814
        %v859 = vmul.f32 %v589, %v816
        %v860 = vmul.f32 %v594, %v818
        %v861 = vmul.f32 %v599, %v820
        %v862 = vmul.f32 %v604, %v822
        %v863 = vmul.f32 %v609, %v824
        %v864 = vmul.f32 %v614, %v826
        %v865 = vmul.f32 %v619, %v828
        %v866 = vmul.f32 %v624, %v830
        %v867 = vmul.f32 %v629, %v832
        %v868 = vmul.f32 %v634, %v834
        %v869 = vmul.f32 %v639, %v836
        %v870 = vmul.f32 %v644, %v838
        %871 = vst.msk [vmem:[#allocation2] sm:$0xff] %vm325, 0.0
        %872 = vst.msk [vmem:[#allocation2 + $0x8] sm:$0xff] %vm325, 0.0
        %873 = vst.msk [vmem:[#allocation2 + $0x10] sm:$0xff] %vm325, 0.0
        %874 = vst.msk [vmem:[#allocation2 + $0x118] sm:$0xff] %vm325, 0.0
        %875 = vst.msk [vmem:[#allocation2 + $0x120] sm:$0xff] %vm325, 0.0
        %876 = vst.msk [vmem:[#allocation2 + $0x128] sm:$0xff] %vm325, 0.0
        %877 = vst.msk [vmem:[#allocation2 + $0x18] sm:$0xff] %vm325, %v839
        %878 = vst.msk [vmem:[#allocation2 + $0x20] sm:$0xff] %vm325, %v840
        %879 = vst.msk [vmem:[#allocation2 + $0x28] sm:$0xff] %vm325, %v841
        %880 = vst.msk [vmem:[#allocation2 + $0x30] sm:$0xff] %vm325, %v842
        %881 = vst.msk [vmem:[#allocation2 + $0x38] sm:$0xff] %vm325, %v843
        %882 = vst.msk [vmem:[#allocation2 + $0x40] sm:$0xff] %vm325, %v844
        %883 = vst.msk [vmem:[#allocation2 + $0x48] sm:$0xff] %vm325, %v845
        %884 = vst.msk [vmem:[#allocation2 + $0x50] sm:$0xff] %vm325, %v846
        %885 = vst.msk [vmem:[#allocation2 + $0x58] sm:$0xff] %vm325, %v847
        %886 = vst.msk [vmem:[#allocation2 + $0x60] sm:$0xff] %vm325, %v848
        %887 = vst.msk [vmem:[#allocation2 + $0x68] sm:$0xff] %vm325, %v849
        %888 = vst.msk [vmem:[#allocation2 + $0x70] sm:$0xff] %vm325, %v850
        %889 = vst.msk [vmem:[#allocation2 + $0x78] sm:$0xff] %vm325, %v851
        %890 = vst.msk [vmem:[#allocation2 + $0x80] sm:$0xff] %vm325, %v852
        %891 = vst.msk [vmem:[#allocation2 + $0x88] sm:$0xff] %vm325, %v853
        %892 = vst.msk [vmem:[#allocation2 + $0x90] sm:$0xff] %vm325, %v854
        %893 = vst.msk [vmem:[#allocation2 + $0x98] sm:$0xff] %vm325, %v855
        %894 = vst.msk [vmem:[#allocation2 + $0xa0] sm:$0xff] %vm325, %v856
        %895 = vst.msk [vmem:[#allocation2 + $0xa8] sm:$0xff] %vm325, %v857
        %896 = vst.msk [vmem:[#allocation2 + $0xb0] sm:$0xff] %vm325, %v858
        %897 = vst.msk [vmem:[#allocation2 + $0xb8] sm:$0xff] %vm325, %v859
        %898 = vst.msk [vmem:[#allocation2 + $0xc0] sm:$0xff] %vm325, %v860
        %899 = vst.msk [vmem:[#allocation2 + $0xc8] sm:$0xff] %vm325, %v861
        %900 = vst.msk [vmem:[#allocation2 + $0xd0] sm:$0xff] %vm325, %v862
        %901 = vst.msk [vmem:[#allocation2 + $0xd8] sm:$0xff] %vm325, %v863
        %902 = vst.msk [vmem:[#allocation2 + $0xe0] sm:$0xff] %vm325, %v864
        %903 = vst.msk [vmem:[#allocation2 + $0xe8] sm:$0xff] %vm325, %v865
        %904 = vst.msk [vmem:[#allocation2 + $0xf0] sm:$0xff] %vm325, %v866
        %905 = vst.msk [vmem:[#allocation2 + $0xf8] sm:$0xff] %vm325, %v867
        %906 = vst.msk [vmem:[#allocation2 + $0x100] sm:$0xff] %vm325, %v868
        %907 = vst.msk [vmem:[#allocation2 + $0x108] sm:$0xff] %vm325, %v869
        %908 = vst.msk [vmem:[#allocation2 + $0x110] sm:$0xff] %vm325, %v870
        %v909 = vlaneseq
        %v910 = vshrl.u32 %v909, 7
        %v911 = vadd.s32 %v910, 8
        %v912 = vadd.s32 %v910, 16
        %v913 = vadd.s32 %v910, 24
        %v914 = vadd.s32 %v910, 32
        %v915 = vadd.s32 %v910, 40
        %v916 = vadd.s32 %v910, 48
        %v917 = vadd.s32 %v910, 56
        %v918 = vadd.s32 %v910, 64
        %v919 = vadd.s32 %v910, 72
        %v920 = vadd.s32 %v910, 80
        %v921 = vadd.s32 %v910, 88
        %v922 = vadd.s32 %v910, 96
        %v923 = vadd.s32 %v910, 104
        %v924 = vadd.s32 %v910, 112
        %v925 = vadd.s32 %v910, 120
        %v926 = vadd.s32 %v910, 128
        %v927 = vadd.s32 %v910, 136
        %v928 = vadd.s32 %v910, 144
        %v929 = vadd.s32 %v910, 152
        %v930 = vadd.s32 %v910, 160
        %v931 = vadd.s32 %v910, 168
        %v932 = vadd.s32 %v910, 176
        %v933 = vadd.s32 %v910, 184
        %v934 = vadd.s32 %v910, 192
        %v935 = vadd.s32 %v910, 200
        %v936 = vadd.s32 %v910, 208
        %v937 = vadd.s32 %v910, 216
        %v938 = vadd.s32 %v910, 224
        %v939 = vadd.s32 %v910, 232
        %v940 = vadd.s32 %v910, 240
        %v941 = vadd.s32 %v910, 248
        %v942 = vcvt.s32.f32 %v910
        %v943 = vcvt.s32.f32 %v911
        %v944 = vcvt.s32.f32 %v912
        %v945 = vcvt.s32.f32 %v913
        %v946 = vcvt.s32.f32 %v914
        %v947 = vcvt.s32.f32 %v915
        %v948 = vcvt.s32.f32 %v916
        %v949 = vcvt.s32.f32 %v917
        %v950 = vcvt.s32.f32 %v918
        %v951 = vcvt.s32.f32 %v919
        %v952 = vcvt.s32.f32 %v920
        %v953 = vcvt.s32.f32 %v921
        %v954 = vcvt.s32.f32 %v922
        %v955 = vcvt.s32.f32 %v923
        %v956 = vcvt.s32.f32 %v924
        %v957 = vcvt.s32.f32 %v925
        %v958 = vcvt.s32.f32 %v926
        %v959 = vcvt.s32.f32 %v927
        %v960 = vcvt.s32.f32 %v928
        %v961 = vcvt.s32.f32 %v929
        %v962 = vcvt.s32.f32 %v930
        %v963 = vcvt.s32.f32 %v931
        %v964 = vcvt.s32.f32 %v932
        %v965 = vcvt.s32.f32 %v933
        %v966 = vcvt.s32.f32 %v934
        %v967 = vcvt.s32.f32 %v935
        %v968 = vcvt.s32.f32 %v936
        %v969 = vcvt.s32.f32 %v937
        %v970 = vcvt.s32.f32 %v938
        %v971 = vcvt.s32.f32 %v939
        %v972 = vcvt.s32.f32 %v940
        %v973 = vcvt.s32.f32 %v941
        %v974 = vrcp.pop 16.0
        %v975 = vmul.f32 %v942, %v974
        %v976 = vmul.f32 %v943, %v974
        %v977 = vmul.f32 %v944, %v974
        %v978 = vmul.f32 %v945, %v974
        %v979 = vmul.f32 %v946, %v974
        %v980 = vmul.f32 %v947, %v974
        %v981 = vmul.f32 %v948, %v974
        %v982 = vmul.f32 %v949, %v974
        %v983 = vmul.f32 %v950, %v974
        %v984 = vmul.f32 %v951, %v974
        %v985 = vmul.f32 %v952, %v974
        %v986 = vmul.f32 %v953, %v974
        %v987 = vmul.f32 %v954, %v974
        %v988 = vmul.f32 %v955, %v974
        %v989 = vmul.f32 %v956, %v974
        %v990 = vmul.f32 %v957, %v974
        %v991 = vmul.f32 %v958, %v974
        %v992 = vmul.f32 %v959, %v974
        %v993 = vmul.f32 %v960, %v974
        %v994 = vmul.f32 %v961, %v974
        %v995 = vmul.f32 %v962, %v974
        %v996 = vmul.f32 %v963, %v974
        %v997 = vmul.f32 %v964, %v974
        %v998 = vmul.f32 %v965, %v974
        %v999 = vmul.f32 %v966, %v974
        %v1000 = vmul.f32 %v967, %v974
        %v1001 = vmul.f32 %v968, %v974
        %v1002 = vmul.f32 %v969, %v974
        %v1003 = vmul.f32 %v970, %v974
        %v1004 = vmul.f32 %v971, %v974
        %v1005 = vmul.f32 %v972, %v974
        %v1006 = vmul.f32 %v973, %v974
        %v1007 = vfloor.f32 %v975
        %v1008 = vfloor.f32 %v976
        %v1009 = vfloor.f32 %v977
        %v1010 = vfloor.f32 %v978
        %v1011 = vfloor.f32 %v979
        %v1012 = vfloor.f32 %v980
        %v1013 = vfloor.f32 %v981
        %v1014 = vfloor.f32 %v982
        %v1015 = vfloor.f32 %v983
        %v1016 = vfloor.f32 %v984
        %v1017 = vfloor.f32 %v985
        %v1018 = vfloor.f32 %v986
        %v1019 = vfloor.f32 %v987
        %v1020 = vfloor.f32 %v988
        %v1021 = vfloor.f32 %v989
        %v1022 = vfloor.f32 %v990
        %v1023 = vfloor.f32 %v991
        %v1024 = vfloor.f32 %v992
        %v1025 = vfloor.f32 %v993
        %v1026 = vfloor.f32 %v994
        %v1027 = vfloor.f32 %v995
        %v1028 = vfloor.f32 %v996
        %v1029 = vfloor.f32 %v997
        %v1030 = vfloor.f32 %v998
        %v1031 = vfloor.f32 %v999
        %v1032 = vfloor.f32 %v1000
        %v1033 = vfloor.f32 %v1001
        %v1034 = vfloor.f32 %v1002
        %v1035 = vfloor.f32 %v1003
        %v1036 = vfloor.f32 %v1004
        %v1037 = vfloor.f32 %v1005
        %v1038 = vfloor.f32 %v1006
        %v1039 = vmul.f32 %v1007, 16.0
        %v1040 = vmul.f32 %v1008, 16.0
        %v1041 = vmul.f32 %v1009, 16.0
        %v1042 = vmul.f32 %v1010, 16.0
        %v1043 = vmul.f32 %v1011, 16.0
        %v1044 = vmul.f32 %v1012, 16.0
        %v1045 = vmul.f32 %v1013, 16.0
        %v1046 = vmul.f32 %v1014, 16.0
        %v1047 = vmul.f32 %v1015, 16.0
        %v1048 = vmul.f32 %v1016, 16.0
        %v1049 = vmul.f32 %v1017, 16.0
        %v1050 = vmul.f32 %v1018, 16.0
        %v1051 = vmul.f32 %v1019, 16.0
        %v1052 = vmul.f32 %v1020, 16.0
        %v1053 = vmul.f32 %v1021, 16.0
        %v1054 = vmul.f32 %v1022, 16.0
        %v1055 = vmul.f32 %v1023, 16.0
        %v1056 = vmul.f32 %v1024, 16.0
        %v1057 = vmul.f32 %v1025, 16.0
        %v1058 = vmul.f32 %v1026, 16.0
        %v1059 = vmul.f32 %v1027, 16.0
        %v1060 = vmul.f32 %v1028, 16.0
        %v1061 = vmul.f32 %v1029, 16.0
        %v1062 = vmul.f32 %v1030, 16.0
        %v1063 = vmul.f32 %v1031, 16.0
        %v1064 = vmul.f32 %v1032, 16.0
        %v1065 = vmul.f32 %v1033, 16.0
        %v1066 = vmul.f32 %v1034, 16.0
        %v1067 = vmul.f32 %v1035, 16.0
        %v1068 = vmul.f32 %v1036, 16.0
        %v1069 = vmul.f32 %v1037, 16.0
        %v1070 = vmul.f32 %v1038, 16.0
        %v1071 = vsub.f32 %v942, %v1039
        %v1072 = vsub.f32 %v943, %v1040
        %v1073 = vsub.f32 %v944, %v1041
        %v1074 = vsub.f32 %v945, %v1042
        %v1075 = vsub.f32 %v946, %v1043
        %v1076 = vsub.f32 %v947, %v1044
        %v1077 = vsub.f32 %v948, %v1045
        %v1078 = vsub.f32 %v949, %v1046
        %v1079 = vsub.f32 %v950, %v1047
        %v1080 = vsub.f32 %v951, %v1048
        %v1081 = vsub.f32 %v952, %v1049
        %v1082 = vsub.f32 %v953, %v1050
        %v1083 = vsub.f32 %v954, %v1051
        %v1084 = vsub.f32 %v955, %v1052
        %v1085 = vsub.f32 %v956, %v1053
        %v1086 = vsub.f32 %v957, %v1054
        %v1087 = vsub.f32 %v958, %v1055
        %v1088 = vsub.f32 %v959, %v1056
        %v1089 = vsub.f32 %v960, %v1057
        %v1090 = vsub.f32 %v961, %v1058
        %v1091 = vsub.f32 %v962, %v1059
        %v1092 = vsub.f32 %v963, %v1060
        %v1093 = vsub.f32 %v964, %v1061
        %v1094 = vsub.f32 %v965, %v1062
        %v1095 = vsub.f32 %v966, %v1063
        %v1096 = vsub.f32 %v967, %v1064
        %v1097 = vsub.f32 %v968, %v1065
        %v1098 = vsub.f32 %v969, %v1066
        %v1099 = vsub.f32 %v970, %v1067
        %v1100 = vsub.f32 %v971, %v1068
        %v1101 = vsub.f32 %v972, %v1069
        %v1102 = vsub.f32 %v973, %v1070
        %vm1103 = vcmp.ne.f32.partialorder %v1071, 0.0
        %vm1104 = vcmp.ne.f32.partialorder %v1072, 0.0
        %vm1105 = vcmp.ne.f32.partialorder %v1073, 0.0
        %vm1106 = vcmp.ne.f32.partialorder %v1074, 0.0
        %vm1107 = vcmp.ne.f32.partialorder %v1075, 0.0
        %vm1108 = vcmp.ne.f32.partialorder %v1076, 0.0
        %vm1109 = vcmp.ne.f32.partialorder %v1077, 0.0
        %vm1110 = vcmp.ne.f32.partialorder %v1078, 0.0
        %vm1111 = vcmp.ne.f32.partialorder %v1079, 0.0
        %vm1112 = vcmp.ne.f32.partialorder %v1080, 0.0
        %vm1113 = vcmp.ne.f32.partialorder %v1081, 0.0
        %vm1114 = vcmp.ne.f32.partialorder %v1082, 0.0
        %vm1115 = vcmp.ne.f32.partialorder %v1083, 0.0
        %vm1116 = vcmp.ne.f32.partialorder %v1084, 0.0
        %vm1117 = vcmp.ne.f32.partialorder %v1085, 0.0
        %vm1118 = vcmp.ne.f32.partialorder %v1086, 0.0
        %vm1119 = vcmp.ne.f32.partialorder %v1087, 0.0
        %vm1120 = vcmp.ne.f32.partialorder %v1088, 0.0
        %vm1121 = vcmp.ne.f32.partialorder %v1089, 0.0
        %vm1122 = vcmp.ne.f32.partialorder %v1090, 0.0
        %vm1123 = vcmp.ne.f32.partialorder %v1091, 0.0
        %vm1124 = vcmp.ne.f32.partialorder %v1092, 0.0
        %vm1125 = vcmp.ne.f32.partialorder %v1093, 0.0
        %vm1126 = vcmp.ne.f32.partialorder %v1094, 0.0
        %vm1127 = vcmp.ne.f32.partialorder %v1095, 0.0
        %vm1128 = vcmp.ne.f32.partialorder %v1096, 0.0
        %vm1129 = vcmp.ne.f32.partialorder %v1097, 0.0
        %vm1130 = vcmp.ne.f32.partialorder %v1098, 0.0
        %vm1131 = vcmp.ne.f32.partialorder %v1099, 0.0
        %vm1132 = vcmp.ne.f32.partialorder %v1100, 0.0
        %vm1133 = vcmp.ne.f32.partialorder %v1101, 0.0
        %vm1134 = vcmp.ne.f32.partialorder %v1102, 0.0
        %v1135 = vsel %vm1103, 1, 0
        %v1136 = vsel %vm1104, 1, 0
        %v1137 = vsel %vm1105, 1, 0
        %v1138 = vsel %vm1106, 1, 0
        %v1139 = vsel %vm1107, 1, 0
        %v1140 = vsel %vm1108, 1, 0
        %v1141 = vsel %vm1109, 1, 0
        %v1142 = vsel %vm1110, 1, 0
        %v1143 = vsel %vm1111, 1, 0
        %v1144 = vsel %vm1112, 1, 0
        %v1145 = vsel %vm1113, 1, 0
        %v1146 = vsel %vm1114, 1, 0
        %v1147 = vsel %vm1115, 1, 0
        %v1148 = vsel %vm1116, 1, 0
        %v1149 = vsel %vm1117, 1, 0
        %v1150 = vsel %vm1118, 1, 0
        %v1151 = vsel %vm1119, 1, 0
        %v1152 = vsel %vm1120, 1, 0
        %v1153 = vsel %vm1121, 1, 0
        %v1154 = vsel %vm1122, 1, 0
        %v1155 = vsel %vm1123, 1, 0
        %v1156 = vsel %vm1124, 1, 0
        %v1157 = vsel %vm1125, 1, 0
        %v1158 = vsel %vm1126, 1, 0
        %v1159 = vsel %vm1127, 1, 0
        %v1160 = vsel %vm1128, 1, 0
        %v1161 = vsel %vm1129, 1, 0
        %v1162 = vsel %vm1130, 1, 0
        %v1163 = vsel %vm1131, 1, 0
        %v1164 = vsel %vm1132, 1, 0
        %v1165 = vsel %vm1133, 1, 0
        %v1166 = vsel %vm1134, 1, 0
        %v1167 = vcvt.s32.f32 %v1135
        %v1168 = vcvt.s32.f32 %v1136
        %v1169 = vcvt.s32.f32 %v1137
        %v1170 = vcvt.s32.f32 %v1138
        %v1171 = vcvt.s32.f32 %v1139
        %v1172 = vcvt.s32.f32 %v1140
        %v1173 = vcvt.s32.f32 %v1141
        %v1174 = vcvt.s32.f32 %v1142
        %v1175 = vcvt.s32.f32 %v1143
        %v1176 = vcvt.s32.f32 %v1144
        %v1177 = vcvt.s32.f32 %v1145
        %v1178 = vcvt.s32.f32 %v1146
        %v1179 = vcvt.s32.f32 %v1147
        %v1180 = vcvt.s32.f32 %v1148
        %v1181 = vcvt.s32.f32 %v1149
        %v1182 = vcvt.s32.f32 %v1150
        %v1183 = vcvt.s32.f32 %v1151
        %v1184 = vcvt.s32.f32 %v1152
        %v1185 = vcvt.s32.f32 %v1153
        %v1186 = vcvt.s32.f32 %v1154
        %v1187 = vcvt.s32.f32 %v1155
        %v1188 = vcvt.s32.f32 %v1156
        %v1189 = vcvt.s32.f32 %v1157
        %v1190 = vcvt.s32.f32 %v1158
        %v1191 = vcvt.s32.f32 %v1159
        %v1192 = vcvt.s32.f32 %v1160
        %v1193 = vcvt.s32.f32 %v1161
        %v1194 = vcvt.s32.f32 %v1162
        %v1195 = vcvt.s32.f32 %v1163
        %v1196 = vcvt.s32.f32 %v1164
        %v1197 = vcvt.s32.f32 %v1165
        %v1198 = vcvt.s32.f32 %v1166
        %vm1199 = vcmp.ne.f32.partialorder %v1071, 15.0
        %vm1200 = vcmp.ne.f32.partialorder %v1072, 15.0
        %vm1201 = vcmp.ne.f32.partialorder %v1073, 15.0
        %vm1202 = vcmp.ne.f32.partialorder %v1074, 15.0
        %vm1203 = vcmp.ne.f32.partialorder %v1075, 15.0
        %vm1204 = vcmp.ne.f32.partialorder %v1076, 15.0
        %vm1205 = vcmp.ne.f32.partialorder %v1077, 15.0
        %vm1206 = vcmp.ne.f32.partialorder %v1078, 15.0
        %vm1207 = vcmp.ne.f32.partialorder %v1079, 15.0
        %vm1208 = vcmp.ne.f32.partialorder %v1080, 15.0
        %vm1209 = vcmp.ne.f32.partialorder %v1081, 15.0
        %vm1210 = vcmp.ne.f32.partialorder %v1082, 15.0
        %vm1211 = vcmp.ne.f32.partialorder %v1083, 15.0
        %vm1212 = vcmp.ne.f32.partialorder %v1084, 15.0
        %vm1213 = vcmp.ne.f32.partialorder %v1085, 15.0
        %vm1214 = vcmp.ne.f32.partialorder %v1086, 15.0
        %vm1215 = vcmp.ne.f32.partialorder %v1087, 15.0
        %vm1216 = vcmp.ne.f32.partialorder %v1088, 15.0
        %vm1217 = vcmp.ne.f32.partialorder %v1089, 15.0
        %vm1218 = vcmp.ne.f32.partialorder %v1090, 15.0
        %vm1219 = vcmp.ne.f32.partialorder %v1091, 15.0
        %vm1220 = vcmp.ne.f32.partialorder %v1092, 15.0
        %vm1221 = vcmp.ne.f32.partialorder %v1093, 15.0
        %vm1222 = vcmp.ne.f32.partialorder %v1094, 15.0
        %vm1223 = vcmp.ne.f32.partialorder %v1095, 15.0
        %vm1224 = vcmp.ne.f32.partialorder %v1096, 15.0
        %vm1225 = vcmp.ne.f32.partialorder %v1097, 15.0
        %vm1226 = vcmp.ne.f32.partialorder %v1098, 15.0
        %vm1227 = vcmp.ne.f32.partialorder %v1099, 15.0
        %vm1228 = vcmp.ne.f32.partialorder %v1100, 15.0
        %vm1229 = vcmp.ne.f32.partialorder %v1101, 15.0
        %vm1230 = vcmp.ne.f32.partialorder %v1102, 15.0
        %v1231 = vsel %vm1199, 1, 0
        %v1232 = vsel %vm1200, 1, 0
        %v1233 = vsel %vm1201, 1, 0
        %v1234 = vsel %vm1202, 1, 0
        %v1235 = vsel %vm1203, 1, 0
        %v1236 = vsel %vm1204, 1, 0
        %v1237 = vsel %vm1205, 1, 0
        %v1238 = vsel %vm1206, 1, 0
        %v1239 = vsel %vm1207, 1, 0
        %v1240 = vsel %vm1208, 1, 0
        %v1241 = vsel %vm1209, 1, 0
        %v1242 = vsel %vm1210, 1, 0
        %v1243 = vsel %vm1211, 1, 0
        %v1244 = vsel %vm1212, 1, 0
        %v1245 = vsel %vm1213, 1, 0
        %v1246 = vsel %vm1214, 1, 0
        %v1247 = vsel %vm1215, 1, 0
        %v1248 = vsel %vm1216, 1, 0
        %v1249 = vsel %vm1217, 1, 0
        %v1250 = vsel %vm1218, 1, 0
        %v1251 = vsel %vm1219, 1, 0
        %v1252 = vsel %vm1220, 1, 0
        %v1253 = vsel %vm1221, 1, 0
        %v1254 = vsel %vm1222, 1, 0
        %v1255 = vsel %vm1223, 1, 0
        %v1256 = vsel %vm1224, 1, 0
        %v1257 = vsel %vm1225, 1, 0
        %v1258 = vsel %vm1226, 1, 0
        %v1259 = vsel %vm1227, 1, 0
        %v1260 = vsel %vm1228, 1, 0
        %v1261 = vsel %vm1229, 1, 0
        %v1262 = vsel %vm1230, 1, 0
        %v1263 = vcvt.s32.f32 %v1231
        %v1264 = vcvt.s32.f32 %v1232
        %v1265 = vcvt.s32.f32 %v1233
        %v1266 = vcvt.s32.f32 %v1234
        %v1267 = vcvt.s32.f32 %v1235
        %v1268 = vcvt.s32.f32 %v1236
        %v1269 = vcvt.s32.f32 %v1237
        %v1270 = vcvt.s32.f32 %v1238
        %v1271 = vcvt.s32.f32 %v1239
        %v1272 = vcvt.s32.f32 %v1240
        %v1273 = vcvt.s32.f32 %v1241
        %v1274 = vcvt.s32.f32 %v1242
        %v1275 = vcvt.s32.f32 %v1243
        %v1276 = vcvt.s32.f32 %v1244
        %v1277 = vcvt.s32.f32 %v1245
        %v1278 = vcvt.s32.f32 %v1246
        %v1279 = vcvt.s32.f32 %v1247
        %v1280 = vcvt.s32.f32 %v1248
        %v1281 = vcvt.s32.f32 %v1249
        %v1282 = vcvt.s32.f32 %v1250
        %v1283 = vcvt.s32.f32 %v1251
        %v1284 = vcvt.s32.f32 %v1252
        %v1285 = vcvt.s32.f32 %v1253
        %v1286 = vcvt.s32.f32 %v1254
        %v1287 = vcvt.s32.f32 %v1255
        %v1288 = vcvt.s32.f32 %v1256
        %v1289 = vcvt.s32.f32 %v1257
        %v1290 = vcvt.s32.f32 %v1258
        %v1291 = vcvt.s32.f32 %v1259
        %v1292 = vcvt.s32.f32 %v1260
        %v1293 = vcvt.s32.f32 %v1261
        %v1294 = vcvt.s32.f32 %v1262
        %v1295 = vld [vmem:[#allocation2 + $0x7] sm:$0xff]
        %v1296 = vld [vmem:[#allocation2 + $0xf] sm:$0xff]
        %v1297 = vld [vmem:[#allocation2 + $0x17] sm:$0xff]
        %v1298 = vld [vmem:[#allocation2 + $0x1f] sm:$0xff]
        %v1299 = vld [vmem:[#allocation2 + $0x27] sm:$0xff]
        %v1300 = vld [vmem:[#allocation2 + $0x2f] sm:$0xff]
        %v1301 = vld [vmem:[#allocation2 + $0x37] sm:$0xff]
        %v1302 = vld [vmem:[#allocation2 + $0x3f] sm:$0xff]
        %v1303 = vld [vmem:[#allocation2 + $0x47] sm:$0xff]
        %v1304 = vld [vmem:[#allocation2 + $0x4f] sm:$0xff]
        %v1305 = vld [vmem:[#allocation2 + $0x57] sm:$0xff]
        %v1306 = vld [vmem:[#allocation2 + $0x5f] sm:$0xff]
        %v1307 = vld [vmem:[#allocation2 + $0x67] sm:$0xff]
        %v1308 = vld [vmem:[#allocation2 + $0x6f] sm:$0xff]
        %v1309 = vld [vmem:[#allocation2 + $0x77] sm:$0xff]
        %v1310 = vld [vmem:[#allocation2 + $0x7f] sm:$0xff]
        %v1311 = vld [vmem:[#allocation2 + $0x87] sm:$0xff]
        %v1312 = vld [vmem:[#allocation2 + $0x8f] sm:$0xff]
        %v1313 = vld [vmem:[#allocation2 + $0x97] sm:$0xff]
        %v1314 = vld [vmem:[#allocation2 + $0x9f] sm:$0xff]
        %v1315 = vld [vmem:[#allocation2 + $0xa7] sm:$0xff]
        %v1316 = vld [vmem:[#allocation2 + $0xaf] sm:$0xff]
        %v1317 = vld [vmem:[#allocation2 + $0xb7] sm:$0xff]
        %v1318 = vld [vmem:[#allocation2 + $0xbf] sm:$0xff]
        %v1319 = vld [vmem:[#allocation2 + $0xc7] sm:$0xff]
        %v1320 = vld [vmem:[#allocation2 + $0xcf] sm:$0xff]
        %v1321 = vld [vmem:[#allocation2 + $0xd7] sm:$0xff]
        %v1322 = vld [vmem:[#allocation2 + $0xdf] sm:$0xff]
        %v1323 = vld [vmem:[#allocation2 + $0xe7] sm:$0xff]
        %v1324 = vld [vmem:[#allocation2 + $0xef] sm:$0xff]
        %v1325 = vld [vmem:[#allocation2 + $0xf7] sm:$0xff]
        %v1326 = vld [vmem:[#allocation2 + $0xff] sm:$0xff]
        %v1327 = vmul.f32 %v1295, %v1167
        %v1328 = vmul.f32 %v1296, %v1168
        %v1329 = vmul.f32 %v1297, %v1169
        %v1330 = vmul.f32 %v1298, %v1170
        %v1331 = vmul.f32 %v1299, %v1171
        %v1332 = vmul.f32 %v1300, %v1172
        %v1333 = vmul.f32 %v1301, %v1173
        %v1334 = vmul.f32 %v1302, %v1174
        %v1335 = vmul.f32 %v1303, %v1175
        %v1336 = vmul.f32 %v1304, %v1176
        %v1337 = vmul.f32 %v1305, %v1177
        %v1338 = vmul.f32 %v1306, %v1178
        %v1339 = vmul.f32 %v1307, %v1179
        %v1340 = vmul.f32 %v1308, %v1180
        %v1341 = vmul.f32 %v1309, %v1181
        %v1342 = vmul.f32 %v1310, %v1182
        %v1343 = vmul.f32 %v1311, %v1183
        %v1344 = vmul.f32 %v1312, %v1184
        %v1345 = vmul.f32 %v1313, %v1185
        %v1346 = vmul.f32 %v1314, %v1186
        %v1347 = vmul.f32 %v1315, %v1187
        %v1348 = vmul.f32 %v1316, %v1188
        %v1349 = vmul.f32 %v1317, %v1189
        %v1350 = vmul.f32 %v1318, %v1190
        %v1351 = vmul.f32 %v1319, %v1191
        %v1352 = vmul.f32 %v1320, %v1192
        %v1353 = vmul.f32 %v1321, %v1193
        %v1354 = vmul.f32 %v1322, %v1194
        %v1355 = vmul.f32 %v1323, %v1195
        %v1356 = vmul.f32 %v1324, %v1196
        %v1357 = vmul.f32 %v1325, %v1197
        %v1358 = vmul.f32 %v1326, %v1198
        %v1359 = vld [vmem:[#allocation2 + $0x8] sm:$0xff]
        %v1360 = vld [vmem:[#allocation2 + $0x10] sm:$0xff]
        %v1361 = vld [vmem:[#allocation2 + $0x18] sm:$0xff]
        %v1362 = vld [vmem:[#allocation2 + $0x20] sm:$0xff]
        %v1363 = vld [vmem:[#allocation2 + $0x28] sm:$0xff]
        %v1364 = vld [vmem:[#allocation2 + $0x30] sm:$0xff]
        %v1365 = vld [vmem:[#allocation2 + $0x38] sm:$0xff]
        %v1366 = vld [vmem:[#allocation2 + $0x40] sm:$0xff]
        %v1367 = vld [vmem:[#allocation2 + $0x48] sm:$0xff]
        %v1368 = vld [vmem:[#allocation2 + $0x50] sm:$0xff]
        %v1369 = vld [vmem:[#allocation2 + $0x58] sm:$0xff]
        %v1370 = vld [vmem:[#allocation2 + $0x60] sm:$0xff]
        %v1371 = vld [vmem:[#allocation2 + $0x68] sm:$0xff]
        %v1372 = vld [vmem:[#allocation2 + $0x70] sm:$0xff]
        %v1373 = vld [vmem:[#allocation2 + $0x78] sm:$0xff]
        %v1374 = vld [vmem:[#allocation2 + $0x80] sm:$0xff]
        %v1375 = vld [vmem:[#allocation2 + $0x88] sm:$0xff]
        %v1376 = vld [vmem:[#allocation2 + $0x90] sm:$0xff]
        %v1377 = vld [vmem:[#allocation2 + $0x98] sm:$0xff]
        %v1378 = vld [vmem:[#allocation2 + $0xa0] sm:$0xff]
        %v1379 = vld [vmem:[#allocation2 + $0xa8] sm:$0xff]
        %v1380 = vld [vmem:[#allocation2 + $0xb0] sm:$0xff]
        %v1381 = vld [vmem:[#allocation2 + $0xb8] sm:$0xff]
        %v1382 = vld [vmem:[#allocation2 + $0xc0] sm:$0xff]
        %v1383 = vld [vmem:[#allocation2 + $0xc8] sm:$0xff]
        %v1384 = vld [vmem:[#allocation2 + $0xd0] sm:$0xff]
        %v1385 = vld [vmem:[#allocation2 + $0xd8] sm:$0xff]
        %v1386 = vld [vmem:[#allocation2 + $0xe0] sm:$0xff]
        %v1387 = vld [vmem:[#allocation2 + $0xe8] sm:$0xff]
        %v1388 = vld [vmem:[#allocation2 + $0xf0] sm:$0xff]
        %v1389 = vld [vmem:[#allocation2 + $0xf8] sm:$0xff]
        %v1390 = vld [vmem:[#allocation2 + $0x100] sm:$0xff]
        %v1391 = vld [vmem:[#allocation2 + $0x9] sm:$0xff]
        %v1392 = vld [vmem:[#allocation2 + $0x11] sm:$0xff]
        %v1393 = vld [vmem:[#allocation2 + $0x19] sm:$0xff]
        %v1394 = vld [vmem:[#allocation2 + $0x21] sm:$0xff]
        %v1395 = vld [vmem:[#allocation2 + $0x29] sm:$0xff]
        %v1396 = vld [vmem:[#allocation2 + $0x31] sm:$0xff]
        %v1397 = vld [vmem:[#allocation2 + $0x39] sm:$0xff]
        %v1398 = vld [vmem:[#allocation2 + $0x41] sm:$0xff]
        %v1399 = vld [vmem:[#allocation2 + $0x49] sm:$0xff]
        %v1400 = vld [vmem:[#allocation2 + $0x51] sm:$0xff]
        %v1401 = vld [vmem:[#allocation2 + $0x59] sm:$0xff]
        %v1402 = vld [vmem:[#allocation2 + $0x61] sm:$0xff]
        %v1403 = vld [vmem:[#allocation2 + $0x69] sm:$0xff]
        %v1404 = vld [vmem:[#allocation2 + $0x71] sm:$0xff]
        %v1405 = vld [vmem:[#allocation2 + $0x79] sm:$0xff]
        %v1406 = vld [vmem:[#allocation2 + $0x81] sm:$0xff]
        %v1407 = vld [vmem:[#allocation2 + $0x89] sm:$0xff]
        %v1408 = vld [vmem:[#allocation2 + $0x91] sm:$0xff]
        %v1409 = vld [vmem:[#allocation2 + $0x99] sm:$0xff]
        %v1410 = vld [vmem:[#allocation2 + $0xa1] sm:$0xff]
        %v1411 = vld [vmem:[#allocation2 + $0xa9] sm:$0xff]
        %v1412 = vld [vmem:[#allocation2 + $0xb1] sm:$0xff]
        %v1413 = vld [vmem:[#allocation2 + $0xb9] sm:$0xff]
        %v1414 = vld [vmem:[#allocation2 + $0xc1] sm:$0xff]
        %v1415 = vld [vmem:[#allocation2 + $0xc9] sm:$0xff]
        %v1416 = vld [vmem:[#allocation2 + $0xd1] sm:$0xff]
        %v1417 = vld [vmem:[#allocation2 + $0xd9] sm:$0xff]
        %v1418 = vld [vmem:[#allocation2 + $0xe1] sm:$0xff]
        %v1419 = vld [vmem:[#allocation2 + $0xe9] sm:$0xff]
        %v1420 = vld [vmem:[#allocation2 + $0xf1] sm:$0xff]
        %v1421 = vld [vmem:[#allocation2 + $0xf9] sm:$0xff]
        %v1422 = vld [vmem:[#allocation2 + $0x101] sm:$0xff]
        %v1423 = vmul.f32 %v1391, %v1263
        %v1424 = vmul.f32 %v1392, %v1264
        %v1425 = vmul.f32 %v1393, %v1265
        %v1426 = vmul.f32 %v1394, %v1266
        %v1427 = vmul.f32 %v1395, %v1267
        %v1428 = vmul.f32 %v1396, %v1268
        %v1429 = vmul.f32 %v1397, %v1269
        %v1430 = vmul.f32 %v1398, %v1270
        %v1431 = vmul.f32 %v1399, %v1271
        %v1432 = vmul.f32 %v1400, %v1272
        %v1433 = vmul.f32 %v1401, %v1273
        %v1434 = vmul.f32 %v1402, %v1274
        %v1435 = vmul.f32 %v1403, %v1275
        %v1436 = vmul.f32 %v1404, %v1276
        %v1437 = vmul.f32 %v1405, %v1277
        %v1438 = vmul.f32 %v1406, %v1278
        %v1439 = vmul.f32 %v1407, %v1279
        %v1440 = vmul.f32 %v1408, %v1280
        %v1441 = vmul.f32 %v1409, %v1281
        %v1442 = vmul.f32 %v1410, %v1282
        %v1443 = vmul.f32 %v1411, %v1283
        %v1444 = vmul.f32 %v1412, %v1284
        %v1445 = vmul.f32 %v1413, %v1285
        %v1446 = vmul.f32 %v1414, %v1286
        %v1447 = vmul.f32 %v1415, %v1287
        %v1448 = vmul.f32 %v1416, %v1288
        %v1449 = vmul.f32 %v1417, %v1289
        %v1450 = vmul.f32 %v1418, %v1290
        %v1451 = vmul.f32 %v1419, %v1291
        %v1452 = vmul.f32 %v1420, %v1292
        %v1453 = vmul.f32 %v1421, %v1293
        %v1454 = vmul.f32 %v1422, %v1294
        %v1455 = vld [vmem:[#allocation2 + $0x107] sm:$0xff]
        %v1456 = vld [vmem:[#allocation2 + $0x10f] sm:$0xff]
        %v1457 = vmul.f32 %v1297, %v1167
        %v1458 = vmul.f32 %v1298, %v1168
        %v1459 = vmul.f32 %v1299, %v1169
        %v1460 = vmul.f32 %v1300, %v1170
        %v1461 = vmul.f32 %v1301, %v1171
        %v1462 = vmul.f32 %v1302, %v1172
        %v1463 = vmul.f32 %v1303, %v1173
        %v1464 = vmul.f32 %v1304, %v1174
        %v1465 = vmul.f32 %v1305, %v1175
        %v1466 = vmul.f32 %v1306, %v1176
        %v1467 = vmul.f32 %v1307, %v1177
        %v1468 = vmul.f32 %v1308, %v1178
        %v1469 = vmul.f32 %v1309, %v1179
        %v1470 = vmul.f32 %v1310, %v1180
        %v1471 = vmul.f32 %v1311, %v1181
        %v1472 = vmul.f32 %v1312, %v1182
        %v1473 = vmul.f32 %v1313, %v1183
        %v1474 = vmul.f32 %v1314, %v1184
        %v1475 = vmul.f32 %v1315, %v1185
        %v1476 = vmul.f32 %v1316, %v1186
        %v1477 = vmul.f32 %v1317, %v1187
        %v1478 = vmul.f32 %v1318, %v1188
        %v1479 = vmul.f32 %v1319, %v1189
        %v1480 = vmul.f32 %v1320, %v1190
        %v1481 = vmul.f32 %v1321, %v1191
        %v1482 = vmul.f32 %v1322, %v1192
        %v1483 = vmul.f32 %v1323, %v1193
        %v1484 = vmul.f32 %v1324, %v1194
        %v1485 = vmul.f32 %v1325, %v1195
        %v1486 = vmul.f32 %v1326, %v1196
        %v1487 = vmul.f32 %v1455, %v1197
        %v1488 = vmul.f32 %v1456, %v1198
        %v1489 = vld [vmem:[#allocation2 + $0x108] sm:$0xff]
        %v1490 = vld [vmem:[#allocation2 + $0x110] sm:$0xff]
        %v1491 = vld [vmem:[#allocation2 + $0x109] sm:$0xff]
        %v1492 = vld [vmem:[#allocation2 + $0x111] sm:$0xff]
        %v1493 = vmul.f32 %v1393, %v1263
        %v1494 = vmul.f32 %v1394, %v1264
        %v1495 = vmul.f32 %v1395, %v1265
        %v1496 = vmul.f32 %v1396, %v1266
        %v1497 = vmul.f32 %v1397, %v1267
        %v1498 = vmul.f32 %v1398, %v1268
        %v1499 = vmul.f32 %v1399, %v1269
        %v1500 = vmul.f32 %v1400, %v1270
        %v1501 = vmul.f32 %v1401, %v1271
        %v1502 = vmul.f32 %v1402, %v1272
        %v1503 = vmul.f32 %v1403, %v1273
        %v1504 = vmul.f32 %v1404, %v1274
        %v1505 = vmul.f32 %v1405, %v1275
        %v1506 = vmul.f32 %v1406, %v1276
        %v1507 = vmul.f32 %v1407, %v1277
        %v1508 = vmul.f32 %v1408, %v1278
        %v1509 = vmul.f32 %v1409, %v1279
        %v1510 = vmul.f32 %v1410, %v1280
        %v1511 = vmul.f32 %v1411, %v1281
        %v1512 = vmul.f32 %v1412, %v1282
        %v1513 = vmul.f32 %v1413, %v1283
        %v1514 = vmul.f32 %v1414, %v1284
        %v1515 = vmul.f32 %v1415, %v1285
        %v1516 = vmul.f32 %v1416, %v1286
        %v1517 = vmul.f32 %v1417, %v1287
        %v1518 = vmul.f32 %v1418, %v1288
        %v1519 = vmul.f32 %v1419, %v1289
        %v1520 = vmul.f32 %v1420, %v1290
        %v1521 = vmul.f32 %v1421, %v1291
        %v1522 = vmul.f32 %v1422, %v1292
        %v1523 = vmul.f32 %v1491, %v1293
        %v1524 = vmul.f32 %v1492, %v1294
        %v1525 = vld [vmem:[#allocation2 + $0x117] sm:$0xff]
        %v1526 = vld [vmem:[#allocation2 + $0x11f] sm:$0xff]
        %v1527 = vmul.f32 %v1299, %v1167
        %v1528 = vmul.f32 %v1300, %v1168
        %v1529 = vmul.f32 %v1301, %v1169
        %v1530 = vmul.f32 %v1302, %v1170
        %v1531 = vmul.f32 %v1303, %v1171
        %v1532 = vmul.f32 %v1304, %v1172
        %v1533 = vmul.f32 %v1305, %v1173
        %v1534 = vmul.f32 %v1306, %v1174
        %v1535 = vmul.f32 %v1307, %v1175
        %v1536 = vmul.f32 %v1308, %v1176
        %v1537 = vmul.f32 %v1309, %v1177
        %v1538 = vmul.f32 %v1310, %v1178
        %v1539 = vmul.f32 %v1311, %v1179
        %v1540 = vmul.f32 %v1312, %v1180
        %v1541 = vmul.f32 %v1313, %v1181
        %v1542 = vmul.f32 %v1314, %v1182
        %v1543 = vmul.f32 %v1315, %v1183
        %v1544 = vmul.f32 %v1316, %v1184
        %v1545 = vmul.f32 %v1317, %v1185
        %v1546 = vmul.f32 %v1318, %v1186
        %v1547 = vmul.f32 %v1319, %v1187
        %v1548 = vmul.f32 %v1320, %v1188
        %v1549 = vmul.f32 %v1321, %v1189
        %v1550 = vmul.f32 %v1322, %v1190
        %v1551 = vmul.f32 %v1323, %v1191
        %v1552 = vmul.f32 %v1324, %v1192
        %v1553 = vmul.f32 %v1325, %v1193
        %v1554 = vmul.f32 %v1326, %v1194
        %v1555 = vmul.f32 %v1455, %v1195
        %v1556 = vmul.f32 %v1456, %v1196
        %v1557 = vmul.f32 %v1525, %v1197
        %v1558 = vmul.f32 %v1526, %v1198
        %v1559 = vld [vmem:[#allocation2 + $0x118] sm:$0xff]
        %v1560 = vld [vmem:[#allocation2 + $0x120] sm:$0xff]
        %v1561 = vld [vmem:[#allocation2 + $0x119] sm:$0xff]
        %v1562 = vld [vmem:[#allocation2 + $0x121] sm:$0xff]
        %v1563 = vmul.f32 %v1395, %v1263
        %v1564 = vmul.f32 %v1396, %v1264
        %v1565 = vmul.f32 %v1397, %v1265
        %v1566 = vmul.f32 %v1398, %v1266
        %v1567 = vmul.f32 %v1399, %v1267
        %v1568 = vmul.f32 %v1400, %v1268
        %v1569 = vmul.f32 %v1401, %v1269
        %v1570 = vmul.f32 %v1402, %v1270
        %v1571 = vmul.f32 %v1403, %v1271
        %v1572 = vmul.f32 %v1404, %v1272
        %v1573 = vmul.f32 %v1405, %v1273
        %v1574 = vmul.f32 %v1406, %v1274
        %v1575 = vmul.f32 %v1407, %v1275
        %v1576 = vmul.f32 %v1408, %v1276
        %v1577 = vmul.f32 %v1409, %v1277
        %v1578 = vmul.f32 %v1410, %v1278
        %v1579 = vmul.f32 %v1411, %v1279
        %v1580 = vmul.f32 %v1412, %v1280
        %v1581 = vmul.f32 %v1413, %v1281
        %v1582 = vmul.f32 %v1414, %v1282
        %v1583 = vmul.f32 %v1415, %v1283
        %v1584 = vmul.f32 %v1416, %v1284
        %v1585 = vmul.f32 %v1417, %v1285
        %v1586 = vmul.f32 %v1418, %v1286
        %v1587 = vmul.f32 %v1419, %v1287
        %v1588 = vmul.f32 %v1420, %v1288
        %v1589 = vmul.f32 %v1421, %v1289
        %v1590 = vmul.f32 %v1422, %v1290
        %v1591 = vmul.f32 %v1491, %v1291
        %v1592 = vmul.f32 %v1492, %v1292
        %v1593 = vmul.f32 %v1561, %v1293
        %v1594 = vmul.f32 %v1562, %v1294
        %1627 = vrot.lane.b32.xlu0 %v1359, 32
        %v1628 = vpop.permute.xlu0 %1627
        %1629 = vrot.lane.b32.xlu0 %v1360, 32
        %v1630 = vpop.permute.xlu0 %1629
        %1631 = vrot.lane.b32.xlu0 %v1361, 32
        %v1632 = vpop.permute.xlu0 %1631
        %1633 = vrot.lane.b32.xlu0 %v1362, 32
        %v1634 = vpop.permute.xlu0 %1633
        %1635 = vrot.lane.b32.xlu0 %v1363, 32
        %v1636 = vpop.permute.xlu0 %1635
        %1637 = vrot.lane.b32.xlu0 %v1364, 32
        %v1638 = vpop.permute.xlu0 %1637
        %1639 = vrot.lane.b32.xlu0 %v1365, 32
        %v1640 = vpop.permute.xlu0 %1639
        %1641 = vrot.lane.b32.xlu0 %v1366, 32
        %v1642 = vpop.permute.xlu0 %1641
        %1643 = vrot.lane.b32.xlu0 %v1367, 32
        %v1644 = vpop.permute.xlu0 %1643
        %1645 = vrot.lane.b32.xlu0 %v1368, 32
        %v1646 = vpop.permute.xlu0 %1645
        %1647 = vrot.lane.b32.xlu0 %v1369, 32
        %v1648 = vpop.permute.xlu0 %1647
        %1649 = vrot.lane.b32.xlu0 %v1370, 32
        %v1650 = vpop.permute.xlu0 %1649
        %1651 = vrot.lane.b32.xlu0 %v1371, 32
        %v1652 = vpop.permute.xlu0 %1651
        %1653 = vrot.lane.b32.xlu0 %v1372, 32
        %v1654 = vpop.permute.xlu0 %1653
        %1655 = vrot.lane.b32.xlu0 %v1373, 32
        %v1656 = vpop.permute.xlu0 %1655
        %1657 = vrot.lane.b32.xlu0 %v1374, 32
        %v1658 = vpop.permute.xlu0 %1657
        %1659 = vrot.lane.b32.xlu0 %v1375, 32
        %v1660 = vpop.permute.xlu0 %1659
        %1661 = vrot.lane.b32.xlu0 %v1376, 32
        %v1662 = vpop.permute.xlu0 %1661
        %1663 = vrot.lane.b32.xlu0 %v1377, 32
        %v1664 = vpop.permute.xlu0 %1663
        %1665 = vrot.lane.b32.xlu0 %v1378, 32
        %v1666 = vpop.permute.xlu0 %1665
        %1667 = vrot.lane.b32.xlu0 %v1379, 32
        %v1668 = vpop.permute.xlu0 %1667
        %1669 = vrot.lane.b32.xlu0 %v1380, 32
        %v1670 = vpop.permute.xlu0 %1669
        %1671 = vrot.lane.b32.xlu0 %v1381, 32
        %v1672 = vpop.permute.xlu0 %1671
        %1673 = vrot.lane.b32.xlu0 %v1382, 32
        %v1674 = vpop.permute.xlu0 %1673
        %1675 = vrot.lane.b32.xlu0 %v1383, 32
        %v1676 = vpop.permute.xlu0 %1675
        %1677 = vrot.lane.b32.xlu0 %v1384, 32
        %v1678 = vpop.permute.xlu0 %1677
        %1679 = vrot.lane.b32.xlu0 %v1385, 32
        %v1680 = vpop.permute.xlu0 %1679
        %1681 = vrot.lane.b32.xlu0 %v1386, 32
        %v1682 = vpop.permute.xlu0 %1681
        %1683 = vrot.lane.b32.xlu0 %v1387, 32
        %v1684 = vpop.permute.xlu0 %1683
        %1685 = vrot.lane.b32.xlu0 %v1388, 32
        %v1686 = vpop.permute.xlu0 %1685
        %1687 = vrot.lane.b32.xlu0 %v1389, 32
        %v1688 = vpop.permute.xlu0 %1687
        %1689 = vrot.lane.b32.xlu0 %v1390, 32
        %v1690 = vpop.permute.xlu0 %1689
        %1755 = vrot.lane.b32.xlu0 %v1423, 64
        %v1756 = vpop.permute.xlu0 %1755
        %1757 = vrot.lane.b32.xlu0 %v1424, 64
        %v1758 = vpop.permute.xlu0 %1757
        %1759 = vrot.lane.b32.xlu0 %v1425, 64
        %v1760 = vpop.permute.xlu0 %1759
        %1761 = vrot.lane.b32.xlu0 %v1426, 64
        %v1762 = vpop.permute.xlu0 %1761
        %1763 = vrot.lane.b32.xlu0 %v1427, 64
        %v1764 = vpop.permute.xlu0 %1763
        %1765 = vrot.lane.b32.xlu0 %v1428, 64
        %v1766 = vpop.permute.xlu0 %1765
        %1767 = vrot.lane.b32.xlu0 %v1429, 64
        %v1768 = vpop.permute.xlu0 %1767
        %1769 = vrot.lane.b32.xlu0 %v1430, 64
        %v1770 = vpop.permute.xlu0 %1769
        %1771 = vrot.lane.b32.xlu0 %v1431, 64
        %v1772 = vpop.permute.xlu0 %1771
        %1773 = vrot.lane.b32.xlu0 %v1432, 64
        %v1774 = vpop.permute.xlu0 %1773
        %1775 = vrot.lane.b32.xlu0 %v1433, 64
        %v1776 = vpop.permute.xlu0 %1775
        %1777 = vrot.lane.b32.xlu0 %v1434, 64
        %v1778 = vpop.permute.xlu0 %1777
        %1779 = vrot.lane.b32.xlu0 %v1435, 64
        %v1780 = vpop.permute.xlu0 %1779
        %1781 = vrot.lane.b32.xlu0 %v1436, 64
        %v1782 = vpop.permute.xlu0 %1781
        %1783 = vrot.lane.b32.xlu0 %v1437, 64
        %v1784 = vpop.permute.xlu0 %1783
        %1785 = vrot.lane.b32.xlu0 %v1438, 64
        %v1786 = vpop.permute.xlu0 %1785
        %1787 = vrot.lane.b32.xlu0 %v1439, 64
        %v1788 = vpop.permute.xlu0 %1787
        %1789 = vrot.lane.b32.xlu0 %v1440, 64
        %v1790 = vpop.permute.xlu0 %1789
        %1791 = vrot.lane.b32.xlu0 %v1441, 64
        %v1792 = vpop.permute.xlu0 %1791
        %1793 = vrot.lane.b32.xlu0 %v1442, 64
        %v1794 = vpop.permute.xlu0 %1793
        %1795 = vrot.lane.b32.xlu0 %v1443, 64
        %v1796 = vpop.permute.xlu0 %1795
        %1797 = vrot.lane.b32.xlu0 %v1444, 64
        %v1798 = vpop.permute.xlu0 %1797
        %1799 = vrot.lane.b32.xlu0 %v1445, 64
        %v1800 = vpop.permute.xlu0 %1799
        %1801 = vrot.lane.b32.xlu0 %v1446, 64
        %v1802 = vpop.permute.xlu0 %1801
        %1803 = vrot.lane.b32.xlu0 %v1447, 64
        %v1804 = vpop.permute.xlu0 %1803
        %1805 = vrot.lane.b32.xlu0 %v1448, 64
        %v1806 = vpop.permute.xlu0 %1805
        %1807 = vrot.lane.b32.xlu0 %v1449, 64
        %v1808 = vpop.permute.xlu0 %1807
        %1809 = vrot.lane.b32.xlu0 %v1450, 64
        %v1810 = vpop.permute.xlu0 %1809
        %1811 = vrot.lane.b32.xlu0 %v1451, 64
        %v1812 = vpop.permute.xlu0 %1811
        %1813 = vrot.lane.b32.xlu0 %v1452, 64
        %v1814 = vpop.permute.xlu0 %1813
        %1815 = vrot.lane.b32.xlu0 %v1453, 64
        %v1816 = vpop.permute.xlu0 %1815
        %1817 = vrot.lane.b32.xlu0 %v1454, 64
        %v1818 = vpop.permute.xlu0 %1817
        %1883 = vrot.lane.b32.xlu0 %v1457, 96
        %v1884 = vpop.permute.xlu0 %1883
        %1885 = vrot.lane.b32.xlu0 %v1458, 96
        %v1886 = vpop.permute.xlu0 %1885
        %1887 = vrot.lane.b32.xlu0 %v1459, 96
        %v1888 = vpop.permute.xlu0 %1887
        %1889 = vrot.lane.b32.xlu0 %v1460, 96
        %v1890 = vpop.permute.xlu0 %1889
        %1891 = vrot.lane.b32.xlu0 %v1461, 96
        %v1892 = vpop.permute.xlu0 %1891
        %1893 = vrot.lane.b32.xlu0 %v1462, 96
        %v1894 = vpop.permute.xlu0 %1893
        %1895 = vrot.lane.b32.xlu0 %v1463, 96
        %v1896 = vpop.permute.xlu0 %1895
        %1897 = vrot.lane.b32.xlu0 %v1464, 96
        %v1898 = vpop.permute.xlu0 %1897
        %1899 = vrot.lane.b32.xlu0 %v1465, 96
        %v1900 = vpop.permute.xlu0 %1899
        %1901 = vrot.lane.b32.xlu0 %v1466, 96
        %v1902 = vpop.permute.xlu0 %1901
        %1903 = vrot.lane.b32.xlu0 %v1467, 96
        %v1904 = vpop.permute.xlu0 %1903
        %1905 = vrot.lane.b32.xlu0 %v1468, 96
        %v1906 = vpop.permute.xlu0 %1905
        %1907 = vrot.lane.b32.xlu0 %v1469, 96
        %v1908 = vpop.permute.xlu0 %1907
        %1909 = vrot.lane.b32.xlu0 %v1470, 96
        %v1910 = vpop.permute.xlu0 %1909
        %1911 = vrot.lane.b32.xlu0 %v1471, 96
        %v1912 = vpop.permute.xlu0 %1911
        %1913 = vrot.lane.b32.xlu0 %v1472, 96
        %v1914 = vpop.permute.xlu0 %1913
        %1915 = vrot.lane.b32.xlu0 %v1473, 96
        %v1916 = vpop.permute.xlu0 %1915
        %1917 = vrot.lane.b32.xlu0 %v1474, 96
        %v1918 = vpop.permute.xlu0 %1917
        %1919 = vrot.lane.b32.xlu0 %v1475, 96
        %v1920 = vpop.permute.xlu0 %1919
        %1921 = vrot.lane.b32.xlu0 %v1476, 96
        %v1922 = vpop.permute.xlu0 %1921
        %1923 = vrot.lane.b32.xlu0 %v1477, 96
        %v1924 = vpop.permute.xlu0 %1923
        %1925 = vrot.lane.b32.xlu0 %v1478, 96
        %v1926 = vpop.permute.xlu0 %1925
        %1927 = vrot.lane.b32.xlu0 %v1479, 96
        %v1928 = vpop.permute.xlu0 %1927
        %1929 = vrot.lane.b32.xlu0 %v1480, 96
        %v1930 = vpop.permute.xlu0 %1929
        %1931 = vrot.lane.b32.xlu0 %v1481, 96
        %v1932 = vpop.permute.xlu0 %1931
        %1933 = vrot.lane.b32.xlu0 %v1482, 96
        %v1934 = vpop.permute.xlu0 %1933
        %1935 = vrot.lane.b32.xlu0 %v1483, 96
        %v1936 = vpop.permute.xlu0 %1935
        %1937 = vrot.lane.b32.xlu0 %v1484, 96
        %v1938 = vpop.permute.xlu0 %1937
        %1939 = vrot.lane.b32.xlu0 %v1485, 96
        %v1940 = vpop.permute.xlu0 %1939
        %1941 = vrot.lane.b32.xlu0 %v1486, 96
        %v1942 = vpop.permute.xlu0 %1941
        %1943 = vrot.lane.b32.xlu0 %v1487, 96
        %v1944 = vpop.permute.xlu0 %1943
        %1945 = vrot.lane.b32.xlu0 %v1488, 96
        %v1946 = vpop.permute.xlu0 %1945
        %2011 = vrot.lane.b32.xlu0 %v1493, 32
        %v2012 = vpop.permute.xlu0 %2011
        %2013 = vrot.lane.b32.xlu0 %v1494, 32
        %v2014 = vpop.permute.xlu0 %2013
        %2015 = vrot.lane.b32.xlu0 %v1495, 32
        %v2016 = vpop.permute.xlu0 %2015
        %2017 = vrot.lane.b32.xlu0 %v1496, 32
        %v2018 = vpop.permute.xlu0 %2017
        %2019 = vrot.lane.b32.xlu0 %v1497, 32
        %v2020 = vpop.permute.xlu0 %2019
        %2021 = vrot.lane.b32.xlu0 %v1498, 32
        %v2022 = vpop.permute.xlu0 %2021
        %2023 = vrot.lane.b32.xlu0 %v1499, 32
        %v2024 = vpop.permute.xlu0 %2023
        %2025 = vrot.lane.b32.xlu0 %v1500, 32
        %v2026 = vpop.permute.xlu0 %2025
        %2027 = vrot.lane.b32.xlu0 %v1501, 32
        %v2028 = vpop.permute.xlu0 %2027
        %2029 = vrot.lane.b32.xlu0 %v1502, 32
        %v2030 = vpop.permute.xlu0 %2029
        %2031 = vrot.lane.b32.xlu0 %v1503, 32
        %v2032 = vpop.permute.xlu0 %2031
        %2033 = vrot.lane.b32.xlu0 %v1504, 32
        %v2034 = vpop.permute.xlu0 %2033
        %2035 = vrot.lane.b32.xlu0 %v1505, 32
        %v2036 = vpop.permute.xlu0 %2035
        %2037 = vrot.lane.b32.xlu0 %v1506, 32
        %v2038 = vpop.permute.xlu0 %2037
        %2039 = vrot.lane.b32.xlu0 %v1507, 32
        %v2040 = vpop.permute.xlu0 %2039
        %2041 = vrot.lane.b32.xlu0 %v1508, 32
        %v2042 = vpop.permute.xlu0 %2041
        %2043 = vrot.lane.b32.xlu0 %v1509, 32
        %v2044 = vpop.permute.xlu0 %2043
        %2045 = vrot.lane.b32.xlu0 %v1510, 32
        %v2046 = vpop.permute.xlu0 %2045
        %2047 = vrot.lane.b32.xlu0 %v1511, 32
        %v2048 = vpop.permute.xlu0 %2047
        %2049 = vrot.lane.b32.xlu0 %v1512, 32
        %v2050 = vpop.permute.xlu0 %2049
        %2051 = vrot.lane.b32.xlu0 %v1513, 32
        %v2052 = vpop.permute.xlu0 %2051
        %2053 = vrot.lane.b32.xlu0 %v1514, 32
        %v2054 = vpop.permute.xlu0 %2053
        %2055 = vrot.lane.b32.xlu0 %v1515, 32
        %v2056 = vpop.permute.xlu0 %2055
        %2057 = vrot.lane.b32.xlu0 %v1516, 32
        %v2058 = vpop.permute.xlu0 %2057
        %2059 = vrot.lane.b32.xlu0 %v1517, 32
        %v2060 = vpop.permute.xlu0 %2059
        %2061 = vrot.lane.b32.xlu0 %v1518, 32
        %v2062 = vpop.permute.xlu0 %2061
        %2063 = vrot.lane.b32.xlu0 %v1519, 32
        %v2064 = vpop.permute.xlu0 %2063
        %2065 = vrot.lane.b32.xlu0 %v1520, 32
        %v2066 = vpop.permute.xlu0 %2065
        %2067 = vrot.lane.b32.xlu0 %v1521, 32
        %v2068 = vpop.permute.xlu0 %2067
        %2069 = vrot.lane.b32.xlu0 %v1522, 32
        %v2070 = vpop.permute.xlu0 %2069
        %2071 = vrot.lane.b32.xlu0 %v1523, 32
        %v2072 = vpop.permute.xlu0 %2071
        %2073 = vrot.lane.b32.xlu0 %v1524, 32
        %v2074 = vpop.permute.xlu0 %2073
        %2139 = vrot.lane.b32.xlu0 %v1527, 64
        %v2140 = vpop.permute.xlu0 %2139
        %2141 = vrot.lane.b32.xlu0 %v1528, 64
        %v2142 = vpop.permute.xlu0 %2141
        %2143 = vrot.lane.b32.xlu0 %v1529, 64
        %v2144 = vpop.permute.xlu0 %2143
        %2145 = vrot.lane.b32.xlu0 %v1530, 64
        %v2146 = vpop.permute.xlu0 %2145
        %2147 = vrot.lane.b32.xlu0 %v1531, 64
        %v2148 = vpop.permute.xlu0 %2147
        %2149 = vrot.lane.b32.xlu0 %v1532, 64
        %v2150 = vpop.permute.xlu0 %2149
        %2151 = vrot.lane.b32.xlu0 %v1533, 64
        %v2152 = vpop.permute.xlu0 %2151
        %2153 = vrot.lane.b32.xlu0 %v1534, 64
        %v2154 = vpop.permute.xlu0 %2153
        %2155 = vrot.lane.b32.xlu0 %v1535, 64
        %v2156 = vpop.permute.xlu0 %2155
        %2157 = vrot.lane.b32.xlu0 %v1536, 64
        %v2158 = vpop.permute.xlu0 %2157
        %2159 = vrot.lane.b32.xlu0 %v1537, 64
        %v2160 = vpop.permute.xlu0 %2159
        %2161 = vrot.lane.b32.xlu0 %v1538, 64
        %v2162 = vpop.permute.xlu0 %2161
        %2163 = vrot.lane.b32.xlu0 %v1539, 64
        %v2164 = vpop.permute.xlu0 %2163
        %2165 = vrot.lane.b32.xlu0 %v1540, 64
        %v2166 = vpop.permute.xlu0 %2165
        %2167 = vrot.lane.b32.xlu0 %v1541, 64
        %v2168 = vpop.permute.xlu0 %2167
        %2169 = vrot.lane.b32.xlu0 %v1542, 64
        %v2170 = vpop.permute.xlu0 %2169
        %2171 = vrot.lane.b32.xlu0 %v1543, 64
        %v2172 = vpop.permute.xlu0 %2171
        %2173 = vrot.lane.b32.xlu0 %v1544, 64
        %v2174 = vpop.permute.xlu0 %2173
        %2175 = vrot.lane.b32.xlu0 %v1545, 64
        %v2176 = vpop.permute.xlu0 %2175
        %2177 = vrot.lane.b32.xlu0 %v1546, 64
        %v2178 = vpop.permute.xlu0 %2177
        %2179 = vrot.lane.b32.xlu0 %v1547, 64
        %v2180 = vpop.permute.xlu0 %2179
        %2181 = vrot.lane.b32.xlu0 %v1548, 64
        %v2182 = vpop.permute.xlu0 %2181
        %2183 = vrot.lane.b32.xlu0 %v1549, 64
        %v2184 = vpop.permute.xlu0 %2183
        %2185 = vrot.lane.b32.xlu0 %v1550, 64
        %v2186 = vpop.permute.xlu0 %2185
        %2187 = vrot.lane.b32.xlu0 %v1551, 64
        %v2188 = vpop.permute.xlu0 %2187
        %2189 = vrot.lane.b32.xlu0 %v1552, 64
        %v2190 = vpop.permute.xlu0 %2189
        %2191 = vrot.lane.b32.xlu0 %v1553, 64
        %v2192 = vpop.permute.xlu0 %2191
        %2193 = vrot.lane.b32.xlu0 %v1554, 64
        %v2194 = vpop.permute.xlu0 %2193
        %2195 = vrot.lane.b32.xlu0 %v1555, 64
        %v2196 = vpop.permute.xlu0 %2195
        %2197 = vrot.lane.b32.xlu0 %v1556, 64
        %v2198 = vpop.permute.xlu0 %2197
        %2199 = vrot.lane.b32.xlu0 %v1557, 64
        %v2200 = vpop.permute.xlu0 %2199
        %2201 = vrot.lane.b32.xlu0 %v1558, 64
        %v2202 = vpop.permute.xlu0 %2201
        %2239 = vrot.lane.b32.xlu0 %v1363, 96
        %v2240 = vpop.permute.xlu0 %2239
        %2241 = vrot.lane.b32.xlu0 %v1364, 96
        %v2242 = vpop.permute.xlu0 %2241
        %2243 = vrot.lane.b32.xlu0 %v1365, 96
        %v2244 = vpop.permute.xlu0 %2243
        %2245 = vrot.lane.b32.xlu0 %v1366, 96
        %v2246 = vpop.permute.xlu0 %2245
        %2247 = vrot.lane.b32.xlu0 %v1367, 96
        %v2248 = vpop.permute.xlu0 %2247
        %2249 = vrot.lane.b32.xlu0 %v1368, 96
        %v2250 = vpop.permute.xlu0 %2249
        %2251 = vrot.lane.b32.xlu0 %v1369, 96
        %v2252 = vpop.permute.xlu0 %2251
        %2253 = vrot.lane.b32.xlu0 %v1370, 96
        %v2254 = vpop.permute.xlu0 %2253
        %2255 = vrot.lane.b32.xlu0 %v1371, 96
        %v2256 = vpop.permute.xlu0 %2255
        %2257 = vrot.lane.b32.xlu0 %v1372, 96
        %v2258 = vpop.permute.xlu0 %2257
        %2259 = vrot.lane.b32.xlu0 %v1373, 96
        %v2260 = vpop.permute.xlu0 %2259
        %2261 = vrot.lane.b32.xlu0 %v1374, 96
        %v2262 = vpop.permute.xlu0 %2261
        %2263 = vrot.lane.b32.xlu0 %v1375, 96
        %v2264 = vpop.permute.xlu0 %2263
        %2265 = vrot.lane.b32.xlu0 %v1376, 96
        %v2266 = vpop.permute.xlu0 %2265
        %2267 = vrot.lane.b32.xlu0 %v1377, 96
        %v2268 = vpop.permute.xlu0 %2267
        %2269 = vrot.lane.b32.xlu0 %v1378, 96
        %v2270 = vpop.permute.xlu0 %2269
        %2271 = vrot.lane.b32.xlu0 %v1379, 96
        %v2272 = vpop.permute.xlu0 %2271
        %2273 = vrot.lane.b32.xlu0 %v1380, 96
        %v2274 = vpop.permute.xlu0 %2273
        %2275 = vrot.lane.b32.xlu0 %v1381, 96
        %v2276 = vpop.permute.xlu0 %2275
        %2277 = vrot.lane.b32.xlu0 %v1382, 96
        %v2278 = vpop.permute.xlu0 %2277
        %2279 = vrot.lane.b32.xlu0 %v1383, 96
        %v2280 = vpop.permute.xlu0 %2279
        %2281 = vrot.lane.b32.xlu0 %v1384, 96
        %v2282 = vpop.permute.xlu0 %2281
        %2283 = vrot.lane.b32.xlu0 %v1385, 96
        %v2284 = vpop.permute.xlu0 %2283
        %2285 = vrot.lane.b32.xlu0 %v1386, 96
        %v2286 = vpop.permute.xlu0 %2285
        %2287 = vrot.lane.b32.xlu0 %v1387, 96
        %v2288 = vpop.permute.xlu0 %2287
        %2289 = vrot.lane.b32.xlu0 %v1388, 96
        %v2290 = vpop.permute.xlu0 %2289
        %2291 = vrot.lane.b32.xlu0 %v1389, 96
        %v2292 = vpop.permute.xlu0 %2291
        %2293 = vrot.lane.b32.xlu0 %v1390, 96
        %v2294 = vpop.permute.xlu0 %2293
        %2295 = vrot.lane.b32.xlu0 %v1489, 96
        %v2296 = vpop.permute.xlu0 %2295
        %2297 = vrot.lane.b32.xlu0 %v1490, 96
        %v2298 = vpop.permute.xlu0 %2297
        %2299 = vrot.lane.b32.xlu0 %v1559, 96
        %v2300 = vpop.permute.xlu0 %2299
        %2301 = vrot.lane.b32.xlu0 %v1560, 96
        %v2302 = vpop.permute.xlu0 %2301
        %v2335 = vsel %vm325, %v1327, %v1628
        %v2336 = vsel %vm325, %v1328, %v1630
        %v2337 = vsel %vm325, %v1329, %v1632
        %v2338 = vsel %vm325, %v1330, %v1634
        %v2339 = vsel %vm325, %v1331, %v1636
        %v2340 = vsel %vm325, %v1332, %v1638
        %v2341 = vsel %vm325, %v1333, %v1640
        %v2342 = vsel %vm325, %v1334, %v1642
        %v2343 = vsel %vm325, %v1335, %v1644
        %v2344 = vsel %vm325, %v1336, %v1646
        %v2345 = vsel %vm325, %v1337, %v1648
        %v2346 = vsel %vm325, %v1338, %v1650
        %v2347 = vsel %vm325, %v1339, %v1652
        %v2348 = vsel %vm325, %v1340, %v1654
        %v2349 = vsel %vm325, %v1341, %v1656
        %v2350 = vsel %vm325, %v1342, %v1658
        %v2351 = vsel %vm325, %v1343, %v1660
        %v2352 = vsel %vm325, %v1344, %v1662
        %v2353 = vsel %vm325, %v1345, %v1664
        %v2354 = vsel %vm325, %v1346, %v1666
        %v2355 = vsel %vm325, %v1347, %v1668
        %v2356 = vsel %vm325, %v1348, %v1670
        %v2357 = vsel %vm325, %v1349, %v1672
        %v2358 = vsel %vm325, %v1350, %v1674
        %v2359 = vsel %vm325, %v1351, %v1676
        %v2360 = vsel %vm325, %v1352, %v1678
        %v2361 = vsel %vm325, %v1353, %v1680
        %v2362 = vsel %vm325, %v1354, %v1682
        %v2363 = vsel %vm325, %v1355, %v1684
        %v2364 = vsel %vm325, %v1356, %v1686
        %v2365 = vsel %vm325, %v1357, %v1688
        %v2366 = vsel %vm325, %v1358, %v1690
        %vm2367 = vcmask 523264
        %v2368 = vsel %vm2367, %v2335, %v1756
        %v2369 = vsel %vm2367, %v2336, %v1758
        %v2370 = vsel %vm2367, %v2337, %v1760
        %v2371 = vsel %vm2367, %v2338, %v1762
        %v2372 = vsel %vm2367, %v2339, %v1764
        %v2373 = vsel %vm2367, %v2340, %v1766
        %v2374 = vsel %vm2367, %v2341, %v1768
        %v2375 = vsel %vm2367, %v2342, %v1770
        %v2376 = vsel %vm2367, %v2343, %v1772
        %v2377 = vsel %vm2367, %v2344, %v1774
        %v2378 = vsel %vm2367, %v2345, %v1776
        %v2379 = vsel %vm2367, %v2346, %v1778
        %v2380 = vsel %vm2367, %v2347, %v1780
        %v2381 = vsel %vm2367, %v2348, %v1782
        %v2382 = vsel %vm2367, %v2349, %v1784
        %v2383 = vsel %vm2367, %v2350, %v1786
        %v2384 = vsel %vm2367, %v2351, %v1788
        %v2385 = vsel %vm2367, %v2352, %v1790
        %v2386 = vsel %vm2367, %v2353, %v1792
        %v2387 = vsel %vm2367, %v2354, %v1794
        %v2388 = vsel %vm2367, %v2355, %v1796
        %v2389 = vsel %vm2367, %v2356, %v1798
        %v2390 = vsel %vm2367, %v2357, %v1800
        %v2391 = vsel %vm2367, %v2358, %v1802
        %v2392 = vsel %vm2367, %v2359, %v1804
        %v2393 = vsel %vm2367, %v2360, %v1806
        %v2394 = vsel %vm2367, %v2361, %v1808
        %v2395 = vsel %vm2367, %v2362, %v1810
        %v2396 = vsel %vm2367, %v2363, %v1812
        %v2397 = vsel %vm2367, %v2364, %v1814
        %v2398 = vsel %vm2367, %v2365, %v1816
        %v2399 = vsel %vm2367, %v2366, %v1818
        %vm2400 = vcmask 785408
        %v2401 = vsel %vm2400, %v2368, %v1884
        %v2402 = vsel %vm2400, %v2369, %v1886
        %v2403 = vsel %vm2400, %v2370, %v1888
        %v2404 = vsel %vm2400, %v2371, %v1890
        %v2405 = vsel %vm2400, %v2372, %v1892
        %v2406 = vsel %vm2400, %v2373, %v1894
        %v2407 = vsel %vm2400, %v2374, %v1896
        %v2408 = vsel %vm2400, %v2375, %v1898
        %v2409 = vsel %vm2400, %v2376, %v1900
        %v2410 = vsel %vm2400, %v2377, %v1902
        %v2411 = vsel %vm2400, %v2378, %v1904
        %v2412 = vsel %vm2400, %v2379, %v1906
        %v2413 = vsel %vm2400, %v2380, %v1908
        %v2414 = vsel %vm2400, %v2381, %v1910
        %v2415 = vsel %vm2400, %v2382, %v1912
        %v2416 = vsel %vm2400, %v2383, %v1914
        %v2417 = vsel %vm2400, %v2384, %v1916
        %v2418 = vsel %vm2400, %v2385, %v1918
        %v2419 = vsel %vm2400, %v2386, %v1920
        %v2420 = vsel %vm2400, %v2387, %v1922
        %v2421 = vsel %vm2400, %v2388, %v1924
        %v2422 = vsel %vm2400, %v2389, %v1926
        %v2423 = vsel %vm2400, %v2390, %v1928
        %v2424 = vsel %vm2400, %v2391, %v1930
        %v2425 = vsel %vm2400, %v2392, %v1932
        %v2426 = vsel %vm2400, %v2393, %v1934
        %v2427 = vsel %vm2400, %v2394, %v1936
        %v2428 = vsel %vm2400, %v2395, %v1938
        %v2429 = vsel %vm2400, %v2396, %v1940
        %v2430 = vsel %vm2400, %v2397, %v1942
        %v2431 = vsel %vm2400, %v2398, %v1944
        %v2432 = vsel %vm2400, %v2399, %v1946
        %v2433 = vsel %vm325, %v1361, %v2012
        %v2434 = vsel %vm325, %v1362, %v2014
        %v2435 = vsel %vm325, %v1363, %v2016
        %v2436 = vsel %vm325, %v1364, %v2018
        %v2437 = vsel %vm325, %v1365, %v2020
        %v2438 = vsel %vm325, %v1366, %v2022
        %v2439 = vsel %vm325, %v1367, %v2024
        %v2440 = vsel %vm325, %v1368, %v2026
        %v2441 = vsel %vm325, %v1369, %v2028
        %v2442 = vsel %vm325, %v1370, %v2030
        %v2443 = vsel %vm325, %v1371, %v2032
        %v2444 = vsel %vm325, %v1372, %v2034
        %v2445 = vsel %vm325, %v1373, %v2036
        %v2446 = vsel %vm325, %v1374, %v2038
        %v2447 = vsel %vm325, %v1375, %v2040
        %v2448 = vsel %vm325, %v1376, %v2042
        %v2449 = vsel %vm325, %v1377, %v2044
        %v2450 = vsel %vm325, %v1378, %v2046
        %v2451 = vsel %vm325, %v1379, %v2048
        %v2452 = vsel %vm325, %v1380, %v2050
        %v2453 = vsel %vm325, %v1381, %v2052
        %v2454 = vsel %vm325, %v1382, %v2054
        %v2455 = vsel %vm325, %v1383, %v2056
        %v2456 = vsel %vm325, %v1384, %v2058
        %v2457 = vsel %vm325, %v1385, %v2060
        %v2458 = vsel %vm325, %v1386, %v2062
        %v2459 = vsel %vm325, %v1387, %v2064
        %v2460 = vsel %vm325, %v1388, %v2066
        %v2461 = vsel %vm325, %v1389, %v2068
        %v2462 = vsel %vm325, %v1390, %v2070
        %v2463 = vsel %vm325, %v1489, %v2072
        %v2464 = vsel %vm325, %v1490, %v2074
        %v2465 = vsel %vm2367, %v2433, %v2140
        %v2466 = vsel %vm2367, %v2434, %v2142
        %v2467 = vsel %vm2367, %v2435, %v2144
        %v2468 = vsel %vm2367, %v2436, %v2146
        %v2469 = vsel %vm2367, %v2437, %v2148
        %v2470 = vsel %vm2367, %v2438, %v2150
        %v2471 = vsel %vm2367, %v2439, %v2152
        %v2472 = vsel %vm2367, %v2440, %v2154
        %v2473 = vsel %vm2367, %v2441, %v2156
        %v2474 = vsel %vm2367, %v2442, %v2158
        %v2475 = vsel %vm2367, %v2443, %v2160
        %v2476 = vsel %vm2367, %v2444, %v2162
        %v2477 = vsel %vm2367, %v2445, %v2164
        %v2478 = vsel %vm2367, %v2446, %v2166
        %v2479 = vsel %vm2367, %v2447, %v2168
        %v2480 = vsel %vm2367, %v2448, %v2170
        %v2481 = vsel %vm2367, %v2449, %v2172
        %v2482 = vsel %vm2367, %v2450, %v2174
        %v2483 = vsel %vm2367, %v2451, %v2176
        %v2484 = vsel %vm2367, %v2452, %v2178
        %v2485 = vsel %vm2367, %v2453, %v2180
        %v2486 = vsel %vm2367, %v2454, %v2182
        %v2487 = vsel %vm2367, %v2455, %v2184
        %v2488 = vsel %vm2367, %v2456, %v2186
        %v2489 = vsel %vm2367, %v2457, %v2188
        %v2490 = vsel %vm2367, %v2458, %v2190
        %v2491 = vsel %vm2367, %v2459, %v2192
        %v2492 = vsel %vm2367, %v2460, %v2194
        %v2493 = vsel %vm2367, %v2461, %v2196
        %v2494 = vsel %vm2367, %v2462, %v2198
        %v2495 = vsel %vm2367, %v2463, %v2200
        %v2496 = vsel %vm2367, %v2464, %v2202
        %v2497 = vsel %vm2400, %v2465, %v2240
        %v2498 = vsel %vm2400, %v2466, %v2242
        %v2499 = vsel %vm2400, %v2467, %v2244
        %v2500 = vsel %vm2400, %v2468, %v2246
        %v2501 = vsel %vm2400, %v2469, %v2248
        %v2502 = vsel %vm2400, %v2470, %v2250
        %v2503 = vsel %vm2400, %v2471, %v2252
        %v2504 = vsel %vm2400, %v2472, %v2254
        %v2505 = vsel %vm2400, %v2473, %v2256
        %v2506 = vsel %vm2400, %v2474, %v2258
        %v2507 = vsel %vm2400, %v2475, %v2260
        %v2508 = vsel %vm2400, %v2476, %v2262
        %v2509 = vsel %vm2400, %v2477, %v2264
        %v2510 = vsel %vm2400, %v2478, %v2266
        %v2511 = vsel %vm2400, %v2479, %v2268
        %v2512 = vsel %vm2400, %v2480, %v2270
        %v2513 = vsel %vm2400, %v2481, %v2272
        %v2514 = vsel %vm2400, %v2482, %v2274
        %v2515 = vsel %vm2400, %v2483, %v2276
        %v2516 = vsel %vm2400, %v2484, %v2278
        %v2517 = vsel %vm2400, %v2485, %v2280
        %v2518 = vsel %vm2400, %v2486, %v2282
        %v2519 = vsel %vm2400, %v2487, %v2284
        %v2520 = vsel %vm2400, %v2488, %v2286
        %v2521 = vsel %vm2400, %v2489, %v2288
        %v2522 = vsel %vm2400, %v2490, %v2290
        %v2523 = vsel %vm2400, %v2491, %v2292
        %v2524 = vsel %vm2400, %v2492, %v2294
        %v2525 = vsel %vm2400, %v2493, %v2296
        %v2526 = vsel %vm2400, %v2494, %v2298
        %v2527 = vsel %vm2400, %v2495, %v2300
        %v2528 = vsel %vm2400, %v2496, %v2302
        %v2529 = vld [vmem:[%s3] sm:$0xff]
        %v2530 = vld [vmem:[%s3 + $0x8] sm:$0xff]
        %v2531 = vld [vmem:[%s3 + $0x10] sm:$0xff]
        %v2532 = vld [vmem:[%s3 + $0x18] sm:$0xff]
        %v2533 = vld [vmem:[%s3 + $0x20] sm:$0xff]
        %v2534 = vld [vmem:[%s3 + $0x28] sm:$0xff]
        %v2535 = vld [vmem:[%s3 + $0x30] sm:$0xff]
        %v2536 = vld [vmem:[%s3 + $0x38] sm:$0xff]
        %v2537 = vld [vmem:[%s3 + $0x40] sm:$0xff]
        %v2538 = vld [vmem:[%s3 + $0x48] sm:$0xff]
        %v2539 = vld [vmem:[%s3 + $0x50] sm:$0xff]
        %v2540 = vld [vmem:[%s3 + $0x58] sm:$0xff]
        %v2541 = vld [vmem:[%s3 + $0x60] sm:$0xff]
        %v2542 = vld [vmem:[%s3 + $0x68] sm:$0xff]
        %v2543 = vld [vmem:[%s3 + $0x70] sm:$0xff]
        %v2544 = vld [vmem:[%s3 + $0x78] sm:$0xff]
        %v2545 = vld [vmem:[%s3 + $0x80] sm:$0xff]
        %v2546 = vld [vmem:[%s3 + $0x88] sm:$0xff]
        %v2547 = vld [vmem:[%s3 + $0x90] sm:$0xff]
        %v2548 = vld [vmem:[%s3 + $0x98] sm:$0xff]
        %v2549 = vld [vmem:[%s3 + $0xa0] sm:$0xff]
        %v2550 = vld [vmem:[%s3 + $0xa8] sm:$0xff]
        %v2551 = vld [vmem:[%s3 + $0xb0] sm:$0xff]
        %v2552 = vld [vmem:[%s3 + $0xb8] sm:$0xff]
        %v2553 = vld [vmem:[%s3 + $0xc0] sm:$0xff]
        %v2554 = vld [vmem:[%s3 + $0xc8] sm:$0xff]
        %v2555 = vld [vmem:[%s3 + $0xd0] sm:$0xff]
        %v2556 = vld [vmem:[%s3 + $0xd8] sm:$0xff]
        %v2557 = vld [vmem:[%s3 + $0xe0] sm:$0xff]
        %v2558 = vld [vmem:[%s3 + $0xe8] sm:$0xff]
        %v2559 = vld [vmem:[%s3 + $0xf0] sm:$0xff]
        %v2560 = vld [vmem:[%s3 + $0xf8] sm:$0xff]
        %v2561 = vld [vmem:[%s3 + $0x100] sm:$0xff]
        %v2562 = vld [vmem:[%s3 + $0x108] sm:$0xff]
        %v2563 = vld [vmem:[%s3 + $0x110] sm:$0xff]
        %v2564 = vld [vmem:[%s3 + $0x118] sm:$0xff]
        %v2565 = vld [vmem:[%s4] sm:$0x1]
        %v2567 = vlaneseq
        %v2568 = vshrl.u32 %v2567, 7
        %v2569 = vsub.s32 0, %v2568
        %v2570 = vrot.slane %v2565, %v2569
        %v2573 = vsel %vm325, %v1563, 0
        %v2576 = vsel %vm325, %v1564, 0
        %v2579 = vsel %vm325, %v1565, 0
        %v2582 = vsel %vm325, %v1566, 0
        %v2585 = vsel %vm325, %v1567, 0
        %v2588 = vsel %vm325, %v1568, 0
        %v2591 = vsel %vm325, %v1569, 0
        %v2594 = vsel %vm325, %v1570, 0
        %v2597 = vsel %vm325, %v1571, 0
        %v2600 = vsel %vm325, %v1572, 0
        %v2603 = vsel %vm325, %v1573, 0
        %v2606 = vsel %vm325, %v1574, 0
        %v2609 = vsel %vm325, %v1575, 0
        %v2612 = vsel %vm325, %v1576, 0
        %v2615 = vsel %vm325, %v1577, 0
        %v2618 = vsel %vm325, %v1578, 0
        %v2621 = vsel %vm325, %v1579, 0
        %v2624 = vsel %vm325, %v1580, 0
        %v2627 = vsel %vm325, %v1581, 0
        %v2630 = vsel %vm325, %v1582, 0
        %v2633 = vsel %vm325, %v1583, 0
        %v2636 = vsel %vm325, %v1584, 0
        %v2639 = vsel %vm325, %v1585, 0
        %v2642 = vsel %vm325, %v1586, 0
        %v2645 = vsel %vm325, %v1587, 0
        %v2648 = vsel %vm325, %v1588, 0
        %v2651 = vsel %vm325, %v1589, 0
        %v2654 = vsel %vm325, %v1590, 0
        %v2657 = vsel %vm325, %v1591, 0
        %v2660 = vsel %vm325, %v1592, 0
        %v2663 = vsel %vm325, %v1593, 0
        %v2666 = vsel %vm325, %v1594, 0
        %2668 = vmatprep.subr.mxu0 0.0
        %2669 = vmatpush1.msra.mxu0 %v2544
        %2670 = vmatprep.subr.mxu0 0.0
        %2671 = vmatpush1.msra.mxu0 %v2543
        %2672 = vmatprep.subr.mxu0 0.0
        %2673 = vmatpush1.msra.mxu0 %v2542
        %2674 = vmatprep.subr.mxu0 0.0
        %2675 = vmatpush1.msra.mxu0 %v2541
        %2676 = vmatprep.subr.mxu0 0.0
        %2677 = vmatpush1.msra.mxu0 %v2540
        %2678 = vmatprep.subr.mxu0 0.0
        %2679 = vmatpush1.msra.mxu0 %v2539
        %2680 = vmatprep.subr.mxu0 0.0
        %2681 = vmatpush1.msra.mxu0 %v2538
        %2682 = vmatprep.subr.mxu0 0.0
        %2683 = vmatpush1.msra.mxu0 %v2537
        %2684 = vmatprep.subr.mxu0 0.0
        %2685 = vmatpush1.msra.mxu0 %v2536
        %2686 = vmatprep.subr.mxu0 0.0
        %2687 = vmatpush1.msra.mxu0 %v2535
        %2688 = vmatprep.subr.mxu0 0.0
        %2689 = vmatpush1.msra.mxu0 %v2534
        %2690 = vmatprep.subr.mxu0 0.0
        %2691 = vmatpush1.msra.mxu0 %v2533
        %2692 = vmatprep.subr.mxu0 0.0
        %2693 = vmatpush1.msra.mxu0 %v2532
        %2694 = vmatprep.subr.mxu0 0.0
        %2695 = vmatpush1.msra.mxu0 %v2531
        %2696 = vmatprep.subr.mxu0 0.0
        %2697 = vmatpush1.msra.mxu0 %v2530
        %2698 = vmatprep.subr.mxu0 0.0
        %2699 = vmatpush1.msra.mxu0 %v2529
        %2700 = vmatprep.subr.mxu0 0.0
        %2701 = vmatpush2.msra.mxu0 %v2560
        %2702 = vmatprep.subr.mxu0 0.0
        %2703 = vmatpush2.msra.mxu0 %v2559
        %2704 = vmatprep.subr.mxu0 0.0
        %2705 = vmatpush2.msra.mxu0 %v2558
        %2706 = vmatprep.subr.mxu0 0.0
        %2707 = vmatpush2.msra.mxu0 %v2557
        %2708 = vmatprep.subr.mxu0 0.0
        %2709 = vmatpush2.msra.mxu0 %v2556
        %2710 = vmatprep.subr.mxu0 0.0
        %2711 = vmatpush2.msra.mxu0 %v2555
        %2712 = vmatprep.subr.mxu0 0.0
        %2713 = vmatpush2.msra.mxu0 %v2554
        %2714 = vmatprep.subr.mxu0 0.0
        %2715 = vmatpush2.msra.mxu0 %v2553
        %2716 = vmatprep.subr.mxu0 0.0
        %2717 = vmatpush2.msra.mxu0 %v2552
        %2718 = vmatprep.subr.mxu0 0.0
        %2719 = vmatpush2.msra.mxu0 %v2551
        %2720 = vmatprep.subr.mxu0 0.0
        %2721 = vmatpush2.msra.mxu0 %v2550
        %2722 = vmatprep.subr.mxu0 0.0
        %2723 = vmatpush2.msra.mxu0 %v2549
        %2724 = vmatprep.subr.mxu0 0.0
        %2725 = vmatpush2.msra.mxu0 %v2548
        %2726 = vmatprep.subr.mxu0 0.0
        %2727 = vmatpush2.msra.mxu0 %v2547
        %2728 = vmatprep.subr.mxu0 0.0
        %2729 = vmatpush2.msra.mxu0 %v2546
        %2730 = vmatprep.subr.mxu0 0.0
        %2731 = vmatpush2.msra.mxu0 %v2545
        %2732 = vmatprep.mubr.f32.mxu0 %v2497
        %2733 = vmatmul.mubr.f32.gmra.mxu0 %v2401
        %v2734 = vpop.f32.mrf.mxu0
        %v2735 = vadd.f32 %v2570, %v2734
        %v2736 = vpop.f32.mrf.mxu0
        %2737 = vmatprep.mubr.f32.mxu0 %v2498
        %2738 = vmatmul.mubr.f32.gmra.mxu0 %v2402
        %v2739 = vpop.f32.mrf.mxu0
        %v2740 = vadd.f32 %v2570, %v2739
        %v2741 = vpop.f32.mrf.mxu0
        %2742 = vmatprep.mubr.f32.mxu0 %v2499
        %2743 = vmatmul.mubr.f32.gmra.mxu0 %v2403
        %v2744 = vpop.f32.mrf.mxu0
        %v2745 = vadd.f32 %v2570, %v2744
        %v2746 = vpop.f32.mrf.mxu0
        %2747 = vmatprep.mubr.f32.mxu0 %v2500
        %2748 = vmatmul.mubr.f32.gmra.mxu0 %v2404
        %v2749 = vpop.f32.mrf.mxu0
        %v2750 = vadd.f32 %v2570, %v2749
        %v2751 = vpop.f32.mrf.mxu0
        %2752 = vmatprep.mubr.f32.mxu0 %v2501
        %2753 = vmatmul.mubr.f32.gmra.mxu0 %v2405
        %v2754 = vpop.f32.mrf.mxu0
        %v2755 = vadd.f32 %v2570, %v2754
        %v2756 = vpop.f32.mrf.mxu0
        %2757 = vmatprep.mubr.f32.mxu0 %v2502
        %2758 = vmatmul.mubr.f32.gmra.mxu0 %v2406
        %v2759 = vpop.f32.mrf.mxu0
        %v2760 = vadd.f32 %v2570, %v2759
        %v2761 = vpop.f32.mrf.mxu0
        %2762 = vmatprep.mubr.f32.mxu0 %v2503
        %2763 = vmatmul.mubr.f32.gmra.mxu0 %v2407
        %v2764 = vpop.f32.mrf.mxu0
        %v2765 = vadd.f32 %v2570, %v2764
        %v2766 = vpop.f32.mrf.mxu0
        %2767 = vmatprep.mubr.f32.mxu0 %v2504
        %2768 = vmatmul.mubr.f32.gmra.mxu0 %v2408
        %v2769 = vpop.f32.mrf.mxu0
        %v2770 = vadd.f32 %v2570, %v2769
        %v2771 = vpop.f32.mrf.mxu0
        %2772 = vmatprep.mubr.f32.mxu0 %v2505
        %2773 = vmatmul.mubr.f32.gmra.mxu0 %v2409
        %v2774 = vpop.f32.mrf.mxu0
        %v2775 = vadd.f32 %v2570, %v2774
        %v2776 = vpop.f32.mrf.mxu0
        %2777 = vmatprep.mubr.f32.mxu0 %v2506
        %2778 = vmatmul.mubr.f32.gmra.mxu0 %v2410
        %v2779 = vpop.f32.mrf.mxu0
        %v2780 = vadd.f32 %v2570, %v2779
        %v2781 = vpop.f32.mrf.mxu0
        %2782 = vmatprep.mubr.f32.mxu0 %v2507
        %2783 = vmatmul.mubr.f32.gmra.mxu0 %v2411
        %v2784 = vpop.f32.mrf.mxu0
        %v2785 = vadd.f32 %v2570, %v2784
        %v2786 = vpop.f32.mrf.mxu0
        %2787 = vmatprep.mubr.f32.mxu0 %v2508
        %2788 = vmatmul.mubr.f32.gmra.mxu0 %v2412
        %v2789 = vpop.f32.mrf.mxu0
        %v2790 = vadd.f32 %v2570, %v2789
        %v2791 = vpop.f32.mrf.mxu0
        %2792 = vmatprep.mubr.f32.mxu0 %v2509
        %2793 = vmatmul.mubr.f32.gmra.mxu0 %v2413
        %v2794 = vpop.f32.mrf.mxu0
        %v2795 = vadd.f32 %v2570, %v2794
        %v2796 = vpop.f32.mrf.mxu0
        %2797 = vmatprep.mubr.f32.mxu0 %v2510
        %2798 = vmatmul.mubr.f32.gmra.mxu0 %v2414
        %v2799 = vpop.f32.mrf.mxu0
        %v2800 = vadd.f32 %v2570, %v2799
        %v2801 = vpop.f32.mrf.mxu0
        %2802 = vmatprep.mubr.f32.mxu0 %v2511
        %2803 = vmatmul.mubr.f32.gmra.mxu0 %v2415
        %v2804 = vpop.f32.mrf.mxu0
        %v2805 = vadd.f32 %v2570, %v2804
        %v2806 = vpop.f32.mrf.mxu0
        %2807 = vmatprep.mubr.f32.mxu0 %v2512
        %2808 = vmatmul.mubr.f32.gmra.mxu0 %v2416
        %v2809 = vpop.f32.mrf.mxu0
        %v2810 = vadd.f32 %v2570, %v2809
        %v2811 = vpop.f32.mrf.mxu0
        %2812 = vmatprep.mubr.f32.mxu0 %v2513
        %2813 = vmatmul.mubr.f32.gmra.mxu0 %v2417
        %v2814 = vpop.f32.mrf.mxu0
        %v2815 = vadd.f32 %v2570, %v2814
        %v2816 = vpop.f32.mrf.mxu0
        %2817 = vmatprep.mubr.f32.mxu0 %v2514
        %2818 = vmatmul.mubr.f32.gmra.mxu0 %v2418
        %v2819 = vpop.f32.mrf.mxu0
        %v2820 = vadd.f32 %v2570, %v2819
        %v2821 = vpop.f32.mrf.mxu0
        %2822 = vmatprep.mubr.f32.mxu0 %v2515
        %2823 = vmatmul.mubr.f32.gmra.mxu0 %v2419
        %v2824 = vpop.f32.mrf.mxu0
        %v2825 = vadd.f32 %v2570, %v2824
        %v2826 = vpop.f32.mrf.mxu0
        %2827 = vmatprep.mubr.f32.mxu0 %v2516
        %2828 = vmatmul.mubr.f32.gmra.mxu0 %v2420
        %v2829 = vpop.f32.mrf.mxu0
        %v2830 = vadd.f32 %v2570, %v2829
        %v2831 = vpop.f32.mrf.mxu0
        %2832 = vmatprep.mubr.f32.mxu0 %v2517
        %2833 = vmatmul.mubr.f32.gmra.mxu0 %v2421
        %v2834 = vpop.f32.mrf.mxu0
        %v2835 = vadd.f32 %v2570, %v2834
        %v2836 = vpop.f32.mrf.mxu0
        %2837 = vmatprep.mubr.f32.mxu0 %v2518
        %2838 = vmatmul.mubr.f32.gmra.mxu0 %v2422
        %v2839 = vpop.f32.mrf.mxu0
        %v2840 = vadd.f32 %v2570, %v2839
        %v2841 = vpop.f32.mrf.mxu0
        %2842 = vmatprep.mubr.f32.mxu0 %v2519
        %2843 = vmatmul.mubr.f32.gmra.mxu0 %v2423
        %v2844 = vpop.f32.mrf.mxu0
        %v2845 = vadd.f32 %v2570, %v2844
        %v2846 = vpop.f32.mrf.mxu0
        %2847 = vmatprep.mubr.f32.mxu0 %v2520
        %2848 = vmatmul.mubr.f32.gmra.mxu0 %v2424
        %v2849 = vpop.f32.mrf.mxu0
        %v2850 = vadd.f32 %v2570, %v2849
        %v2851 = vpop.f32.mrf.mxu0
        %2852 = vmatprep.mubr.f32.mxu0 %v2521
        %2853 = vmatmul.mubr.f32.gmra.mxu0 %v2425
        %v2854 = vpop.f32.mrf.mxu0
        %v2855 = vadd.f32 %v2570, %v2854
        %v2856 = vpop.f32.mrf.mxu0
        %2857 = vmatprep.mubr.f32.mxu0 %v2522
        %2858 = vmatmul.mubr.f32.gmra.mxu0 %v2426
        %v2859 = vpop.f32.mrf.mxu0
        %v2860 = vadd.f32 %v2570, %v2859
        %v2861 = vpop.f32.mrf.mxu0
        %2862 = vmatprep.mubr.f32.mxu0 %v2523
        %2863 = vmatmul.mubr.f32.gmra.mxu0 %v2427
        %v2864 = vpop.f32.mrf.mxu0
        %v2865 = vadd.f32 %v2570, %v2864
        %v2866 = vpop.f32.mrf.mxu0
        %2867 = vmatprep.mubr.f32.mxu0 %v2524
        %2868 = vmatmul.mubr.f32.gmra.mxu0 %v2428
        %v2869 = vpop.f32.mrf.mxu0
        %v2870 = vadd.f32 %v2570, %v2869
        %v2871 = vpop.f32.mrf.mxu0
        %2872 = vmatprep.mubr.f32.mxu0 %v2525
        %2873 = vmatmul.mubr.f32.gmra.mxu0 %v2429
        %v2874 = vpop.f32.mrf.mxu0
        %v2875 = vadd.f32 %v2570, %v2874
        %v2876 = vpop.f32.mrf.mxu0
        %2877 = vmatprep.mubr.f32.mxu0 %v2526
        %2878 = vmatmul.mubr.f32.gmra.mxu0 %v2430
        %v2879 = vpop.f32.mrf.mxu0
        %v2880 = vadd.f32 %v2570, %v2879
        %v2881 = vpop.f32.mrf.mxu0
        %2882 = vmatprep.mubr.f32.mxu0 %v2527
        %2883 = vmatmul.mubr.f32.gmra.mxu0 %v2431
        %v2884 = vpop.f32.mrf.mxu0
        %v2885 = vadd.f32 %v2570, %v2884
        %v2886 = vpop.f32.mrf.mxu0
        %2887 = vmatprep.mubr.f32.mxu0 %v2528
        %2888 = vmatmul.mubr.f32.gmra.mxu0 %v2432
        %v2889 = vpop.f32.mrf.mxu0
        %v2890 = vadd.f32 %v2570, %v2889
        %v2891 = vpop.f32.mrf.mxu0
        %2892 = vdwg.mxu0
        %2893 = vmatprep.subr.mxu0 0.0
        %2894 = vmatpush1.msra.mxu0 0.0
        %2895 = vmatprep.subr.mxu0 0.0
        %2896 = vmatpush1.msra.mxu0 0.0
        %2897 = vmatprep.subr.mxu0 0.0
        %2898 = vmatpush1.msra.mxu0 0.0
        %2899 = vmatprep.subr.mxu0 0.0
        %2900 = vmatpush1.msra.mxu0 0.0
        %2901 = vmatprep.subr.mxu0 0.0
        %2902 = vmatpush1.msra.mxu0 0.0
        %2903 = vmatprep.subr.mxu0 0.0
        %2904 = vmatpush1.msra.mxu0 0.0
        %2905 = vmatprep.subr.mxu0 0.0
        %2906 = vmatpush1.msra.mxu0 0.0
        %2907 = vmatprep.subr.mxu0 0.0
        %2908 = vmatpush1.msra.mxu0 0.0
        %2909 = vmatprep.subr.mxu0 0.0
        %2910 = vmatpush1.msra.mxu0 0.0
        %2911 = vmatprep.subr.mxu0 0.0
        %2912 = vmatpush1.msra.mxu0 0.0
        %2913 = vmatprep.subr.mxu0 0.0
        %2914 = vmatpush1.msra.mxu0 0.0
        %2915 = vmatprep.subr.mxu0 0.0
        %2916 = vmatpush1.msra.mxu0 0.0
        %2917 = vmatprep.subr.mxu0 0.0
        %2918 = vmatpush1.msra.mxu0 %v2564
        %2919 = vmatprep.subr.mxu0 0.0
        %2920 = vmatpush1.msra.mxu0 %v2563
        %2921 = vmatprep.subr.mxu0 0.0
        %2922 = vmatpush1.msra.mxu0 %v2562
        %2923 = vmatprep.subr.mxu0 0.0
        %2924 = vmatpush1.msra.mxu0 %v2561
        %2925 = vmatprep.subr.mxu0 0.0
        %2926 = vmatpush2.msra.mxu0 0.0
        %2927 = vmatprep.subr.mxu0 0.0
        %2928 = vmatpush2.msra.mxu0 0.0
        %2929 = vmatprep.subr.mxu0 0.0
        %2930 = vmatpush2.msra.mxu0 0.0
        %2931 = vmatprep.subr.mxu0 0.0
        %2932 = vmatpush2.msra.mxu0 0.0
        %2933 = vmatprep.subr.mxu0 0.0
        %2934 = vmatpush2.msra.mxu0 0.0
        %2935 = vmatprep.subr.mxu0 0.0
        %2936 = vmatpush2.msra.mxu0 0.0
        %2937 = vmatprep.subr.mxu0 0.0
        %2938 = vmatpush2.msra.mxu0 0.0
        %2939 = vmatprep.subr.mxu0 0.0
        %2940 = vmatpush2.msra.mxu0 0.0
        %2941 = vmatprep.subr.mxu0 0.0
        %2942 = vmatpush2.msra.mxu0 0.0
        %2943 = vmatprep.subr.mxu0 0.0
        %2944 = vmatpush2.msra.mxu0 0.0
        %2945 = vmatprep.subr.mxu0 0.0
        %2946 = vmatpush2.msra.mxu0 0.0
        %2947 = vmatprep.subr.mxu0 0.0
        %2948 = vmatpush2.msra.mxu0 0.0
        %2949 = vmatprep.subr.mxu0 0.0
        %2950 = vmatpush2.msra.mxu0 0.0
        %2951 = vmatprep.subr.mxu0 0.0
        %2952 = vmatpush2.msra.mxu0 0.0
        %2953 = vmatprep.subr.mxu0 0.0
        %2954 = vmatpush2.msra.mxu0 0.0
        %2955 = vmatprep.subr.mxu0 0.0
        %2956 = vmatpush2.msra.mxu0 0.0
        %2957 = vmatprep.mubr.f32.mxu0 0.0
        %2958 = vmatmul.mubr.f32.gmra.mxu0 %v2573
        %v2959 = vpop.f32.mrf.mxu0
        %v2960 = vadd.f32 %v2735, %v2959
        %v2961 = vpop.f32.mrf.mxu0
        %2962 = vmatprep.mubr.f32.mxu0 0.0
        %2963 = vmatmul.mubr.f32.gmra.mxu0 %v2576
        %v2964 = vpop.f32.mrf.mxu0
        %v2965 = vadd.f32 %v2740, %v2964
        %v2966 = vpop.f32.mrf.mxu0
        %2967 = vmatprep.mubr.f32.mxu0 0.0
        %2968 = vmatmul.mubr.f32.gmra.mxu0 %v2579
        %v2969 = vpop.f32.mrf.mxu0
        %v2970 = vadd.f32 %v2745, %v2969
        %v2971 = vpop.f32.mrf.mxu0
        %2972 = vmatprep.mubr.f32.mxu0 0.0
        %2973 = vmatmul.mubr.f32.gmra.mxu0 %v2582
        %v2974 = vpop.f32.mrf.mxu0
        %v2975 = vadd.f32 %v2750, %v2974
        %v2976 = vpop.f32.mrf.mxu0
        %2977 = vmatprep.mubr.f32.mxu0 0.0
        %2978 = vmatmul.mubr.f32.gmra.mxu0 %v2585
        %v2979 = vpop.f32.mrf.mxu0
        %v2980 = vadd.f32 %v2755, %v2979
        %v2981 = vpop.f32.mrf.mxu0
        %2982 = vmatprep.mubr.f32.mxu0 0.0
        %2983 = vmatmul.mubr.f32.gmra.mxu0 %v2588
        %v2984 = vpop.f32.mrf.mxu0
        %v2985 = vadd.f32 %v2760, %v2984
        %v2986 = vpop.f32.mrf.mxu0
        %2987 = vmatprep.mubr.f32.mxu0 0.0
        %2988 = vmatmul.mubr.f32.gmra.mxu0 %v2591
        %v2989 = vpop.f32.mrf.mxu0
        %v2990 = vadd.f32 %v2765, %v2989
        %v2991 = vpop.f32.mrf.mxu0
        %2992 = vmatprep.mubr.f32.mxu0 0.0
        %2993 = vmatmul.mubr.f32.gmra.mxu0 %v2594
        %v2994 = vpop.f32.mrf.mxu0
        %v2995 = vadd.f32 %v2770, %v2994
        %v2996 = vpop.f32.mrf.mxu0
        %2997 = vmatprep.mubr.f32.mxu0 0.0
        %2998 = vmatmul.mubr.f32.gmra.mxu0 %v2597
        %v2999 = vpop.f32.mrf.mxu0
        %v3000 = vadd.f32 %v2775, %v2999
        %v3001 = vpop.f32.mrf.mxu0
        %3002 = vmatprep.mubr.f32.mxu0 0.0
        %3003 = vmatmul.mubr.f32.gmra.mxu0 %v2600
        %v3004 = vpop.f32.mrf.mxu0
        %v3005 = vadd.f32 %v2780, %v3004
        %v3006 = vpop.f32.mrf.mxu0
        %3007 = vmatprep.mubr.f32.mxu0 0.0
        %3008 = vmatmul.mubr.f32.gmra.mxu0 %v2603
        %v3009 = vpop.f32.mrf.mxu0
        %v3010 = vadd.f32 %v2785, %v3009
        %v3011 = vpop.f32.mrf.mxu0
        %3012 = vmatprep.mubr.f32.mxu0 0.0
        %3013 = vmatmul.mubr.f32.gmra.mxu0 %v2606
        %v3014 = vpop.f32.mrf.mxu0
        %v3015 = vadd.f32 %v2790, %v3014
        %v3016 = vpop.f32.mrf.mxu0
        %3017 = vmatprep.mubr.f32.mxu0 0.0
        %3018 = vmatmul.mubr.f32.gmra.mxu0 %v2609
        %v3019 = vpop.f32.mrf.mxu0
        %v3020 = vadd.f32 %v2795, %v3019
        %v3021 = vpop.f32.mrf.mxu0
        %3022 = vmatprep.mubr.f32.mxu0 0.0
        %3023 = vmatmul.mubr.f32.gmra.mxu0 %v2612
        %v3024 = vpop.f32.mrf.mxu0
        %v3025 = vadd.f32 %v2800, %v3024
        %v3026 = vpop.f32.mrf.mxu0
        %3027 = vmatprep.mubr.f32.mxu0 0.0
        %3028 = vmatmul.mubr.f32.gmra.mxu0 %v2615
        %v3029 = vpop.f32.mrf.mxu0
        %v3030 = vadd.f32 %v2805, %v3029
        %v3031 = vpop.f32.mrf.mxu0
        %3032 = vmatprep.mubr.f32.mxu0 0.0
        %3033 = vmatmul.mubr.f32.gmra.mxu0 %v2618
        %v3034 = vpop.f32.mrf.mxu0
        %v3035 = vadd.f32 %v2810, %v3034
        %v3036 = vpop.f32.mrf.mxu0
        %3037 = vmatprep.mubr.f32.mxu0 0.0
        %3038 = vmatmul.mubr.f32.gmra.mxu0 %v2621
        %v3039 = vpop.f32.mrf.mxu0
        %v3040 = vadd.f32 %v2815, %v3039
        %v3041 = vpop.f32.mrf.mxu0
        %3042 = vmatprep.mubr.f32.mxu0 0.0
        %3043 = vmatmul.mubr.f32.gmra.mxu0 %v2624
        %v3044 = vpop.f32.mrf.mxu0
        %v3045 = vadd.f32 %v2820, %v3044
        %v3046 = vpop.f32.mrf.mxu0
        %3047 = vmatprep.mubr.f32.mxu0 0.0
        %3048 = vmatmul.mubr.f32.gmra.mxu0 %v2627
        %v3049 = vpop.f32.mrf.mxu0
        %v3050 = vadd.f32 %v2825, %v3049
        %v3051 = vpop.f32.mrf.mxu0
        %3052 = vmatprep.mubr.f32.mxu0 0.0
        %3053 = vmatmul.mubr.f32.gmra.mxu0 %v2630
        %v3054 = vpop.f32.mrf.mxu0
        %v3055 = vadd.f32 %v2830, %v3054
        %v3056 = vpop.f32.mrf.mxu0
        %3057 = vmatprep.mubr.f32.mxu0 0.0
        %3058 = vmatmul.mubr.f32.gmra.mxu0 %v2633
        %v3059 = vpop.f32.mrf.mxu0
        %v3060 = vadd.f32 %v2835, %v3059
        %v3061 = vpop.f32.mrf.mxu0
        %3062 = vmatprep.mubr.f32.mxu0 0.0
        %3063 = vmatmul.mubr.f32.gmra.mxu0 %v2636
        %v3064 = vpop.f32.mrf.mxu0
        %v3065 = vadd.f32 %v2840, %v3064
        %v3066 = vpop.f32.mrf.mxu0
        %3067 = vmatprep.mubr.f32.mxu0 0.0
        %3068 = vmatmul.mubr.f32.gmra.mxu0 %v2639
        %v3069 = vpop.f32.mrf.mxu0
        %v3070 = vadd.f32 %v2845, %v3069
        %v3071 = vpop.f32.mrf.mxu0
        %3072 = vmatprep.mubr.f32.mxu0 0.0
        %3073 = vmatmul.mubr.f32.gmra.mxu0 %v2642
        %v3074 = vpop.f32.mrf.mxu0
        %v3075 = vadd.f32 %v2850, %v3074
        %v3076 = vpop.f32.mrf.mxu0
        %3077 = vmatprep.mubr.f32.mxu0 0.0
        %3078 = vmatmul.mubr.f32.gmra.mxu0 %v2645
        %v3079 = vpop.f32.mrf.mxu0
        %v3080 = vadd.f32 %v2855, %v3079
        %v3081 = vpop.f32.mrf.mxu0
        %3082 = vmatprep.mubr.f32.mxu0 0.0
        %3083 = vmatmul.mubr.f32.gmra.mxu0 %v2648
        %v3084 = vpop.f32.mrf.mxu0
        %v3085 = vadd.f32 %v2860, %v3084
        %v3086 = vpop.f32.mrf.mxu0
        %3087 = vmatprep.mubr.f32.mxu0 0.0
        %3088 = vmatmul.mubr.f32.gmra.mxu0 %v2651
        %v3089 = vpop.f32.mrf.mxu0
        %v3090 = vadd.f32 %v2865, %v3089
        %v3091 = vpop.f32.mrf.mxu0
        %3092 = vmatprep.mubr.f32.mxu0 0.0
        %3093 = vmatmul.mubr.f32.gmra.mxu0 %v2654
        %v3094 = vpop.f32.mrf.mxu0
        %v3095 = vadd.f32 %v2870, %v3094
        %v3096 = vpop.f32.mrf.mxu0
        %3097 = vmatprep.mubr.f32.mxu0 0.0
        %3098 = vmatmul.mubr.f32.gmra.mxu0 %v2657
        %v3099 = vpop.f32.mrf.mxu0
        %v3100 = vadd.f32 %v2875, %v3099
        %v3101 = vpop.f32.mrf.mxu0
        %3102 = vmatprep.mubr.f32.mxu0 0.0
        %3103 = vmatmul.mubr.f32.gmra.mxu0 %v2660
        %v3104 = vpop.f32.mrf.mxu0
        %v3105 = vadd.f32 %v2880, %v3104
        %v3106 = vpop.f32.mrf.mxu0
        %3107 = vmatprep.mubr.f32.mxu0 0.0
        %3108 = vmatmul.mubr.f32.gmra.mxu0 %v2663
        %v3109 = vpop.f32.mrf.mxu0
        %v3110 = vadd.f32 %v2885, %v3109
        %v3111 = vpop.f32.mrf.mxu0
        %3112 = vmatprep.mubr.f32.mxu0 0.0
        %3113 = vmatmul.mubr.f32.gmra.mxu0 %v2666
        %v3114 = vpop.f32.mrf.mxu0
        %v3115 = vadd.f32 %v2890, %v3114
        %v3116 = vpop.f32.mrf.mxu0
        %3117 = vdwg.mxu0
        %v3118 = vxor.u32 %v2960, 2147483648
        %v3119 = vxor.u32 %v2965, 2147483648
        %v3120 = vxor.u32 %v2970, 2147483648
        %v3121 = vxor.u32 %v2975, 2147483648
        %v3122 = vxor.u32 %v2980, 2147483648
        %v3123 = vxor.u32 %v2985, 2147483648
        %v3124 = vxor.u32 %v2990, 2147483648
        %v3125 = vxor.u32 %v2995, 2147483648
        %v3126 = vxor.u32 %v3000, 2147483648
        %v3127 = vxor.u32 %v3005, 2147483648
        %v3128 = vxor.u32 %v3010, 2147483648
        %v3129 = vxor.u32 %v3015, 2147483648
        %v3130 = vxor.u32 %v3020, 2147483648
        %v3131 = vxor.u32 %v3025, 2147483648
        %v3132 = vxor.u32 %v3030, 2147483648
        %v3133 = vxor.u32 %v3035, 2147483648
        %v3134 = vxor.u32 %v3040, 2147483648
        %v3135 = vxor.u32 %v3045, 2147483648
        %v3136 = vxor.u32 %v3050, 2147483648
        %v3137 = vxor.u32 %v3055, 2147483648
        %v3138 = vxor.u32 %v3060, 2147483648
        %v3139 = vxor.u32 %v3065, 2147483648
        %v3140 = vxor.u32 %v3070, 2147483648
        %v3141 = vxor.u32 %v3075, 2147483648
        %v3142 = vxor.u32 %v3080, 2147483648
        %v3143 = vxor.u32 %v3085, 2147483648
        %v3144 = vxor.u32 %v3090, 2147483648
        %v3145 = vxor.u32 %v3095, 2147483648
        %v3146 = vxor.u32 %v3100, 2147483648
        %v3147 = vxor.u32 %v3105, 2147483648
        %v3148 = vxor.u32 %v3110, 2147483648
        %v3149 = vxor.u32 %v3115, 2147483648
        %v3150 = vmul.f32 %v3118, 1.442695
        %v3151 = vpow.pop %v3150
        %v3152 = vmul.f32 %v3119, 1.442695
        %v3153 = vpow.pop %v3152
        %v3154 = vmul.f32 %v3120, 1.442695
        %v3155 = vpow.pop %v3154
        %v3156 = vmul.f32 %v3121, 1.442695
        %v3157 = vpow.pop %v3156
        %v3158 = vmul.f32 %v3122, 1.442695
        %v3159 = vpow.pop %v3158
        %v3160 = vmul.f32 %v3123, 1.442695
        %v3161 = vpow.pop %v3160
        %v3162 = vmul.f32 %v3124, 1.442695
        %v3163 = vpow.pop %v3162
        %v3164 = vmul.f32 %v3125, 1.442695
        %v3165 = vpow.pop %v3164
        %v3166 = vmul.f32 %v3126, 1.442695
        %v3167 = vpow.pop %v3166
        %v3168 = vmul.f32 %v3127, 1.442695
        %v3169 = vpow.pop %v3168
        %v3170 = vmul.f32 %v3128, 1.442695
        %v3171 = vpow.pop %v3170
        %v3172 = vmul.f32 %v3129, 1.442695
        %v3173 = vpow.pop %v3172
        %v3174 = vmul.f32 %v3130, 1.442695
        %v3175 = vpow.pop %v3174
        %v3176 = vmul.f32 %v3131, 1.442695
        %v3177 = vpow.pop %v3176
        %v3178 = vmul.f32 %v3132, 1.442695
        %v3179 = vpow.pop %v3178
        %v3180 = vmul.f32 %v3133, 1.442695
        %v3181 = vpow.pop %v3180
        %v3182 = vmul.f32 %v3134, 1.442695
        %v3183 = vpow.pop %v3182
        %v3184 = vmul.f32 %v3135, 1.442695
        %v3185 = vpow.pop %v3184
        %v3186 = vmul.f32 %v3136, 1.442695
        %v3187 = vpow.pop %v3186
        %v3188 = vmul.f32 %v3137, 1.442695
        %v3189 = vpow.pop %v3188
        %v3190 = vmul.f32 %v3138, 1.442695
        %v3191 = vpow.pop %v3190
        %v3192 = vmul.f32 %v3139, 1.442695
        %v3193 = vpow.pop %v3192
        %v3194 = vmul.f32 %v3140, 1.442695
        %v3195 = vpow.pop %v3194
        %v3196 = vmul.f32 %v3141, 1.442695
        %v3197 = vpow.pop %v3196
        %v3198 = vmul.f32 %v3142, 1.442695
        %v3199 = vpow.pop %v3198
        %v3200 = vmul.f32 %v3143, 1.442695
        %v3201 = vpow.pop %v3200
        %v3202 = vmul.f32 %v3144, 1.442695
        %v3203 = vpow.pop %v3202
        %v3204 = vmul.f32 %v3145, 1.442695
        %v3205 = vpow.pop %v3204
        %v3206 = vmul.f32 %v3146, 1.442695
        %v3207 = vpow.pop %v3206
        %v3208 = vmul.f32 %v3147, 1.442695
        %v3209 = vpow.pop %v3208
        %v3210 = vmul.f32 %v3148, 1.442695
        %v3211 = vpow.pop %v3210
        %v3212 = vmul.f32 %v3149, 1.442695
        %v3213 = vpow.pop %v3212
        %v3214 = vadd.f32 %v3151, 1.0
        %v3215 = vadd.f32 %v3153, 1.0
        %v3216 = vadd.f32 %v3155, 1.0
        %v3217 = vadd.f32 %v3157, 1.0
        %v3218 = vadd.f32 %v3159, 1.0
        %v3219 = vadd.f32 %v3161, 1.0
        %v3220 = vadd.f32 %v3163, 1.0
        %v3221 = vadd.f32 %v3165, 1.0
        %v3222 = vadd.f32 %v3167, 1.0
        %v3223 = vadd.f32 %v3169, 1.0
        %v3224 = vadd.f32 %v3171, 1.0
        %v3225 = vadd.f32 %v3173, 1.0
        %v3226 = vadd.f32 %v3175, 1.0
        %v3227 = vadd.f32 %v3177, 1.0
        %v3228 = vadd.f32 %v3179, 1.0
        %v3229 = vadd.f32 %v3181, 1.0
        %v3230 = vadd.f32 %v3183, 1.0
        %v3231 = vadd.f32 %v3185, 1.0
        %v3232 = vadd.f32 %v3187, 1.0
        %v3233 = vadd.f32 %v3189, 1.0
        %v3234 = vadd.f32 %v3191, 1.0
        %v3235 = vadd.f32 %v3193, 1.0
        %v3236 = vadd.f32 %v3195, 1.0
        %v3237 = vadd.f32 %v3197, 1.0
        %v3238 = vadd.f32 %v3199, 1.0
        %v3239 = vadd.f32 %v3201, 1.0
        %v3240 = vadd.f32 %v3203, 1.0
        %v3241 = vadd.f32 %v3205, 1.0
        %v3242 = vadd.f32 %v3207, 1.0
        %v3243 = vadd.f32 %v3209, 1.0
        %v3244 = vadd.f32 %v3211, 1.0
        %v3245 = vadd.f32 %v3213, 1.0
        %v3246 = vrcp.pop %v3214
        %v3247 = vmul.f32 1.0, %v3246
        %v3248 = vrcp.pop %v3215
        %v3249 = vmul.f32 1.0, %v3248
        %v3250 = vrcp.pop %v3216
        %v3251 = vmul.f32 1.0, %v3250
        %v3252 = vrcp.pop %v3217
        %v3253 = vmul.f32 1.0, %v3252
        %v3254 = vrcp.pop %v3218
        %v3255 = vmul.f32 1.0, %v3254
        %v3256 = vrcp.pop %v3219
        %v3257 = vmul.f32 1.0, %v3256
        %v3258 = vrcp.pop %v3220
        %v3259 = vmul.f32 1.0, %v3258
        %v3260 = vrcp.pop %v3221
        %v3261 = vmul.f32 1.0, %v3260
        %v3262 = vrcp.pop %v3222
        %v3263 = vmul.f32 1.0, %v3262
        %v3264 = vrcp.pop %v3223
        %v3265 = vmul.f32 1.0, %v3264
        %v3266 = vrcp.pop %v3224
        %v3267 = vmul.f32 1.0, %v3266
        %v3268 = vrcp.pop %v3225
        %v3269 = vmul.f32 1.0, %v3268
        %v3270 = vrcp.pop %v3226
        %v3271 = vmul.f32 1.0, %v3270
        %v3272 = vrcp.pop %v3227
        %v3273 = vmul.f32 1.0, %v3272
        %v3274 = vrcp.pop %v3228
        %v3275 = vmul.f32 1.0, %v3274
        %v3276 = vrcp.pop %v3229
        %v3277 = vmul.f32 1.0, %v3276
        %v3278 = vrcp.pop %v3230
        %v3279 = vmul.f32 1.0, %v3278
        %v3280 = vrcp.pop %v3231
        %v3281 = vmul.f32 1.0, %v3280
        %v3282 = vrcp.pop %v3232
        %v3283 = vmul.f32 1.0, %v3282
        %v3284 = vrcp.pop %v3233
        %v3285 = vmul.f32 1.0, %v3284
        %v3286 = vrcp.pop %v3234
        %v3287 = vmul.f32 1.0, %v3286
        %v3288 = vrcp.pop %v3235
        %v3289 = vmul.f32 1.0, %v3288
        %v3290 = vrcp.pop %v3236
        %v3291 = vmul.f32 1.0, %v3290
        %v3292 = vrcp.pop %v3237
        %v3293 = vmul.f32 1.0, %v3292
        %v3294 = vrcp.pop %v3238
        %v3295 = vmul.f32 1.0, %v3294
        %v3296 = vrcp.pop %v3239
        %v3297 = vmul.f32 1.0, %v3296
        %v3298 = vrcp.pop %v3240
        %v3299 = vmul.f32 1.0, %v3298
        %v3300 = vrcp.pop %v3241
        %v3301 = vmul.f32 1.0, %v3300
        %v3302 = vrcp.pop %v3242
        %v3303 = vmul.f32 1.0, %v3302
        %v3304 = vrcp.pop %v3243
        %v3305 = vmul.f32 1.0, %v3304
        %v3306 = vrcp.pop %v3244
        %v3307 = vmul.f32 1.0, %v3306
        %v3308 = vrcp.pop %v3245
        %v3309 = vmul.f32 1.0, %v3308
        %v3310 = vmul.f32 %v2960, %v3247
        %v3311 = vmul.f32 %v2965, %v3249
        %v3312 = vmul.f32 %v2970, %v3251
        %v3313 = vmul.f32 %v2975, %v3253
        %v3314 = vmul.f32 %v2980, %v3255
        %v3315 = vmul.f32 %v2985, %v3257
        %v3316 = vmul.f32 %v2990, %v3259
        %v3317 = vmul.f32 %v2995, %v3261
        %v3318 = vmul.f32 %v3000, %v3263
        %v3319 = vmul.f32 %v3005, %v3265
        %v3320 = vmul.f32 %v3010, %v3267
        %v3321 = vmul.f32 %v3015, %v3269
        %v3322 = vmul.f32 %v3020, %v3271
        %v3323 = vmul.f32 %v3025, %v3273
        %v3324 = vmul.f32 %v3030, %v3275
        %v3325 = vmul.f32 %v3035, %v3277
        %v3326 = vmul.f32 %v3040, %v3279
        %v3327 = vmul.f32 %v3045, %v3281
        %v3328 = vmul.f32 %v3050, %v3283
        %v3329 = vmul.f32 %v3055, %v3285
        %v3330 = vmul.f32 %v3060, %v3287
        %v3331 = vmul.f32 %v3065, %v3289
        %v3332 = vmul.f32 %v3070, %v3291
        %v3333 = vmul.f32 %v3075, %v3293
        %v3334 = vmul.f32 %v3080, %v3295
        %v3335 = vmul.f32 %v3085, %v3297
        %v3336 = vmul.f32 %v3090, %v3299
        %v3337 = vmul.f32 %v3095, %v3301
        %v3338 = vmul.f32 %v3100, %v3303
        %v3339 = vmul.f32 %v3105, %v3305
        %v3340 = vmul.f32 %v3110, %v3307
        %v3341 = vmul.f32 %v3115, %v3309
        %v3342 = vld [vmem:[%s5] sm:$0xff]
        %v3343 = vld [vmem:[%s5 + $0x8] sm:$0xff]
        %v3344 = vld [vmem:[%s5 + $0x10] sm:$0xff]
        %v3345 = vld [vmem:[%s5 + $0x18] sm:$0xff]
        %v3346 = vld [vmem:[%s5 + $0x20] sm:$0xff]
        %v3347 = vld [vmem:[%s5 + $0x28] sm:$0xff]
        %v3348 = vld [vmem:[%s5 + $0x30] sm:$0xff]
        %v3349 = vld [vmem:[%s5 + $0x38] sm:$0xff]
        %v3350 = vld [vmem:[%s6] sm:$0x1]
        %v3352 = vlaneseq
        %v3353 = vshrl.u32 %v3352, 7
        %v3354 = vsub.s32 0, %v3353
        %v3355 = vrot.slane %v3350, %v3354
        %v3358 = vsel %vm2367, %v3310, 0
        %v3361 = vsel %vm2367, %v3311, 0
        %v3364 = vsel %vm2367, %v3312, 0
        %v3367 = vsel %vm2367, %v3313, 0
        %v3370 = vsel %vm2367, %v3314, 0
        %v3373 = vsel %vm2367, %v3315, 0
        %v3376 = vsel %vm2367, %v3316, 0
        %v3379 = vsel %vm2367, %v3317, 0
        %v3382 = vsel %vm2367, %v3318, 0
        %v3385 = vsel %vm2367, %v3319, 0
        %v3388 = vsel %vm2367, %v3320, 0
        %v3391 = vsel %vm2367, %v3321, 0
        %v3394 = vsel %vm2367, %v3322, 0
        %v3397 = vsel %vm2367, %v3323, 0
        %v3400 = vsel %vm2367, %v3324, 0
        %v3403 = vsel %vm2367, %v3325, 0
        %v3406 = vsel %vm2367, %v3326, 0
        %v3409 = vsel %vm2367, %v3327, 0
        %v3412 = vsel %vm2367, %v3328, 0
        %v3415 = vsel %vm2367, %v3329, 0
        %v3418 = vsel %vm2367, %v3330, 0
        %v3421 = vsel %vm2367, %v3331, 0
        %v3424 = vsel %vm2367, %v3332, 0
        %v3427 = vsel %vm2367, %v3333, 0
        %v3430 = vsel %vm2367, %v3334, 0
        %v3433 = vsel %vm2367, %v3335, 0
        %v3436 = vsel %vm2367, %v3336, 0
        %v3439 = vsel %vm2367, %v3337, 0
        %v3442 = vsel %vm2367, %v3338, 0
        %v3445 = vsel %vm2367, %v3339, 0
        %v3448 = vsel %vm2367, %v3340, 0
        %v3451 = vsel %vm2367, %v3341, 0
        %3453 = vmatprep.subr.mxu0 0.0
        %3454 = vmatpush1.msra.mxu0 0.0
        %3455 = vmatprep.subr.mxu0 0.0
        %3456 = vmatpush1.msra.mxu0 0.0
        %3457 = vmatprep.subr.mxu0 0.0
        %3458 = vmatpush1.msra.mxu0 0.0
        %3459 = vmatprep.subr.mxu0 0.0
        %3460 = vmatpush1.msra.mxu0 0.0
        %3461 = vmatprep.subr.mxu0 0.0
        %3462 = vmatpush1.msra.mxu0 0.0
        %3463 = vmatprep.subr.mxu0 0.0
        %3464 = vmatpush1.msra.mxu0 0.0
        %3465 = vmatprep.subr.mxu0 0.0
        %3466 = vmatpush1.msra.mxu0 0.0
        %3467 = vmatprep.subr.mxu0 0.0
        %3468 = vmatpush1.msra.mxu0 0.0
        %3469 = vmatprep.subr.mxu0 0.0
        %3470 = vmatpush1.msra.mxu0 %v3349
        %3471 = vmatprep.subr.mxu0 0.0
        %3472 = vmatpush1.msra.mxu0 %v3348
        %3473 = vmatprep.subr.mxu0 0.0
        %3474 = vmatpush1.msra.mxu0 %v3347
        %3475 = vmatprep.subr.mxu0 0.0
        %3476 = vmatpush1.msra.mxu0 %v3346
        %3477 = vmatprep.subr.mxu0 0.0
        %3478 = vmatpush1.msra.mxu0 %v3345
        %3479 = vmatprep.subr.mxu0 0.0
        %3480 = vmatpush1.msra.mxu0 %v3344
        %3481 = vmatprep.subr.mxu0 0.0
        %3482 = vmatpush1.msra.mxu0 %v3343
        %3483 = vmatprep.subr.mxu0 0.0
        %3484 = vmatpush1.msra.mxu0 %v3342
        %3485 = vmatprep.subr.mxu0 0.0
        %3486 = vmatpush2.msra.mxu0 0.0
        %3487 = vmatprep.subr.mxu0 0.0
        %3488 = vmatpush2.msra.mxu0 0.0
        %3489 = vmatprep.subr.mxu0 0.0
        %3490 = vmatpush2.msra.mxu0 0.0
        %3491 = vmatprep.subr.mxu0 0.0
        %3492 = vmatpush2.msra.mxu0 0.0
        %3493 = vmatprep.subr.mxu0 0.0
        %3494 = vmatpush2.msra.mxu0 0.0
        %3495 = vmatprep.subr.mxu0 0.0
        %3496 = vmatpush2.msra.mxu0 0.0
        %3497 = vmatprep.subr.mxu0 0.0
        %3498 = vmatpush2.msra.mxu0 0.0
        %3499 = vmatprep.subr.mxu0 0.0
        %3500 = vmatpush2.msra.mxu0 0.0
        %3501 = vmatprep.subr.mxu0 0.0
        %3502 = vmatpush2.msra.mxu0 0.0
        %3503 = vmatprep.subr.mxu0 0.0
        %3504 = vmatpush2.msra.mxu0 0.0
        %3505 = vmatprep.subr.mxu0 0.0
        %3506 = vmatpush2.msra.mxu0 0.0
        %3507 = vmatprep.subr.mxu0 0.0
        %3508 = vmatpush2.msra.mxu0 0.0
        %3509 = vmatprep.subr.mxu0 0.0
        %3510 = vmatpush2.msra.mxu0 0.0
        %3511 = vmatprep.subr.mxu0 0.0
        %3512 = vmatpush2.msra.mxu0 0.0
        %3513 = vmatprep.subr.mxu0 0.0
        %3514 = vmatpush2.msra.mxu0 0.0
        %3515 = vmatprep.subr.mxu0 0.0
        %3516 = vmatpush2.msra.mxu0 0.0
        %3517 = vmatprep.mubr.f32.mxu0 0.0
        %3518 = vmatmul.mubr.f32.gmra.mxu0 %v3358
        %v3519 = vpop.f32.mrf.mxu0
        %v3520 = vadd.f32 %v3355, %v3519
        %v3521 = vpop.f32.mrf.mxu0
        %3522 = vmatprep.mubr.f32.mxu0 0.0
        %3523 = vmatmul.mubr.f32.gmra.mxu0 %v3361
        %v3524 = vpop.f32.mrf.mxu0
        %v3525 = vadd.f32 %v3355, %v3524
        %v3526 = vpop.f32.mrf.mxu0
        %3527 = vmatprep.mubr.f32.mxu0 0.0
        %3528 = vmatmul.mubr.f32.gmra.mxu0 %v3364
        %v3529 = vpop.f32.mrf.mxu0
        %v3530 = vadd.f32 %v3355, %v3529
        %v3531 = vpop.f32.mrf.mxu0
        %3532 = vmatprep.mubr.f32.mxu0 0.0
        %3533 = vmatmul.mubr.f32.gmra.mxu0 %v3367
        %v3534 = vpop.f32.mrf.mxu0
        %v3535 = vadd.f32 %v3355, %v3534
        %v3536 = vpop.f32.mrf.mxu0
        %3537 = vmatprep.mubr.f32.mxu0 0.0
        %3538 = vmatmul.mubr.f32.gmra.mxu0 %v3370
        %v3539 = vpop.f32.mrf.mxu0
        %v3540 = vadd.f32 %v3355, %v3539
        %v3541 = vpop.f32.mrf.mxu0
        %3542 = vmatprep.mubr.f32.mxu0 0.0
        %3543 = vmatmul.mubr.f32.gmra.mxu0 %v3373
        %v3544 = vpop.f32.mrf.mxu0
        %v3545 = vadd.f32 %v3355, %v3544
        %v3546 = vpop.f32.mrf.mxu0
        %3547 = vmatprep.mubr.f32.mxu0 0.0
        %3548 = vmatmul.mubr.f32.gmra.mxu0 %v3376
        %v3549 = vpop.f32.mrf.mxu0
        %v3550 = vadd.f32 %v3355, %v3549
        %v3551 = vpop.f32.mrf.mxu0
        %3552 = vmatprep.mubr.f32.mxu0 0.0
        %3553 = vmatmul.mubr.f32.gmra.mxu0 %v3379
        %v3554 = vpop.f32.mrf.mxu0
        %v3555 = vadd.f32 %v3355, %v3554
        %v3556 = vpop.f32.mrf.mxu0
        %3557 = vmatprep.mubr.f32.mxu0 0.0
        %3558 = vmatmul.mubr.f32.gmra.mxu0 %v3382
        %v3559 = vpop.f32.mrf.mxu0
        %v3560 = vadd.f32 %v3355, %v3559
        %v3561 = vpop.f32.mrf.mxu0
        %3562 = vmatprep.mubr.f32.mxu0 0.0
        %3563 = vmatmul.mubr.f32.gmra.mxu0 %v3385
        %v3564 = vpop.f32.mrf.mxu0
        %v3565 = vadd.f32 %v3355, %v3564
        %v3566 = vpop.f32.mrf.mxu0
        %3567 = vmatprep.mubr.f32.mxu0 0.0
        %3568 = vmatmul.mubr.f32.gmra.mxu0 %v3388
        %v3569 = vpop.f32.mrf.mxu0
        %v3570 = vadd.f32 %v3355, %v3569
        %v3571 = vpop.f32.mrf.mxu0
        %3572 = vmatprep.mubr.f32.mxu0 0.0
        %3573 = vmatmul.mubr.f32.gmra.mxu0 %v3391
        %v3574 = vpop.f32.mrf.mxu0
        %v3575 = vadd.f32 %v3355, %v3574
        %v3576 = vpop.f32.mrf.mxu0
        %3577 = vmatprep.mubr.f32.mxu0 0.0
        %3578 = vmatmul.mubr.f32.gmra.mxu0 %v3394
        %v3579 = vpop.f32.mrf.mxu0
        %v3580 = vadd.f32 %v3355, %v3579
        %v3581 = vpop.f32.mrf.mxu0
        %3582 = vmatprep.mubr.f32.mxu0 0.0
        %3583 = vmatmul.mubr.f32.gmra.mxu0 %v3397
        %v3584 = vpop.f32.mrf.mxu0
        %v3585 = vadd.f32 %v3355, %v3584
        %v3586 = vpop.f32.mrf.mxu0
        %3587 = vmatprep.mubr.f32.mxu0 0.0
        %3588 = vmatmul.mubr.f32.gmra.mxu0 %v3400
        %v3589 = vpop.f32.mrf.mxu0
        %v3590 = vadd.f32 %v3355, %v3589
        %v3591 = vpop.f32.mrf.mxu0
        %3592 = vmatprep.mubr.f32.mxu0 0.0
        %3593 = vmatmul.mubr.f32.gmra.mxu0 %v3403
        %v3594 = vpop.f32.mrf.mxu0
        %v3595 = vadd.f32 %v3355, %v3594
        %v3596 = vpop.f32.mrf.mxu0
        %3597 = vmatprep.mubr.f32.mxu0 0.0
        %3598 = vmatmul.mubr.f32.gmra.mxu0 %v3406
        %v3599 = vpop.f32.mrf.mxu0
        %v3600 = vadd.f32 %v3355, %v3599
        %v3601 = vpop.f32.mrf.mxu0
        %3602 = vmatprep.mubr.f32.mxu0 0.0
        %3603 = vmatmul.mubr.f32.gmra.mxu0 %v3409
        %v3604 = vpop.f32.mrf.mxu0
        %v3605 = vadd.f32 %v3355, %v3604
        %v3606 = vpop.f32.mrf.mxu0
        %3607 = vmatprep.mubr.f32.mxu0 0.0
        %3608 = vmatmul.mubr.f32.gmra.mxu0 %v3412
        %v3609 = vpop.f32.mrf.mxu0
        %v3610 = vadd.f32 %v3355, %v3609
        %v3611 = vpop.f32.mrf.mxu0
        %3612 = vmatprep.mubr.f32.mxu0 0.0
        %3613 = vmatmul.mubr.f32.gmra.mxu0 %v3415
        %v3614 = vpop.f32.mrf.mxu0
        %v3615 = vadd.f32 %v3355, %v3614
        %v3616 = vpop.f32.mrf.mxu0
        %3617 = vmatprep.mubr.f32.mxu0 0.0
        %3618 = vmatmul.mubr.f32.gmra.mxu0 %v3418
        %v3619 = vpop.f32.mrf.mxu0
        %v3620 = vadd.f32 %v3355, %v3619
        %v3621 = vpop.f32.mrf.mxu0
        %3622 = vmatprep.mubr.f32.mxu0 0.0
        %3623 = vmatmul.mubr.f32.gmra.mxu0 %v3421
        %v3624 = vpop.f32.mrf.mxu0
        %v3625 = vadd.f32 %v3355, %v3624
        %v3626 = vpop.f32.mrf.mxu0
        %3627 = vmatprep.mubr.f32.mxu0 0.0
        %3628 = vmatmul.mubr.f32.gmra.mxu0 %v3424
        %v3629 = vpop.f32.mrf.mxu0
        %v3630 = vadd.f32 %v3355, %v3629
        %v3631 = vpop.f32.mrf.mxu0
        %3632 = vmatprep.mubr.f32.mxu0 0.0
        %3633 = vmatmul.mubr.f32.gmra.mxu0 %v3427
        %v3634 = vpop.f32.mrf.mxu0
        %v3635 = vadd.f32 %v3355, %v3634
        %v3636 = vpop.f32.mrf.mxu0
        %3637 = vmatprep.mubr.f32.mxu0 0.0
        %3638 = vmatmul.mubr.f32.gmra.mxu0 %v3430
        %v3639 = vpop.f32.mrf.mxu0
        %v3640 = vadd.f32 %v3355, %v3639
        %v3641 = vpop.f32.mrf.mxu0
        %3642 = vmatprep.mubr.f32.mxu0 0.0
        %3643 = vmatmul.mubr.f32.gmra.mxu0 %v3433
        %v3644 = vpop.f32.mrf.mxu0
        %v3645 = vadd.f32 %v3355, %v3644
        %v3646 = vpop.f32.mrf.mxu0
        %3647 = vmatprep.mubr.f32.mxu0 0.0
        %3648 = vmatmul.mubr.f32.gmra.mxu0 %v3436
        %v3649 = vpop.f32.mrf.mxu0
        %v3650 = vadd.f32 %v3355, %v3649
        %v3651 = vpop.f32.mrf.mxu0
        %3652 = vmatprep.mubr.f32.mxu0 0.0
        %3653 = vmatmul.mubr.f32.gmra.mxu0 %v3439
        %v3654 = vpop.f32.mrf.mxu0
        %v3655 = vadd.f32 %v3355, %v3654
        %v3656 = vpop.f32.mrf.mxu0
        %3657 = vmatprep.mubr.f32.mxu0 0.0
        %3658 = vmatmul.mubr.f32.gmra.mxu0 %v3442
        %v3659 = vpop.f32.mrf.mxu0
        %v3660 = vadd.f32 %v3355, %v3659
        %v3661 = vpop.f32.mrf.mxu0
        %3662 = vmatprep.mubr.f32.mxu0 0.0
        %3663 = vmatmul.mubr.f32.gmra.mxu0 %v3445
        %v3664 = vpop.f32.mrf.mxu0
        %v3665 = vadd.f32 %v3355, %v3664
        %v3666 = vpop.f32.mrf.mxu0
        %3667 = vmatprep.mubr.f32.mxu0 0.0
        %3668 = vmatmul.mubr.f32.gmra.mxu0 %v3448
        %v3669 = vpop.f32.mrf.mxu0
        %v3670 = vadd.f32 %v3355, %v3669
        %v3671 = vpop.f32.mrf.mxu0
        %3672 = vmatprep.mubr.f32.mxu0 0.0
        %3673 = vmatmul.mubr.f32.gmra.mxu0 %v3451
        %v3674 = vpop.f32.mrf.mxu0
        %v3675 = vadd.f32 %v3355, %v3674
        %v3676 = vpop.f32.mrf.mxu0
        %3677 = vdwg.mxu0
        %v3678 = vadd.f32 %v1071, 0.5
        %v3679 = vadd.f32 %v1072, 0.5
        %v3680 = vadd.f32 %v1073, 0.5
        %v3681 = vadd.f32 %v1074, 0.5
        %v3682 = vadd.f32 %v1075, 0.5
        %v3683 = vadd.f32 %v1076, 0.5
        %v3684 = vadd.f32 %v1077, 0.5
        %v3685 = vadd.f32 %v1078, 0.5
        %v3686 = vadd.f32 %v1079, 0.5
        %v3687 = vadd.f32 %v1080, 0.5
        %v3688 = vadd.f32 %v1081, 0.5
        %v3689 = vadd.f32 %v1082, 0.5
        %v3690 = vadd.f32 %v1083, 0.5
        %v3691 = vadd.f32 %v1084, 0.5
        %v3692 = vadd.f32 %v1085, 0.5
        %v3693 = vadd.f32 %v1086, 0.5
        %v3694 = vadd.f32 %v1087, 0.5
        %v3695 = vadd.f32 %v1088, 0.5
        %v3696 = vadd.f32 %v1089, 0.5
        %v3697 = vadd.f32 %v1090, 0.5
        %v3698 = vadd.f32 %v1091, 0.5
        %v3699 = vadd.f32 %v1092, 0.5
        %v3700 = vadd.f32 %v1093, 0.5
        %v3701 = vadd.f32 %v1094, 0.5
        %v3702 = vadd.f32 %v1095, 0.5
        %v3703 = vadd.f32 %v1096, 0.5
        %v3704 = vadd.f32 %v1097, 0.5
        %v3705 = vadd.f32 %v1098, 0.5
        %v3706 = vadd.f32 %v1099, 0.5
        %v3707 = vadd.f32 %v1100, 0.5
        %v3708 = vadd.f32 %v1101, 0.5
        %v3709 = vadd.f32 %v1102, 0.5
        %v3710 = vmul.f32 %v3678, 8.0
        %v3711 = vmul.f32 %v3679, 8.0
        %v3712 = vmul.f32 %v3680, 8.0
        %v3713 = vmul.f32 %v3681, 8.0
        %v3714 = vmul.f32 %v3682, 8.0
        %v3715 = vmul.f32 %v3683, 8.0
        %v3716 = vmul.f32 %v3684, 8.0
        %v3717 = vmul.f32 %v3685, 8.0
        %v3718 = vmul.f32 %v3686, 8.0
        %v3719 = vmul.f32 %v3687, 8.0
        %v3720 = vmul.f32 %v3688, 8.0
        %v3721 = vmul.f32 %v3689, 8.0
        %v3722 = vmul.f32 %v3690, 8.0
        %v3723 = vmul.f32 %v3691, 8.0
        %v3724 = vmul.f32 %v3692, 8.0
        %v3725 = vmul.f32 %v3693, 8.0
        %v3726 = vmul.f32 %v3694, 8.0
        %v3727 = vmul.f32 %v3695, 8.0
        %v3728 = vmul.f32 %v3696, 8.0
        %v3729 = vmul.f32 %v3697, 8.0
        %v3730 = vmul.f32 %v3698, 8.0
        %v3731 = vmul.f32 %v3699, 8.0
        %v3732 = vmul.f32 %v3700, 8.0
        %v3733 = vmul.f32 %v3701, 8.0
        %v3734 = vmul.f32 %v3702, 8.0
        %v3735 = vmul.f32 %v3703, 8.0
        %v3736 = vmul.f32 %v3704, 8.0
        %v3737 = vmul.f32 %v3705, 8.0
        %v3738 = vmul.f32 %v3706, 8.0
        %v3739 = vmul.f32 %v3707, 8.0
        %v3740 = vmul.f32 %v3708, 8.0
        %v3741 = vmul.f32 %v3709, 8.0
        %v3742 = vadd.f32 %v1007, 0.5
        %v3743 = vadd.f32 %v1008, 0.5
        %v3744 = vadd.f32 %v1009, 0.5
        %v3745 = vadd.f32 %v1010, 0.5
        %v3746 = vadd.f32 %v1011, 0.5
        %v3747 = vadd.f32 %v1012, 0.5
        %v3748 = vadd.f32 %v1013, 0.5
        %v3749 = vadd.f32 %v1014, 0.5
        %v3750 = vadd.f32 %v1015, 0.5
        %v3751 = vadd.f32 %v1016, 0.5
        %v3752 = vadd.f32 %v1017, 0.5
        %v3753 = vadd.f32 %v1018, 0.5
        %v3754 = vadd.f32 %v1019, 0.5
        %v3755 = vadd.f32 %v1020, 0.5
        %v3756 = vadd.f32 %v1021, 0.5
        %v3757 = vadd.f32 %v1022, 0.5
        %v3758 = vadd.f32 %v1023, 0.5
        %v3759 = vadd.f32 %v1024, 0.5
        %v3760 = vadd.f32 %v1025, 0.5
        %v3761 = vadd.f32 %v1026, 0.5
        %v3762 = vadd.f32 %v1027, 0.5
        %v3763 = vadd.f32 %v1028, 0.5
        %v3764 = vadd.f32 %v1029, 0.5
        %v3765 = vadd.f32 %v1030, 0.5
        %v3766 = vadd.f32 %v1031, 0.5
        %v3767 = vadd.f32 %v1032, 0.5
        %v3768 = vadd.f32 %v1033, 0.5
        %v3769 = vadd.f32 %v1034, 0.5
        %v3770 = vadd.f32 %v1035, 0.5
        %v3771 = vadd.f32 %v1036, 0.5
        %v3772 = vadd.f32 %v1037, 0.5
        %v3773 = vadd.f32 %v1038, 0.5
        %v3774 = vmul.f32 %v3742, 8.0
        %v3775 = vmul.f32 %v3743, 8.0
        %v3776 = vmul.f32 %v3744, 8.0
        %v3777 = vmul.f32 %v3745, 8.0
        %v3778 = vmul.f32 %v3746, 8.0
        %v3779 = vmul.f32 %v3747, 8.0
        %v3780 = vmul.f32 %v3748, 8.0
        %v3781 = vmul.f32 %v3749, 8.0
        %v3782 = vmul.f32 %v3750, 8.0
        %v3783 = vmul.f32 %v3751, 8.0
        %v3784 = vmul.f32 %v3752, 8.0
        %v3785 = vmul.f32 %v3753, 8.0
        %v3786 = vmul.f32 %v3754, 8.0
        %v3787 = vmul.f32 %v3755, 8.0
        %v3788 = vmul.f32 %v3756, 8.0
        %v3789 = vmul.f32 %v3757, 8.0
        %v3790 = vmul.f32 %v3758, 8.0
        %v3791 = vmul.f32 %v3759, 8.0
        %v3792 = vmul.f32 %v3760, 8.0
        %v3793 = vmul.f32 %v3761, 8.0
        %v3794 = vmul.f32 %v3762, 8.0
        %v3795 = vmul.f32 %v3763, 8.0
        %v3796 = vmul.f32 %v3764, 8.0
        %v3797 = vmul.f32 %v3765, 8.0
        %v3798 = vmul.f32 %v3766, 8.0
        %v3799 = vmul.f32 %v3767, 8.0
        %v3800 = vmul.f32 %v3768, 8.0
        %v3801 = vmul.f32 %v3769, 8.0
        %v3802 = vmul.f32 %v3770, 8.0
        %v3803 = vmul.f32 %v3771, 8.0
        %v3804 = vmul.f32 %v3772, 8.0
        %v3805 = vmul.f32 %v3773, 8.0
        %vm3806 = vcmp.eq.s32.totalorder %v278, 0
        %v3807 = vsel %vm3806, 1, 0
        %vm3808 = vcmp.eq.s32.totalorder %v3807, 1
        %v3809 = vsel %vm3808, %v3710, 0.0
        %v3810 = vsel %vm3808, %v3711, 0.0
        %v3811 = vsel %vm3808, %v3712, 0.0
        %v3812 = vsel %vm3808, %v3713, 0.0
        %v3813 = vsel %vm3808, %v3714, 0.0
        %v3814 = vsel %vm3808, %v3715, 0.0
        %v3815 = vsel %vm3808, %v3716, 0.0
        %v3816 = vsel %vm3808, %v3717, 0.0
        %v3817 = vsel %vm3808, %v3718, 0.0
        %v3818 = vsel %vm3808, %v3719, 0.0
        %v3819 = vsel %vm3808, %v3720, 0.0
        %v3820 = vsel %vm3808, %v3721, 0.0
        %v3821 = vsel %vm3808, %v3722, 0.0
        %v3822 = vsel %vm3808, %v3723, 0.0
        %v3823 = vsel %vm3808, %v3724, 0.0
        %v3824 = vsel %vm3808, %v3725, 0.0
        %v3825 = vsel %vm3808, %v3726, 0.0
        %v3826 = vsel %vm3808, %v3727, 0.0
        %v3827 = vsel %vm3808, %v3728, 0.0
        %v3828 = vsel %vm3808, %v3729, 0.0
        %v3829 = vsel %vm3808, %v3730, 0.0
        %v3830 = vsel %vm3808, %v3731, 0.0
        %v3831 = vsel %vm3808, %v3732, 0.0
        %v3832 = vsel %vm3808, %v3733, 0.0
        %v3833 = vsel %vm3808, %v3734, 0.0
        %v3834 = vsel %vm3808, %v3735, 0.0
        %v3835 = vsel %vm3808, %v3736, 0.0
        %v3836 = vsel %vm3808, %v3737, 0.0
        %v3837 = vsel %vm3808, %v3738, 0.0
        %v3838 = vsel %vm3808, %v3739, 0.0
        %v3839 = vsel %vm3808, %v3740, 0.0
        %v3840 = vsel %vm3808, %v3741, 0.0
        %vm3841 = vcmp.eq.s32.totalorder %v278, 1
        %v3842 = vsel %vm3841, 1, 0
        %vm3843 = vcmp.eq.s32.totalorder %v3842, 1
        %v3844 = vsel %vm3843, %v3774, 0.0
        %v3845 = vsel %vm3843, %v3775, 0.0
        %v3846 = vsel %vm3843, %v3776, 0.0
        %v3847 = vsel %vm3843, %v3777, 0.0
        %v3848 = vsel %vm3843, %v3778, 0.0
        %v3849 = vsel %vm3843, %v3779, 0.0
        %v3850 = vsel %vm3843, %v3780, 0.0
        %v3851 = vsel %vm3843, %v3781, 0.0
        %v3852 = vsel %vm3843, %v3782, 0.0
        %v3853 = vsel %vm3843, %v3783, 0.0
        %v3854 = vsel %vm3843, %v3784, 0.0
        %v3855 = vsel %vm3843, %v3785, 0.0
        %v3856 = vsel %vm3843, %v3786, 0.0
        %v3857 = vsel %vm3843, %v3787, 0.0
        %v3858 = vsel %vm3843, %v3788, 0.0
        %v3859 = vsel %vm3843, %v3789, 0.0
        %v3860 = vsel %vm3843, %v3790, 0.0
        %v3861 = vsel %vm3843, %v3791, 0.0
        %v3862 = vsel %vm3843, %v3792, 0.0
        %v3863 = vsel %vm3843, %v3793, 0.0
        %v3864 = vsel %vm3843, %v3794, 0.0
        %v3865 = vsel %vm3843, %v3795, 0.0
        %v3866 = vsel %vm3843, %v3796, 0.0
        %v3867 = vsel %vm3843, %v3797, 0.0
        %v3868 = vsel %vm3843, %v3798, 0.0
        %v3869 = vsel %vm3843, %v3799, 0.0
        %v3870 = vsel %vm3843, %v3800, 0.0
        %v3871 = vsel %vm3843, %v3801, 0.0
        %v3872 = vsel %vm3843, %v3802, 0.0
        %v3873 = vsel %vm3843, %v3803, 0.0
        %v3874 = vsel %vm3843, %v3804, 0.0
        %v3875 = vsel %vm3843, %v3805, 0.0
        %v3876 = vadd.f32 %v3809, %v3844
        %v3877 = vadd.f32 %v3810, %v3845
        %v3878 = vadd.f32 %v3811, %v3846
        %v3879 = vadd.f32 %v3812, %v3847
        %v3880 = vadd.f32 %v3813, %v3848
        %v3881 = vadd.f32 %v3814, %v3849
        %v3882 = vadd.f32 %v3815, %v3850
        %v3883 = vadd.f32 %v3816, %v3851
        %v3884 = vadd.f32 %v3817, %v3852
        %v3885 = vadd.f32 %v3818, %v3853
        %v3886 = vadd.f32 %v3819, %v3854
        %v3887 = vadd.f32 %v3820, %v3855
        %v3888 = vadd.f32 %v3821, %v3856
        %v3889 = vadd.f32 %v3822, %v3857
        %v3890 = vadd.f32 %v3823, %v3858
        %v3891 = vadd.f32 %v3824, %v3859
        %v3892 = vadd.f32 %v3825, %v3860
        %v3893 = vadd.f32 %v3826, %v3861
        %v3894 = vadd.f32 %v3827, %v3862
        %v3895 = vadd.f32 %v3828, %v3863
        %v3896 = vadd.f32 %v3829, %v3864
        %v3897 = vadd.f32 %v3830, %v3865
        %v3898 = vadd.f32 %v3831, %v3866
        %v3899 = vadd.f32 %v3832, %v3867
        %v3900 = vadd.f32 %v3833, %v3868
        %v3901 = vadd.f32 %v3834, %v3869
        %v3902 = vadd.f32 %v3835, %v3870
        %v3903 = vadd.f32 %v3836, %v3871
        %v3904 = vadd.f32 %v3837, %v3872
        %v3905 = vadd.f32 %v3838, %v3873
        %v3906 = vadd.f32 %v3839, %v3874
        %v3907 = vadd.f32 %v3840, %v3875
        %v3908 = vxor.u32 %v3520, 2147483648
        %v3909 = vxor.u32 %v3525, 2147483648
        %v3910 = vxor.u32 %v3530, 2147483648
        %v3911 = vxor.u32 %v3535, 2147483648
        %v3912 = vxor.u32 %v3540, 2147483648
        %v3913 = vxor.u32 %v3545, 2147483648
        %v3914 = vxor.u32 %v3550, 2147483648
        %v3915 = vxor.u32 %v3555, 2147483648
        %v3916 = vxor.u32 %v3560, 2147483648
        %v3917 = vxor.u32 %v3565, 2147483648
        %v3918 = vxor.u32 %v3570, 2147483648
        %v3919 = vxor.u32 %v3575, 2147483648
        %v3920 = vxor.u32 %v3580, 2147483648
        %v3921 = vxor.u32 %v3585, 2147483648
        %v3922 = vxor.u32 %v3590, 2147483648
        %v3923 = vxor.u32 %v3595, 2147483648
        %v3924 = vxor.u32 %v3600, 2147483648
        %v3925 = vxor.u32 %v3605, 2147483648
        %v3926 = vxor.u32 %v3610, 2147483648
        %v3927 = vxor.u32 %v3615, 2147483648
        %v3928 = vxor.u32 %v3620, 2147483648
        %v3929 = vxor.u32 %v3625, 2147483648
        %v3930 = vxor.u32 %v3630, 2147483648
        %v3931 = vxor.u32 %v3635, 2147483648
        %v3932 = vxor.u32 %v3640, 2147483648
        %v3933 = vxor.u32 %v3645, 2147483648
        %v3934 = vxor.u32 %v3650, 2147483648
        %v3935 = vxor.u32 %v3655, 2147483648
        %v3936 = vxor.u32 %v3660, 2147483648
        %v3937 = vxor.u32 %v3665, 2147483648
        %v3938 = vxor.u32 %v3670, 2147483648
        %v3939 = vxor.u32 %v3675, 2147483648
        %v3940 = vmul.f32 %v3908, 1.442695
        %v3941 = vpow.pop %v3940
        %v3942 = vmul.f32 %v3909, 1.442695
        %v3943 = vpow.pop %v3942
        %v3944 = vmul.f32 %v3910, 1.442695
        %v3945 = vpow.pop %v3944
        %v3946 = vmul.f32 %v3911, 1.442695
        %v3947 = vpow.pop %v3946
        %v3948 = vmul.f32 %v3912, 1.442695
        %v3949 = vpow.pop %v3948
        %v3950 = vmul.f32 %v3913, 1.442695
        %v3951 = vpow.pop %v3950
        %v3952 = vmul.f32 %v3914, 1.442695
        %v3953 = vpow.pop %v3952
        %v3954 = vmul.f32 %v3915, 1.442695
        %v3955 = vpow.pop %v3954
        %v3956 = vmul.f32 %v3916, 1.442695
        %v3957 = vpow.pop %v3956
        %v3958 = vmul.f32 %v3917, 1.442695
        %v3959 = vpow.pop %v3958
        %v3960 = vmul.f32 %v3918, 1.442695
        %v3961 = vpow.pop %v3960
        %v3962 = vmul.f32 %v3919, 1.442695
        %v3963 = vpow.pop %v3962
        %v3964 = vmul.f32 %v3920, 1.442695
        %v3965 = vpow.pop %v3964
        %v3966 = vmul.f32 %v3921, 1.442695
        %v3967 = vpow.pop %v3966
        %v3968 = vmul.f32 %v3922, 1.442695
        %v3969 = vpow.pop %v3968
        %v3970 = vmul.f32 %v3923, 1.442695
        %v3971 = vpow.pop %v3970
        %v3972 = vmul.f32 %v3924, 1.442695
        %v3973 = vpow.pop %v3972
        %v3974 = vmul.f32 %v3925, 1.442695
        %v3975 = vpow.pop %v3974
        %v3976 = vmul.f32 %v3926, 1.442695
        %v3977 = vpow.pop %v3976
        %v3978 = vmul.f32 %v3927, 1.442695
        %v3979 = vpow.pop %v3978
        %v3980 = vmul.f32 %v3928, 1.442695
        %v3981 = vpow.pop %v3980
        %v3982 = vmul.f32 %v3929, 1.442695
        %v3983 = vpow.pop %v3982
        %v3984 = vmul.f32 %v3930, 1.442695
        %v3985 = vpow.pop %v3984
        %v3986 = vmul.f32 %v3931, 1.442695
        %v3987 = vpow.pop %v3986
        %v3988 = vmul.f32 %v3932, 1.442695
        %v3989 = vpow.pop %v3988
        %v3990 = vmul.f32 %v3933, 1.442695
        %v3991 = vpow.pop %v3990
        %v3992 = vmul.f32 %v3934, 1.442695
        %v3993 = vpow.pop %v3992
        %v3994 = vmul.f32 %v3935, 1.442695
        %v3995 = vpow.pop %v3994
        %v3996 = vmul.f32 %v3936, 1.442695
        %v3997 = vpow.pop %v3996
        %v3998 = vmul.f32 %v3937, 1.442695
        %v3999 = vpow.pop %v3998
        %v4000 = vmul.f32 %v3938, 1.442695
        %v4001 = vpow.pop %v4000
        %v4002 = vmul.f32 %v3939, 1.442695
        %v4003 = vpow.pop %v4002
        %v4004 = vadd.f32 %v3941, 1.0
        %v4005 = vadd.f32 %v3943, 1.0
        %v4006 = vadd.f32 %v3945, 1.0
        %v4007 = vadd.f32 %v3947, 1.0
        %v4008 = vadd.f32 %v3949, 1.0
        %v4009 = vadd.f32 %v3951, 1.0
        %v4010 = vadd.f32 %v3953, 1.0
        %v4011 = vadd.f32 %v3955, 1.0
        %v4012 = vadd.f32 %v3957, 1.0
        %v4013 = vadd.f32 %v3959, 1.0
        %v4014 = vadd.f32 %v3961, 1.0
        %v4015 = vadd.f32 %v3963, 1.0
        %v4016 = vadd.f32 %v3965, 1.0
        %v4017 = vadd.f32 %v3967, 1.0
        %v4018 = vadd.f32 %v3969, 1.0
        %v4019 = vadd.f32 %v3971, 1.0
        %v4020 = vadd.f32 %v3973, 1.0
        %v4021 = vadd.f32 %v3975, 1.0
        %v4022 = vadd.f32 %v3977, 1.0
        %v4023 = vadd.f32 %v3979, 1.0
        %v4024 = vadd.f32 %v3981, 1.0
        %v4025 = vadd.f32 %v3983, 1.0
        %v4026 = vadd.f32 %v3985, 1.0
        %v4027 = vadd.f32 %v3987, 1.0
        %v4028 = vadd.f32 %v3989, 1.0
        %v4029 = vadd.f32 %v3991, 1.0
        %v4030 = vadd.f32 %v3993, 1.0
        %v4031 = vadd.f32 %v3995, 1.0
        %v4032 = vadd.f32 %v3997, 1.0
        %v4033 = vadd.f32 %v3999, 1.0
        %v4034 = vadd.f32 %v4001, 1.0
        %v4035 = vadd.f32 %v4003, 1.0
        %v4036 = vrcp.pop %v4004
        %v4037 = vmul.f32 1.0, %v4036
        %v4038 = vrcp.pop %v4005
        %v4039 = vmul.f32 1.0, %v4038
        %v4040 = vrcp.pop %v4006
        %v4041 = vmul.f32 1.0, %v4040
        %v4042 = vrcp.pop %v4007
        %v4043 = vmul.f32 1.0, %v4042
        %v4044 = vrcp.pop %v4008
        %v4045 = vmul.f32 1.0, %v4044
        %v4046 = vrcp.pop %v4009
        %v4047 = vmul.f32 1.0, %v4046
        %v4048 = vrcp.pop %v4010
        %v4049 = vmul.f32 1.0, %v4048
        %v4050 = vrcp.pop %v4011
        %v4051 = vmul.f32 1.0, %v4050
        %v4052 = vrcp.pop %v4012
        %v4053 = vmul.f32 1.0, %v4052
        %v4054 = vrcp.pop %v4013
        %v4055 = vmul.f32 1.0, %v4054
        %v4056 = vrcp.pop %v4014
        %v4057 = vmul.f32 1.0, %v4056
        %v4058 = vrcp.pop %v4015
        %v4059 = vmul.f32 1.0, %v4058
        %v4060 = vrcp.pop %v4016
        %v4061 = vmul.f32 1.0, %v4060
        %v4062 = vrcp.pop %v4017
        %v4063 = vmul.f32 1.0, %v4062
        %v4064 = vrcp.pop %v4018
        %v4065 = vmul.f32 1.0, %v4064
        %v4066 = vrcp.pop %v4019
        %v4067 = vmul.f32 1.0, %v4066
        %v4068 = vrcp.pop %v4020
        %v4069 = vmul.f32 1.0, %v4068
        %v4070 = vrcp.pop %v4021
        %v4071 = vmul.f32 1.0, %v4070
        %v4072 = vrcp.pop %v4022
        %v4073 = vmul.f32 1.0, %v4072
        %v4074 = vrcp.pop %v4023
        %v4075 = vmul.f32 1.0, %v4074
        %v4076 = vrcp.pop %v4024
        %v4077 = vmul.f32 1.0, %v4076
        %v4078 = vrcp.pop %v4025
        %v4079 = vmul.f32 1.0, %v4078
        %v4080 = vrcp.pop %v4026
        %v4081 = vmul.f32 1.0, %v4080
        %v4082 = vrcp.pop %v4027
        %v4083 = vmul.f32 1.0, %v4082
        %v4084 = vrcp.pop %v4028
        %v4085 = vmul.f32 1.0, %v4084
        %v4086 = vrcp.pop %v4029
        %v4087 = vmul.f32 1.0, %v4086
        %v4088 = vrcp.pop %v4030
        %v4089 = vmul.f32 1.0, %v4088
        %v4090 = vrcp.pop %v4031
        %v4091 = vmul.f32 1.0, %v4090
        %v4092 = vrcp.pop %v4032
        %v4093 = vmul.f32 1.0, %v4092
        %v4094 = vrcp.pop %v4033
        %v4095 = vmul.f32 1.0, %v4094
        %v4096 = vrcp.pop %v4034
        %v4097 = vmul.f32 1.0, %v4096
        %v4098 = vrcp.pop %v4035
        %v4099 = vmul.f32 1.0, %v4098
        %v4100 = vadd.f32 %v3520, %v3876
        %v4101 = vadd.f32 %v3525, %v3877
        %v4102 = vadd.f32 %v3530, %v3878
        %v4103 = vadd.f32 %v3535, %v3879
        %v4104 = vadd.f32 %v3540, %v3880
        %v4105 = vadd.f32 %v3545, %v3881
        %v4106 = vadd.f32 %v3550, %v3882
        %v4107 = vadd.f32 %v3555, %v3883
        %v4108 = vadd.f32 %v3560, %v3884
        %v4109 = vadd.f32 %v3565, %v3885
        %v4110 = vadd.f32 %v3570, %v3886
        %v4111 = vadd.f32 %v3575, %v3887
        %v4112 = vadd.f32 %v3580, %v3888
        %v4113 = vadd.f32 %v3585, %v3889
        %v4114 = vadd.f32 %v3590, %v3890
        %v4115 = vadd.f32 %v3595, %v3891
        %v4116 = vadd.f32 %v3600, %v3892
        %v4117 = vadd.f32 %v3605, %v3893
        %v4118 = vadd.f32 %v3610, %v3894
        %v4119 = vadd.f32 %v3615, %v3895
        %v4120 = vadd.f32 %v3620, %v3896
        %v4121 = vadd.f32 %v3625, %v3897
        %v4122 = vadd.f32 %v3630, %v3898
        %v4123 = vadd.f32 %v3635, %v3899
        %v4124 = vadd.f32 %v3640, %v3900
        %v4125 = vadd.f32 %v3645, %v3901
        %v4126 = vadd.f32 %v3650, %v3902
        %v4127 = vadd.f32 %v3655, %v3903
        %v4128 = vadd.f32 %v3660, %v3904
        %v4129 = vadd.f32 %v3665, %v3905
        %v4130 = vadd.f32 %v3670, %v3906
        %v4131 = vadd.f32 %v3675, %v3907
        %v4132 = vsel %vm281, 1, 0
        %vm4133 = vcmp.eq.s32.totalorder %v4132, 1
        %v4134 = vsel %vm4133, %v4037, %v4100
        %v4135 = vsel %vm4133, %v4039, %v4101
        %v4136 = vsel %vm4133, %v4041, %v4102
        %v4137 = vsel %vm4133, %v4043, %v4103
        %v4138 = vsel %vm4133, %v4045, %v4104
        %v4139 = vsel %vm4133, %v4047, %v4105
        %v4140 = vsel %vm4133, %v4049, %v4106
        %v4141 = vsel %vm4133, %v4051, %v4107
        %v4142 = vsel %vm4133, %v4053, %v4108
        %v4143 = vsel %vm4133, %v4055, %v4109
        %v4144 = vsel %vm4133, %v4057, %v4110
        %v4145 = vsel %vm4133, %v4059, %v4111
        %v4146 = vsel %vm4133, %v4061, %v4112
        %v4147 = vsel %vm4133, %v4063, %v4113
        %v4148 = vsel %vm4133, %v4065, %v4114
        %v4149 = vsel %vm4133, %v4067, %v4115
        %v4150 = vsel %vm4133, %v4069, %v4116
        %v4151 = vsel %vm4133, %v4071, %v4117
        %v4152 = vsel %vm4133, %v4073, %v4118
        %v4153 = vsel %vm4133, %v4075, %v4119
        %v4154 = vsel %vm4133, %v4077, %v4120
        %v4155 = vsel %vm4133, %v4079, %v4121
        %v4156 = vsel %vm4133, %v4081, %v4122
        %v4157 = vsel %vm4133, %v4083, %v4123
        %v4158 = vsel %vm4133, %v4085, %v4124
        %v4159 = vsel %vm4133, %v4087, %v4125
        %v4160 = vsel %vm4133, %v4089, %v4126
        %v4161 = vsel %vm4133, %v4091, %v4127
        %v4162 = vsel %vm4133, %v4093, %v4128
        %v4163 = vsel %vm4133, %v4095, %v4129
        %v4164 = vsel %vm4133, %v4097, %v4130
        %v4165 = vsel %vm4133, %v4099, %v4131
        %4166 = vst [vmem:[%s271] sm:$0xff] %v4134
        %4167 = vst [vmem:[%s271 + $0x8] sm:$0xff] %v4135
        %4168 = vst [vmem:[%s271 + $0x10] sm:$0xff] %v4136
        %4169 = vst [vmem:[%s271 + $0x18] sm:$0xff] %v4137
        %4170 = vst [vmem:[%s271 + $0x20] sm:$0xff] %v4138
        %4171 = vst [vmem:[%s271 + $0x28] sm:$0xff] %v4139
        %4172 = vst [vmem:[%s271 + $0x30] sm:$0xff] %v4140
        %4173 = vst [vmem:[%s271 + $0x38] sm:$0xff] %v4141
        %4174 = vst [vmem:[%s271 + $0x40] sm:$0xff] %v4142
        %4175 = vst [vmem:[%s271 + $0x48] sm:$0xff] %v4143
        %4176 = vst [vmem:[%s271 + $0x50] sm:$0xff] %v4144
        %4177 = vst [vmem:[%s271 + $0x58] sm:$0xff] %v4145
        %4178 = vst [vmem:[%s271 + $0x60] sm:$0xff] %v4146
        %4179 = vst [vmem:[%s271 + $0x68] sm:$0xff] %v4147
        %4180 = vst [vmem:[%s271 + $0x70] sm:$0xff] %v4148
        %4181 = vst [vmem:[%s271 + $0x78] sm:$0xff] %v4149
        %4182 = vst [vmem:[%s271 + $0x80] sm:$0xff] %v4150
        %4183 = vst [vmem:[%s271 + $0x88] sm:$0xff] %v4151
        %4184 = vst [vmem:[%s271 + $0x90] sm:$0xff] %v4152
        %4185 = vst [vmem:[%s271 + $0x98] sm:$0xff] %v4153
        %4186 = vst [vmem:[%s271 + $0xa0] sm:$0xff] %v4154
        %4187 = vst [vmem:[%s271 + $0xa8] sm:$0xff] %v4155
        %4188 = vst [vmem:[%s271 + $0xb0] sm:$0xff] %v4156
        %4189 = vst [vmem:[%s271 + $0xb8] sm:$0xff] %v4157
        %4190 = vst [vmem:[%s271 + $0xc0] sm:$0xff] %v4158
        %4191 = vst [vmem:[%s271 + $0xc8] sm:$0xff] %v4159
        %4192 = vst [vmem:[%s271 + $0xd0] sm:$0xff] %v4160
        %4193 = vst [vmem:[%s271 + $0xd8] sm:$0xff] %v4161
        %4194 = vst [vmem:[%s271 + $0xe0] sm:$0xff] %v4162
        %4195 = vst [vmem:[%s271 + $0xe8] sm:$0xff] %v4163
        %4196 = vst [vmem:[%s271 + $0xf0] sm:$0xff] %v4164
        %4197 = vst [vmem:[%s271 + $0xf8] sm:$0xff] %v4165
        %v4198 = vld [vmem:[%s276 + $0x100] sm:$0xff]
        %v4199 = vld [vmem:[%s276 + $0x108] sm:$0xff]
        %v4200 = vld [vmem:[%s276 + $0x110] sm:$0xff]
        %v4201 = vld [vmem:[%s276 + $0x118] sm:$0xff]
        %v4202 = vld [vmem:[%s276 + $0x120] sm:$0xff]
        %v4203 = vld [vmem:[%s276 + $0x128] sm:$0xff]
        %v4204 = vld [vmem:[%s276 + $0x130] sm:$0xff]
        %v4205 = vld [vmem:[%s276 + $0x138] sm:$0xff]
        %s4206 = scalar_lea.vmem %s1, 32
        %v4207 = vld [vmem:[%s4206] sm:$0xff]
        %v4208 = vld [vmem:[%s4206 + $0x8] sm:$0xff]
        %v4209 = vld [vmem:[%s4206 + $0x10] sm:$0xff]
        %v4210 = vld [vmem:[%s4206 + $0x18] sm:$0xff]
        %s4211 = scalar_lea.vmem %s2, 1
        %v4212 = vld [vmem:[%s4211] sm:$0x1]
        %v4214 = vlaneseq
        %v4215 = vshrl.u32 %v4214, 7
        %v4216 = vsub.s32 0, %v4215
        %v4217 = vrot.slane %v4212, %v4216
        %v4220 = vsel %vm325, %v4198, 0
        %v4223 = vsel %vm325, %v4199, 0
        %v4226 = vsel %vm325, %v4200, 0
        %v4229 = vsel %vm325, %v4201, 0
        %v4232 = vsel %vm325, %v4202, 0
        %v4235 = vsel %vm325, %v4203, 0
        %v4238 = vsel %vm325, %v4204, 0
        %v4241 = vsel %vm325, %v4205, 0
        %4243 = vmatprep.subr.mxu0 0.0
        %4244 = vmatpush1.msra.mxu0 0.0
        %4245 = vmatprep.subr.mxu0 0.0
        %4246 = vmatpush1.msra.mxu0 0.0
        %4247 = vmatprep.subr.mxu0 0.0
        %4248 = vmatpush1.msra.mxu0 0.0
        %4249 = vmatprep.subr.mxu0 0.0
        %4250 = vmatpush1.msra.mxu0 0.0
        %4251 = vmatprep.subr.mxu0 0.0
        %4252 = vmatpush1.msra.mxu0 0.0
        %4253 = vmatprep.subr.mxu0 0.0
        %4254 = vmatpush1.msra.mxu0 0.0
        %4255 = vmatprep.subr.mxu0 0.0
        %4256 = vmatpush1.msra.mxu0 0.0
        %4257 = vmatprep.subr.mxu0 0.0
        %4258 = vmatpush1.msra.mxu0 0.0
        %4259 = vmatprep.subr.mxu0 0.0
        %4260 = vmatpush1.msra.mxu0 0.0
        %4261 = vmatprep.subr.mxu0 0.0
        %4262 = vmatpush1.msra.mxu0 0.0
        %4263 = vmatprep.subr.mxu0 0.0
        %4264 = vmatpush1.msra.mxu0 0.0
        %4265 = vmatprep.subr.mxu0 0.0
        %4266 = vmatpush1.msra.mxu0 0.0
        %4267 = vmatprep.subr.mxu0 0.0
        %4268 = vmatpush1.msra.mxu0 %v4210
        %4269 = vmatprep.subr.mxu0 0.0
        %4270 = vmatpush1.msra.mxu0 %v4209
        %4271 = vmatprep.subr.mxu0 0.0
        %4272 = vmatpush1.msra.mxu0 %v4208
        %4273 = vmatprep.subr.mxu0 0.0
        %4274 = vmatpush1.msra.mxu0 %v4207
        %4275 = vmatprep.subr.mxu0 0.0
        %4276 = vmatpush2.msra.mxu0 0.0
        %4277 = vmatprep.subr.mxu0 0.0
        %4278 = vmatpush2.msra.mxu0 0.0
        %4279 = vmatprep.subr.mxu0 0.0
        %4280 = vmatpush2.msra.mxu0 0.0
        %4281 = vmatprep.subr.mxu0 0.0
        %4282 = vmatpush2.msra.mxu0 0.0
        %4283 = vmatprep.subr.mxu0 0.0
        %4284 = vmatpush2.msra.mxu0 0.0
        %4285 = vmatprep.subr.mxu0 0.0
        %4286 = vmatpush2.msra.mxu0 0.0
        %4287 = vmatprep.subr.mxu0 0.0
        %4288 = vmatpush2.msra.mxu0 0.0
        %4289 = vmatprep.subr.mxu0 0.0
        %4290 = vmatpush2.msra.mxu0 0.0
        %4291 = vmatprep.subr.mxu0 0.0
        %4292 = vmatpush2.msra.mxu0 0.0
        %4293 = vmatprep.subr.mxu0 0.0
        %4294 = vmatpush2.msra.mxu0 0.0
        %4295 = vmatprep.subr.mxu0 0.0
        %4296 = vmatpush2.msra.mxu0 0.0
        %4297 = vmatprep.subr.mxu0 0.0
        %4298 = vmatpush2.msra.mxu0 0.0
        %4299 = vmatprep.subr.mxu0 0.0
        %4300 = vmatpush2.msra.mxu0 0.0
        %4301 = vmatprep.subr.mxu0 0.0
        %4302 = vmatpush2.msra.mxu0 0.0
        %4303 = vmatprep.subr.mxu0 0.0
        %4304 = vmatpush2.msra.mxu0 0.0
        %4305 = vmatprep.subr.mxu0 0.0
        %4306 = vmatpush2.msra.mxu0 0.0
        %4307 = vmatprep.mubr.f32.mxu0 0.0
        %4308 = vmatmul.mubr.f32.gmra.mxu0 %v4220
        %v4309 = vpop.f32.mrf.mxu0
        %v4310 = vadd.f32 %v4217, %v4309
        %v4311 = vpop.f32.mrf.mxu0
        %4312 = vmatprep.mubr.f32.mxu0 0.0
        %4313 = vmatmul.mubr.f32.gmra.mxu0 %v4223
        %v4314 = vpop.f32.mrf.mxu0
        %v4315 = vadd.f32 %v4217, %v4314
        %v4316 = vpop.f32.mrf.mxu0
        %4317 = vmatprep.mubr.f32.mxu0 0.0
        %4318 = vmatmul.mubr.f32.gmra.mxu0 %v4226
        %v4319 = vpop.f32.mrf.mxu0
        %v4320 = vadd.f32 %v4217, %v4319
        %v4321 = vpop.f32.mrf.mxu0
        %4322 = vmatprep.mubr.f32.mxu0 0.0
        %4323 = vmatmul.mubr.f32.gmra.mxu0 %v4229
        %v4324 = vpop.f32.mrf.mxu0
        %v4325 = vadd.f32 %v4217, %v4324
        %v4326 = vpop.f32.mrf.mxu0
        %4327 = vmatprep.mubr.f32.mxu0 0.0
        %4328 = vmatmul.mubr.f32.gmra.mxu0 %v4232
        %v4329 = vpop.f32.mrf.mxu0
        %v4330 = vadd.f32 %v4217, %v4329
        %v4331 = vpop.f32.mrf.mxu0
        %4332 = vmatprep.mubr.f32.mxu0 0.0
        %4333 = vmatmul.mubr.f32.gmra.mxu0 %v4235
        %v4334 = vpop.f32.mrf.mxu0
        %v4335 = vadd.f32 %v4217, %v4334
        %v4336 = vpop.f32.mrf.mxu0
        %4337 = vmatprep.mubr.f32.mxu0 0.0
        %4338 = vmatmul.mubr.f32.gmra.mxu0 %v4238
        %v4339 = vpop.f32.mrf.mxu0
        %v4340 = vadd.f32 %v4217, %v4339
        %v4341 = vpop.f32.mrf.mxu0
        %4342 = vmatprep.mubr.f32.mxu0 0.0
        %4343 = vmatmul.mubr.f32.gmra.mxu0 %v4241
        %v4344 = vpop.f32.mrf.mxu0
        %v4345 = vadd.f32 %v4217, %v4344
        %v4346 = vpop.f32.mrf.mxu0
        %4347 = vdwg.mxu0
        %v4348 = vxor.u32 %v4310, 2147483648
        %v4349 = vxor.u32 %v4315, 2147483648
        %v4350 = vxor.u32 %v4320, 2147483648
        %v4351 = vxor.u32 %v4325, 2147483648
        %v4352 = vxor.u32 %v4330, 2147483648
        %v4353 = vxor.u32 %v4335, 2147483648
        %v4354 = vxor.u32 %v4340, 2147483648
        %v4355 = vxor.u32 %v4345, 2147483648
        %v4356 = vmul.f32 %v4348, 1.442695
        %v4357 = vpow.pop %v4356
        %v4358 = vmul.f32 %v4349, 1.442695
        %v4359 = vpow.pop %v4358
        %v4360 = vmul.f32 %v4350, 1.442695
        %v4361 = vpow.pop %v4360
        %v4362 = vmul.f32 %v4351, 1.442695
        %v4363 = vpow.pop %v4362
        %v4364 = vmul.f32 %v4352, 1.442695
        %v4365 = vpow.pop %v4364
        %v4366 = vmul.f32 %v4353, 1.442695
        %v4367 = vpow.pop %v4366
        %v4368 = vmul.f32 %v4354, 1.442695
        %v4369 = vpow.pop %v4368
        %v4370 = vmul.f32 %v4355, 1.442695
        %v4371 = vpow.pop %v4370
        %v4372 = vadd.f32 %v4357, 1.0
        %v4373 = vadd.f32 %v4359, 1.0
        %v4374 = vadd.f32 %v4361, 1.0
        %v4375 = vadd.f32 %v4363, 1.0
        %v4376 = vadd.f32 %v4365, 1.0
        %v4377 = vadd.f32 %v4367, 1.0
        %v4378 = vadd.f32 %v4369, 1.0
        %v4379 = vadd.f32 %v4371, 1.0
        %v4380 = vrcp.pop %v4372
        %v4381 = vmul.f32 1.0, %v4380
        %v4382 = vrcp.pop %v4373
        %v4383 = vmul.f32 1.0, %v4382
        %v4384 = vrcp.pop %v4374
        %v4385 = vmul.f32 1.0, %v4384
        %v4386 = vrcp.pop %v4375
        %v4387 = vmul.f32 1.0, %v4386
        %v4388 = vrcp.pop %v4376
        %v4389 = vmul.f32 1.0, %v4388
        %v4390 = vrcp.pop %v4377
        %v4391 = vmul.f32 1.0, %v4390
        %v4392 = vrcp.pop %v4378
        %v4393 = vmul.f32 1.0, %v4392
        %v4394 = vrcp.pop %v4379
        %v4395 = vmul.f32 1.0, %v4394
        %v4396 = vmul.f32 %v4310, %v4381
        %v4397 = vmul.f32 %v4315, %v4383
        %v4398 = vmul.f32 %v4320, %v4385
        %v4399 = vmul.f32 %v4325, %v4387
        %v4400 = vmul.f32 %v4330, %v4389
        %v4401 = vmul.f32 %v4335, %v4391
        %v4402 = vmul.f32 %v4340, %v4393
        %v4403 = vmul.f32 %v4345, %v4395
        %4404 = vst.msk [vmem:[#allocation3] sm:$0xff] %vm325, 0.0
        %4405 = vst.msk [vmem:[#allocation3 + $0x8] sm:$0xff] %vm325, 0.0
        %4406 = vst.msk [vmem:[#allocation3 + $0x50] sm:$0xff] %vm325, 0.0
        %4407 = vst.msk [vmem:[#allocation3 + $0x58] sm:$0xff] %vm325, 0.0
        %4408 = vst.msk [vmem:[#allocation3 + $0x10] sm:$0xff] %vm325, %v4396
        %4409 = vst.msk [vmem:[#allocation3 + $0x18] sm:$0xff] %vm325, %v4397
        %4410 = vst.msk [vmem:[#allocation3 + $0x20] sm:$0xff] %vm325, %v4398
        %4411 = vst.msk [vmem:[#allocation3 + $0x28] sm:$0xff] %vm325, %v4399
        %4412 = vst.msk [vmem:[#allocation3 + $0x30] sm:$0xff] %vm325, %v4400
        %4413 = vst.msk [vmem:[#allocation3 + $0x38] sm:$0xff] %vm325, %v4401
        %4414 = vst.msk [vmem:[#allocation3 + $0x40] sm:$0xff] %vm325, %v4402
        %4415 = vst.msk [vmem:[#allocation3 + $0x48] sm:$0xff] %vm325, %v4403
        %v4416 = vrcp.pop 8.0
        %v4417 = vmul.f32 %v942, %v4416
        %v4418 = vmul.f32 %v943, %v4416
        %v4419 = vmul.f32 %v944, %v4416
        %v4420 = vmul.f32 %v945, %v4416
        %v4421 = vmul.f32 %v946, %v4416
        %v4422 = vmul.f32 %v947, %v4416
        %v4423 = vmul.f32 %v948, %v4416
        %v4424 = vmul.f32 %v949, %v4416
        %v4425 = vfloor.f32 %v4417
        %v4426 = vfloor.f32 %v4418
        %v4427 = vfloor.f32 %v4419
        %v4428 = vfloor.f32 %v4420
        %v4429 = vfloor.f32 %v4421
        %v4430 = vfloor.f32 %v4422
        %v4431 = vfloor.f32 %v4423
        %v4432 = vfloor.f32 %v4424
        %v4433 = vmul.f32 %v4425, 8.0
        %v4434 = vmul.f32 %v4426, 8.0
        %v4435 = vmul.f32 %v4427, 8.0
        %v4436 = vmul.f32 %v4428, 8.0
        %v4437 = vmul.f32 %v4429, 8.0
        %v4438 = vmul.f32 %v4430, 8.0
        %v4439 = vmul.f32 %v4431, 8.0
        %v4440 = vmul.f32 %v4432, 8.0
        %v4441 = vsub.f32 %v942, %v4433
        %v4442 = vsub.f32 %v943, %v4434
        %v4443 = vsub.f32 %v944, %v4435
        %v4444 = vsub.f32 %v945, %v4436
        %v4445 = vsub.f32 %v946, %v4437
        %v4446 = vsub.f32 %v947, %v4438
        %v4447 = vsub.f32 %v948, %v4439
        %v4448 = vsub.f32 %v949, %v4440
        %vm4449 = vcmp.ne.f32.partialorder %v4441, 0.0
        %vm4450 = vcmp.ne.f32.partialorder %v4442, 0.0
        %vm4451 = vcmp.ne.f32.partialorder %v4443, 0.0
        %vm4452 = vcmp.ne.f32.partialorder %v4444, 0.0
        %vm4453 = vcmp.ne.f32.partialorder %v4445, 0.0
        %vm4454 = vcmp.ne.f32.partialorder %v4446, 0.0
        %vm4455 = vcmp.ne.f32.partialorder %v4447, 0.0
        %vm4456 = vcmp.ne.f32.partialorder %v4448, 0.0
        %v4457 = vsel %vm4449, 1, 0
        %v4458 = vsel %vm4450, 1, 0
        %v4459 = vsel %vm4451, 1, 0
        %v4460 = vsel %vm4452, 1, 0
        %v4461 = vsel %vm4453, 1, 0
        %v4462 = vsel %vm4454, 1, 0
        %v4463 = vsel %vm4455, 1, 0
        %v4464 = vsel %vm4456, 1, 0
        %v4465 = vcvt.s32.f32 %v4457
        %v4466 = vcvt.s32.f32 %v4458
        %v4467 = vcvt.s32.f32 %v4459
        %v4468 = vcvt.s32.f32 %v4460
        %v4469 = vcvt.s32.f32 %v4461
        %v4470 = vcvt.s32.f32 %v4462
        %v4471 = vcvt.s32.f32 %v4463
        %v4472 = vcvt.s32.f32 %v4464
        %vm4473 = vcmp.ne.f32.partialorder %v4441, 7.0
        %vm4474 = vcmp.ne.f32.partialorder %v4442, 7.0
        %vm4475 = vcmp.ne.f32.partialorder %v4443, 7.0
        %vm4476 = vcmp.ne.f32.partialorder %v4444, 7.0
        %vm4477 = vcmp.ne.f32.partialorder %v4445, 7.0
        %vm4478 = vcmp.ne.f32.partialorder %v4446, 7.0
        %vm4479 = vcmp.ne.f32.partialorder %v4447, 7.0
        %vm4480 = vcmp.ne.f32.partialorder %v4448, 7.0
        %v4481 = vsel %vm4473, 1, 0
        %v4482 = vsel %vm4474, 1, 0
        %v4483 = vsel %vm4475, 1, 0
        %v4484 = vsel %vm4476, 1, 0
        %v4485 = vsel %vm4477, 1, 0
        %v4486 = vsel %vm4478, 1, 0
        %v4487 = vsel %vm4479, 1, 0
        %v4488 = vsel %vm4480, 1, 0
        %v4489 = vcvt.s32.f32 %v4481
        %v4490 = vcvt.s32.f32 %v4482
        %v4491 = vcvt.s32.f32 %v4483
        %v4492 = vcvt.s32.f32 %v4484
        %v4493 = vcvt.s32.f32 %v4485
        %v4494 = vcvt.s32.f32 %v4486
        %v4495 = vcvt.s32.f32 %v4487
        %v4496 = vcvt.s32.f32 %v4488
        %v4497 = vld [vmem:[#allocation3 + $0x7] sm:$0xff]
        %v4498 = vld [vmem:[#allocation3 + $0xf] sm:$0xff]
        %v4499 = vld [vmem:[#allocation3 + $0x17] sm:$0xff]
        %v4500 = vld [vmem:[#allocation3 + $0x1f] sm:$0xff]
        %v4501 = vld [vmem:[#allocation3 + $0x27] sm:$0xff]
        %v4502 = vld [vmem:[#allocation3 + $0x2f] sm:$0xff]
        %v4503 = vld [vmem:[#allocation3 + $0x37] sm:$0xff]
        %v4504 = vld [vmem:[#allocation3 + $0x3f] sm:$0xff]
        %v4505 = vmul.f32 %v4497, %v4465
        %v4506 = vmul.f32 %v4498, %v4466
        %v4507 = vmul.f32 %v4499, %v4467
        %v4508 = vmul.f32 %v4500, %v4468
        %v4509 = vmul.f32 %v4501, %v4469
        %v4510 = vmul.f32 %v4502, %v4470
        %v4511 = vmul.f32 %v4503, %v4471
        %v4512 = vmul.f32 %v4504, %v4472
        %v4513 = vld [vmem:[#allocation3 + $0x8] sm:$0xff]
        %v4514 = vld [vmem:[#allocation3 + $0x10] sm:$0xff]
        %v4515 = vld [vmem:[#allocation3 + $0x18] sm:$0xff]
        %v4516 = vld [vmem:[#allocation3 + $0x20] sm:$0xff]
        %v4517 = vld [vmem:[#allocation3 + $0x28] sm:$0xff]
        %v4518 = vld [vmem:[#allocation3 + $0x30] sm:$0xff]
        %v4519 = vld [vmem:[#allocation3 + $0x38] sm:$0xff]
        %v4520 = vld [vmem:[#allocation3 + $0x40] sm:$0xff]
        %v4521 = vld [vmem:[#allocation3 + $0x9] sm:$0xff]
        %v4522 = vld [vmem:[#allocation3 + $0x11] sm:$0xff]
        %v4523 = vld [vmem:[#allocation3 + $0x19] sm:$0xff]
        %v4524 = vld [vmem:[#allocation3 + $0x21] sm:$0xff]
        %v4525 = vld [vmem:[#allocation3 + $0x29] sm:$0xff]
        %v4526 = vld [vmem:[#allocation3 + $0x31] sm:$0xff]
        %v4527 = vld [vmem:[#allocation3 + $0x39] sm:$0xff]
        %v4528 = vld [vmem:[#allocation3 + $0x41] sm:$0xff]
        %v4529 = vmul.f32 %v4521, %v4489
        %v4530 = vmul.f32 %v4522, %v4490
        %v4531 = vmul.f32 %v4523, %v4491
        %v4532 = vmul.f32 %v4524, %v4492
        %v4533 = vmul.f32 %v4525, %v4493
        %v4534 = vmul.f32 %v4526, %v4494
        %v4535 = vmul.f32 %v4527, %v4495
        %v4536 = vmul.f32 %v4528, %v4496
        %v4537 = vld [vmem:[#allocation3 + $0x47] sm:$0xff]
        %v4538 = vmul.f32 %v4498, %v4465
        %v4539 = vmul.f32 %v4499, %v4466
        %v4540 = vmul.f32 %v4500, %v4467
        %v4541 = vmul.f32 %v4501, %v4468
        %v4542 = vmul.f32 %v4502, %v4469
        %v4543 = vmul.f32 %v4503, %v4470
        %v4544 = vmul.f32 %v4504, %v4471
        %v4545 = vmul.f32 %v4537, %v4472
        %v4546 = vld [vmem:[#allocation3 + $0x48] sm:$0xff]
        %v4547 = vld [vmem:[#allocation3 + $0x49] sm:$0xff]
        %v4548 = vmul.f32 %v4522, %v4489
        %v4549 = vmul.f32 %v4523, %v4490
        %v4550 = vmul.f32 %v4524, %v4491
        %v4551 = vmul.f32 %v4525, %v4492
        %v4552 = vmul.f32 %v4526, %v4493
        %v4553 = vmul.f32 %v4527, %v4494
        %v4554 = vmul.f32 %v4528, %v4495
        %v4555 = vmul.f32 %v4547, %v4496
        %v4556 = vld [vmem:[#allocation3 + $0x4f] sm:$0xff]
        %v4557 = vmul.f32 %v4499, %v4465
        %v4558 = vmul.f32 %v4500, %v4466
        %v4559 = vmul.f32 %v4501, %v4467
        %v4560 = vmul.f32 %v4502, %v4468
        %v4561 = vmul.f32 %v4503, %v4469
        %v4562 = vmul.f32 %v4504, %v4470
        %v4563 = vmul.f32 %v4537, %v4471
        %v4564 = vmul.f32 %v4556, %v4472
        %v4565 = vld [vmem:[#allocation3 + $0x50] sm:$0xff]
        %v4566 = vld [vmem:[#allocation3 + $0x51] sm:$0xff]
        %v4567 = vmul.f32 %v4523, %v4489
        %v4568 = vmul.f32 %v4524, %v4490
        %v4569 = vmul.f32 %v4525, %v4491
        %v4570 = vmul.f32 %v4526, %v4492
        %v4571 = vmul.f32 %v4527, %v4493
        %v4572 = vmul.f32 %v4528, %v4494
        %v4573 = vmul.f32 %v4547, %v4495
        %v4574 = vmul.f32 %v4566, %v4496
        %4583 = vrot.lane.b32.xlu0 %v4513, 32
        %v4584 = vpop.permute.xlu0 %4583
        %4585 = vrot.lane.b32.xlu0 %v4514, 32
        %v4586 = vpop.permute.xlu0 %4585
        %4587 = vrot.lane.b32.xlu0 %v4515, 32
        %v4588 = vpop.permute.xlu0 %4587
        %4589 = vrot.lane.b32.xlu0 %v4516, 32
        %v4590 = vpop.permute.xlu0 %4589
        %4591 = vrot.lane.b32.xlu0 %v4517, 32
        %v4592 = vpop.permute.xlu0 %4591
        %4593 = vrot.lane.b32.xlu0 %v4518, 32
        %v4594 = vpop.permute.xlu0 %4593
        %4595 = vrot.lane.b32.xlu0 %v4519, 32
        %v4596 = vpop.permute.xlu0 %4595
        %4597 = vrot.lane.b32.xlu0 %v4520, 32
        %v4598 = vpop.permute.xlu0 %4597
        %4615 = vrot.lane.b32.xlu0 %v4529, 64
        %v4616 = vpop.permute.xlu0 %4615
        %4617 = vrot.lane.b32.xlu0 %v4530, 64
        %v4618 = vpop.permute.xlu0 %4617
        %4619 = vrot.lane.b32.xlu0 %v4531, 64
        %v4620 = vpop.permute.xlu0 %4619
        %4621 = vrot.lane.b32.xlu0 %v4532, 64
        %v4622 = vpop.permute.xlu0 %4621
        %4623 = vrot.lane.b32.xlu0 %v4533, 64
        %v4624 = vpop.permute.xlu0 %4623
        %4625 = vrot.lane.b32.xlu0 %v4534, 64
        %v4626 = vpop.permute.xlu0 %4625
        %4627 = vrot.lane.b32.xlu0 %v4535, 64
        %v4628 = vpop.permute.xlu0 %4627
        %4629 = vrot.lane.b32.xlu0 %v4536, 64
        %v4630 = vpop.permute.xlu0 %4629
        %4647 = vrot.lane.b32.xlu0 %v4538, 96
        %v4648 = vpop.permute.xlu0 %4647
        %4649 = vrot.lane.b32.xlu0 %v4539, 96
        %v4650 = vpop.permute.xlu0 %4649
        %4651 = vrot.lane.b32.xlu0 %v4540, 96
        %v4652 = vpop.permute.xlu0 %4651
        %4653 = vrot.lane.b32.xlu0 %v4541, 96
        %v4654 = vpop.permute.xlu0 %4653
        %4655 = vrot.lane.b32.xlu0 %v4542, 96
        %v4656 = vpop.permute.xlu0 %4655
        %4657 = vrot.lane.b32.xlu0 %v4543, 96
        %v4658 = vpop.permute.xlu0 %4657
        %4659 = vrot.lane.b32.xlu0 %v4544, 96
        %v4660 = vpop.permute.xlu0 %4659
        %4661 = vrot.lane.b32.xlu0 %v4545, 96
        %v4662 = vpop.permute.xlu0 %4661
        %4679 = vrot.lane.b32.xlu0 %v4548, 32
        %v4680 = vpop.permute.xlu0 %4679
        %4681 = vrot.lane.b32.xlu0 %v4549, 32
        %v4682 = vpop.permute.xlu0 %4681
        %4683 = vrot.lane.b32.xlu0 %v4550, 32
        %v4684 = vpop.permute.xlu0 %4683
        %4685 = vrot.lane.b32.xlu0 %v4551, 32
        %v4686 = vpop.permute.xlu0 %4685
        %4687 = vrot.lane.b32.xlu0 %v4552, 32
        %v4688 = vpop.permute.xlu0 %4687
        %4689 = vrot.lane.b32.xlu0 %v4553, 32
        %v4690 = vpop.permute.xlu0 %4689
        %4691 = vrot.lane.b32.xlu0 %v4554, 32
        %v4692 = vpop.permute.xlu0 %4691
        %4693 = vrot.lane.b32.xlu0 %v4555, 32
        %v4694 = vpop.permute.xlu0 %4693
        %4711 = vrot.lane.b32.xlu0 %v4557, 64
        %v4712 = vpop.permute.xlu0 %4711
        %4713 = vrot.lane.b32.xlu0 %v4558, 64
        %v4714 = vpop.permute.xlu0 %4713
        %4715 = vrot.lane.b32.xlu0 %v4559, 64
        %v4716 = vpop.permute.xlu0 %4715
        %4717 = vrot.lane.b32.xlu0 %v4560, 64
        %v4718 = vpop.permute.xlu0 %4717
        %4719 = vrot.lane.b32.xlu0 %v4561, 64
        %v4720 = vpop.permute.xlu0 %4719
        %4721 = vrot.lane.b32.xlu0 %v4562, 64
        %v4722 = vpop.permute.xlu0 %4721
        %4723 = vrot.lane.b32.xlu0 %v4563, 64
        %v4724 = vpop.permute.xlu0 %4723
        %4725 = vrot.lane.b32.xlu0 %v4564, 64
        %v4726 = vpop.permute.xlu0 %4725
        %4737 = vrot.lane.b32.xlu0 %v4515, 96
        %v4738 = vpop.permute.xlu0 %4737
        %4739 = vrot.lane.b32.xlu0 %v4516, 96
        %v4740 = vpop.permute.xlu0 %4739
        %4741 = vrot.lane.b32.xlu0 %v4517, 96
        %v4742 = vpop.permute.xlu0 %4741
        %4743 = vrot.lane.b32.xlu0 %v4518, 96
        %v4744 = vpop.permute.xlu0 %4743
        %4745 = vrot.lane.b32.xlu0 %v4519, 96
        %v4746 = vpop.permute.xlu0 %4745
        %4747 = vrot.lane.b32.xlu0 %v4520, 96
        %v4748 = vpop.permute.xlu0 %4747
        %4749 = vrot.lane.b32.xlu0 %v4546, 96
        %v4750 = vpop.permute.xlu0 %4749
        %4751 = vrot.lane.b32.xlu0 %v4565, 96
        %v4752 = vpop.permute.xlu0 %4751
        %v4761 = vsel %vm325, %v4505, %v4584
        %v4762 = vsel %vm325, %v4506, %v4586
        %v4763 = vsel %vm325, %v4507, %v4588
        %v4764 = vsel %vm325, %v4508, %v4590
        %v4765 = vsel %vm325, %v4509, %v4592
        %v4766 = vsel %vm325, %v4510, %v4594
        %v4767 = vsel %vm325, %v4511, %v4596
        %v4768 = vsel %vm325, %v4512, %v4598
        %v4769 = vsel %vm2367, %v4761, %v4616
        %v4770 = vsel %vm2367, %v4762, %v4618
        %v4771 = vsel %vm2367, %v4763, %v4620
        %v4772 = vsel %vm2367, %v4764, %v4622
        %v4773 = vsel %vm2367, %v4765, %v4624
        %v4774 = vsel %vm2367, %v4766, %v4626
        %v4775 = vsel %vm2367, %v4767, %v4628
        %v4776 = vsel %vm2367, %v4768, %v4630
        %v4777 = vsel %vm2400, %v4769, %v4648
        %v4778 = vsel %vm2400, %v4770, %v4650
        %v4779 = vsel %vm2400, %v4771, %v4652
        %v4780 = vsel %vm2400, %v4772, %v4654
        %v4781 = vsel %vm2400, %v4773, %v4656
        %v4782 = vsel %vm2400, %v4774, %v4658
        %v4783 = vsel %vm2400, %v4775, %v4660
        %v4784 = vsel %vm2400, %v4776, %v4662
        %v4785 = vsel %vm325, %v4514, %v4680
        %v4786 = vsel %vm325, %v4515, %v4682
        %v4787 = vsel %vm325, %v4516, %v4684
        %v4788 = vsel %vm325, %v4517, %v4686
        %v4789 = vsel %vm325, %v4518, %v4688
        %v4790 = vsel %vm325, %v4519, %v4690
        %v4791 = vsel %vm325, %v4520, %v4692
        %v4792 = vsel %vm325, %v4546, %v4694
        %v4793 = vsel %vm2367, %v4785, %v4712
        %v4794 = vsel %vm2367, %v4786, %v4714
        %v4795 = vsel %vm2367, %v4787, %v4716
        %v4796 = vsel %vm2367, %v4788, %v4718
        %v4797 = vsel %vm2367, %v4789, %v4720
        %v4798 = vsel %vm2367, %v4790, %v4722
        %v4799 = vsel %vm2367, %v4791, %v4724
        %v4800 = vsel %vm2367, %v4792, %v4726
        %v4801 = vsel %vm2400, %v4793, %v4738
        %v4802 = vsel %vm2400, %v4794, %v4740
        %v4803 = vsel %vm2400, %v4795, %v4742
        %v4804 = vsel %vm2400, %v4796, %v4744
        %v4805 = vsel %vm2400, %v4797, %v4746
        %v4806 = vsel %vm2400, %v4798, %v4748
        %v4807 = vsel %vm2400, %v4799, %v4750
        %v4808 = vsel %vm2400, %v4800, %v4752
        %s4809 = scalar_lea.vmem %s3, 288
        %v4810 = vld [vmem:[%s4809] sm:$0xff]
        %v4811 = vld [vmem:[%s4809 + $0x8] sm:$0xff]
        %v4812 = vld [vmem:[%s4809 + $0x10] sm:$0xff]
        %v4813 = vld [vmem:[%s4809 + $0x18] sm:$0xff]
        %v4814 = vld [vmem:[%s4809 + $0x20] sm:$0xff]
        %v4815 = vld [vmem:[%s4809 + $0x28] sm:$0xff]
        %v4816 = vld [vmem:[%s4809 + $0x30] sm:$0xff]
        %v4817 = vld [vmem:[%s4809 + $0x38] sm:$0xff]
        %v4818 = vld [vmem:[%s4809 + $0x40] sm:$0xff]
        %v4819 = vld [vmem:[%s4809 + $0x48] sm:$0xff]
        %v4820 = vld [vmem:[%s4809 + $0x50] sm:$0xff]
        %v4821 = vld [vmem:[%s4809 + $0x58] sm:$0xff]
        %v4822 = vld [vmem:[%s4809 + $0x60] sm:$0xff]
        %v4823 = vld [vmem:[%s4809 + $0x68] sm:$0xff]
        %v4824 = vld [vmem:[%s4809 + $0x70] sm:$0xff]
        %v4825 = vld [vmem:[%s4809 + $0x78] sm:$0xff]
        %v4826 = vld [vmem:[%s4809 + $0x80] sm:$0xff]
        %v4827 = vld [vmem:[%s4809 + $0x88] sm:$0xff]
        %v4828 = vld [vmem:[%s4809 + $0x90] sm:$0xff]
        %v4829 = vld [vmem:[%s4809 + $0x98] sm:$0xff]
        %v4830 = vld [vmem:[%s4809 + $0xa0] sm:$0xff]
        %v4831 = vld [vmem:[%s4809 + $0xa8] sm:$0xff]
        %v4832 = vld [vmem:[%s4809 + $0xb0] sm:$0xff]
        %v4833 = vld [vmem:[%s4809 + $0xb8] sm:$0xff]
        %v4834 = vld [vmem:[%s4809 + $0xc0] sm:$0xff]
        %v4835 = vld [vmem:[%s4809 + $0xc8] sm:$0xff]
        %v4836 = vld [vmem:[%s4809 + $0xd0] sm:$0xff]
        %v4837 = vld [vmem:[%s4809 + $0xd8] sm:$0xff]
        %v4838 = vld [vmem:[%s4809 + $0xe0] sm:$0xff]
        %v4839 = vld [vmem:[%s4809 + $0xe8] sm:$0xff]
        %v4840 = vld [vmem:[%s4809 + $0xf0] sm:$0xff]
        %v4841 = vld [vmem:[%s4809 + $0xf8] sm:$0xff]
        %v4842 = vld [vmem:[%s4809 + $0x100] sm:$0xff]
        %v4843 = vld [vmem:[%s4809 + $0x108] sm:$0xff]
        %v4844 = vld [vmem:[%s4809 + $0x110] sm:$0xff]
        %v4845 = vld [vmem:[%s4809 + $0x118] sm:$0xff]
        %s4846 = scalar_lea.vmem %s4, 1
        %v4847 = vld [vmem:[%s4846] sm:$0x1]
        %v4849 = vlaneseq
        %v4850 = vshrl.u32 %v4849, 7
        %v4851 = vsub.s32 0, %v4850
        %v4852 = vrot.slane %v4847, %v4851
        %v4855 = vsel %vm325, %v4567, 0
        %v4858 = vsel %vm325, %v4568, 0
        %v4861 = vsel %vm325, %v4569, 0
        %v4864 = vsel %vm325, %v4570, 0
        %v4867 = vsel %vm325, %v4571, 0
        %v4870 = vsel %vm325, %v4572, 0
        %v4873 = vsel %vm325, %v4573, 0
        %v4876 = vsel %vm325, %v4574, 0
        %4878 = vmatprep.subr.mxu0 0.0
        %4879 = vmatpush1.msra.mxu0 %v4825
        %4880 = vmatprep.subr.mxu0 0.0
        %4881 = vmatpush1.msra.mxu0 %v4824
        %4882 = vmatprep.subr.mxu0 0.0
        %4883 = vmatpush1.msra.mxu0 %v4823
        %4884 = vmatprep.subr.mxu0 0.0
        %4885 = vmatpush1.msra.mxu0 %v4822
        %4886 = vmatprep.subr.mxu0 0.0
        %4887 = vmatpush1.msra.mxu0 %v4821
        %4888 = vmatprep.subr.mxu0 0.0
        %4889 = vmatpush1.msra.mxu0 %v4820
        %4890 = vmatprep.subr.mxu0 0.0
        %4891 = vmatpush1.msra.mxu0 %v4819
        %4892 = vmatprep.subr.mxu0 0.0
        %4893 = vmatpush1.msra.mxu0 %v4818
        %4894 = vmatprep.subr.mxu0 0.0
        %4895 = vmatpush1.msra.mxu0 %v4817
        %4896 = vmatprep.subr.mxu0 0.0
        %4897 = vmatpush1.msra.mxu0 %v4816
        %4898 = vmatprep.subr.mxu0 0.0
        %4899 = vmatpush1.msra.mxu0 %v4815
        %4900 = vmatprep.subr.mxu0 0.0
        %4901 = vmatpush1.msra.mxu0 %v4814
        %4902 = vmatprep.subr.mxu0 0.0
        %4903 = vmatpush1.msra.mxu0 %v4813
        %4904 = vmatprep.subr.mxu0 0.0
        %4905 = vmatpush1.msra.mxu0 %v4812
        %4906 = vmatprep.subr.mxu0 0.0
        %4907 = vmatpush1.msra.mxu0 %v4811
        %4908 = vmatprep.subr.mxu0 0.0
        %4909 = vmatpush1.msra.mxu0 %v4810
        %4910 = vmatprep.subr.mxu0 0.0
        %4911 = vmatpush2.msra.mxu0 %v4841
        %4912 = vmatprep.subr.mxu0 0.0
        %4913 = vmatpush2.msra.mxu0 %v4840
        %4914 = vmatprep.subr.mxu0 0.0
        %4915 = vmatpush2.msra.mxu0 %v4839
        %4916 = vmatprep.subr.mxu0 0.0
        %4917 = vmatpush2.msra.mxu0 %v4838
        %4918 = vmatprep.subr.mxu0 0.0
        %4919 = vmatpush2.msra.mxu0 %v4837
        %4920 = vmatprep.subr.mxu0 0.0
        %4921 = vmatpush2.msra.mxu0 %v4836
        %4922 = vmatprep.subr.mxu0 0.0
        %4923 = vmatpush2.msra.mxu0 %v4835
        %4924 = vmatprep.subr.mxu0 0.0
        %4925 = vmatpush2.msra.mxu0 %v4834
        %4926 = vmatprep.subr.mxu0 0.0
        %4927 = vmatpush2.msra.mxu0 %v4833
        %4928 = vmatprep.subr.mxu0 0.0
        %4929 = vmatpush2.msra.mxu0 %v4832
        %4930 = vmatprep.subr.mxu0 0.0
        %4931 = vmatpush2.msra.mxu0 %v4831
        %4932 = vmatprep.subr.mxu0 0.0
        %4933 = vmatpush2.msra.mxu0 %v4830
        %4934 = vmatprep.subr.mxu0 0.0
        %4935 = vmatpush2.msra.mxu0 %v4829
        %4936 = vmatprep.subr.mxu0 0.0
        %4937 = vmatpush2.msra.mxu0 %v4828
        %4938 = vmatprep.subr.mxu0 0.0
        %4939 = vmatpush2.msra.mxu0 %v4827
        %4940 = vmatprep.subr.mxu0 0.0
        %4941 = vmatpush2.msra.mxu0 %v4826
        %4942 = vmatprep.mubr.f32.mxu0 %v4801
        %4943 = vmatmul.mubr.f32.gmra.mxu0 %v4777
        %v4944 = vpop.f32.mrf.mxu0
        %v4945 = vadd.f32 %v4852, %v4944
        %v4946 = vpop.f32.mrf.mxu0
        %4947 = vmatprep.mubr.f32.mxu0 %v4802
        %4948 = vmatmul.mubr.f32.gmra.mxu0 %v4778
        %v4949 = vpop.f32.mrf.mxu0
        %v4950 = vadd.f32 %v4852, %v4949
        %v4951 = vpop.f32.mrf.mxu0
        %4952 = vmatprep.mubr.f32.mxu0 %v4803
        %4953 = vmatmul.mubr.f32.gmra.mxu0 %v4779
        %v4954 = vpop.f32.mrf.mxu0
        %v4955 = vadd.f32 %v4852, %v4954
        %v4956 = vpop.f32.mrf.mxu0
        %4957 = vmatprep.mubr.f32.mxu0 %v4804
        %4958 = vmatmul.mubr.f32.gmra.mxu0 %v4780
        %v4959 = vpop.f32.mrf.mxu0
        %v4960 = vadd.f32 %v4852, %v4959
        %v4961 = vpop.f32.mrf.mxu0
        %4962 = vmatprep.mubr.f32.mxu0 %v4805
        %4963 = vmatmul.mubr.f32.gmra.mxu0 %v4781
        %v4964 = vpop.f32.mrf.mxu0
        %v4965 = vadd.f32 %v4852, %v4964
        %v4966 = vpop.f32.mrf.mxu0
        %4967 = vmatprep.mubr.f32.mxu0 %v4806
        %4968 = vmatmul.mubr.f32.gmra.mxu0 %v4782
        %v4969 = vpop.f32.mrf.mxu0
        %v4970 = vadd.f32 %v4852, %v4969
        %v4971 = vpop.f32.mrf.mxu0
        %4972 = vmatprep.mubr.f32.mxu0 %v4807
        %4973 = vmatmul.mubr.f32.gmra.mxu0 %v4783
        %v4974 = vpop.f32.mrf.mxu0
        %v4975 = vadd.f32 %v4852, %v4974
        %v4976 = vpop.f32.mrf.mxu0
        %4977 = vmatprep.mubr.f32.mxu0 %v4808
        %4978 = vmatmul.mubr.f32.gmra.mxu0 %v4784
        %v4979 = vpop.f32.mrf.mxu0
        %v4980 = vadd.f32 %v4852, %v4979
        %v4981 = vpop.f32.mrf.mxu0
        %4982 = vdwg.mxu0
        %4983 = vmatprep.subr.mxu0 0.0
        %4984 = vmatpush1.msra.mxu0 0.0
        %4985 = vmatprep.subr.mxu0 0.0
        %4986 = vmatpush1.msra.mxu0 0.0
        %4987 = vmatprep.subr.mxu0 0.0
        %4988 = vmatpush1.msra.mxu0 0.0
        %4989 = vmatprep.subr.mxu0 0.0
        %4990 = vmatpush1.msra.mxu0 0.0
        %4991 = vmatprep.subr.mxu0 0.0
        %4992 = vmatpush1.msra.mxu0 0.0
        %4993 = vmatprep.subr.mxu0 0.0
        %4994 = vmatpush1.msra.mxu0 0.0
        %4995 = vmatprep.subr.mxu0 0.0
        %4996 = vmatpush1.msra.mxu0 0.0
        %4997 = vmatprep.subr.mxu0 0.0
        %4998 = vmatpush1.msra.mxu0 0.0
        %4999 = vmatprep.subr.mxu0 0.0
        %5000 = vmatpush1.msra.mxu0 0.0
        %5001 = vmatprep.subr.mxu0 0.0
        %5002 = vmatpush1.msra.mxu0 0.0
        %5003 = vmatprep.subr.mxu0 0.0
        %5004 = vmatpush1.msra.mxu0 0.0
        %5005 = vmatprep.subr.mxu0 0.0
        %5006 = vmatpush1.msra.mxu0 0.0
        %5007 = vmatprep.subr.mxu0 0.0
        %5008 = vmatpush1.msra.mxu0 %v4845
        %5009 = vmatprep.subr.mxu0 0.0
        %5010 = vmatpush1.msra.mxu0 %v4844
        %5011 = vmatprep.subr.mxu0 0.0
        %5012 = vmatpush1.msra.mxu0 %v4843
        %5013 = vmatprep.subr.mxu0 0.0
        %5014 = vmatpush1.msra.mxu0 %v4842
        %5015 = vmatprep.subr.mxu0 0.0
        %5016 = vmatpush2.msra.mxu0 0.0
        %5017 = vmatprep.subr.mxu0 0.0
        %5018 = vmatpush2.msra.mxu0 0.0
        %5019 = vmatprep.subr.mxu0 0.0
        %5020 = vmatpush2.msra.mxu0 0.0
        %5021 = vmatprep.subr.mxu0 0.0
        %5022 = vmatpush2.msra.mxu0 0.0
        %5023 = vmatprep.subr.mxu0 0.0
        %5024 = vmatpush2.msra.mxu0 0.0
        %5025 = vmatprep.subr.mxu0 0.0
        %5026 = vmatpush2.msra.mxu0 0.0
        %5027 = vmatprep.subr.mxu0 0.0
        %5028 = vmatpush2.msra.mxu0 0.0
        %5029 = vmatprep.subr.mxu0 0.0
        %5030 = vmatpush2.msra.mxu0 0.0
        %5031 = vmatprep.subr.mxu0 0.0
        %5032 = vmatpush2.msra.mxu0 0.0
        %5033 = vmatprep.subr.mxu0 0.0
        %5034 = vmatpush2.msra.mxu0 0.0
        %5035 = vmatprep.subr.mxu0 0.0
        %5036 = vmatpush2.msra.mxu0 0.0
        %5037 = vmatprep.subr.mxu0 0.0
        %5038 = vmatpush2.msra.mxu0 0.0
        %5039 = vmatprep.subr.mxu0 0.0
        %5040 = vmatpush2.msra.mxu0 0.0
        %5041 = vmatprep.subr.mxu0 0.0
        %5042 = vmatpush2.msra.mxu0 0.0
        %5043 = vmatprep.subr.mxu0 0.0
        %5044 = vmatpush2.msra.mxu0 0.0
        %5045 = vmatprep.subr.mxu0 0.0
        %5046 = vmatpush2.msra.mxu0 0.0
        %5047 = vmatprep.mubr.f32.mxu0 0.0
        %5048 = vmatmul.mubr.f32.gmra.mxu0 %v4855
        %v5049 = vpop.f32.mrf.mxu0
        %v5050 = vadd.f32 %v4945, %v5049
        %v5051 = vpop.f32.mrf.mxu0
        %5052 = vmatprep.mubr.f32.mxu0 0.0
        %5053 = vmatmul.mubr.f32.gmra.mxu0 %v4858
        %v5054 = vpop.f32.mrf.mxu0
        %v5055 = vadd.f32 %v4950, %v5054
        %v5056 = vpop.f32.mrf.mxu0
        %5057 = vmatprep.mubr.f32.mxu0 0.0
        %5058 = vmatmul.mubr.f32.gmra.mxu0 %v4861
        %v5059 = vpop.f32.mrf.mxu0
        %v5060 = vadd.f32 %v4955, %v5059
        %v5061 = vpop.f32.mrf.mxu0
        %5062 = vmatprep.mubr.f32.mxu0 0.0
        %5063 = vmatmul.mubr.f32.gmra.mxu0 %v4864
        %v5064 = vpop.f32.mrf.mxu0
        %v5065 = vadd.f32 %v4960, %v5064
        %v5066 = vpop.f32.mrf.mxu0
        %5067 = vmatprep.mubr.f32.mxu0 0.0
        %5068 = vmatmul.mubr.f32.gmra.mxu0 %v4867
        %v5069 = vpop.f32.mrf.mxu0
        %v5070 = vadd.f32 %v4965, %v5069
        %v5071 = vpop.f32.mrf.mxu0
        %5072 = vmatprep.mubr.f32.mxu0 0.0
        %5073 = vmatmul.mubr.f32.gmra.mxu0 %v4870
        %v5074 = vpop.f32.mrf.mxu0
        %v5075 = vadd.f32 %v4970, %v5074
        %v5076 = vpop.f32.mrf.mxu0
        %5077 = vmatprep.mubr.f32.mxu0 0.0
        %5078 = vmatmul.mubr.f32.gmra.mxu0 %v4873
        %v5079 = vpop.f32.mrf.mxu0
        %v5080 = vadd.f32 %v4975, %v5079
        %v5081 = vpop.f32.mrf.mxu0
        %5082 = vmatprep.mubr.f32.mxu0 0.0
        %5083 = vmatmul.mubr.f32.gmra.mxu0 %v4876
        %v5084 = vpop.f32.mrf.mxu0
        %v5085 = vadd.f32 %v4980, %v5084
        %v5086 = vpop.f32.mrf.mxu0
        %5087 = vdwg.mxu0
        %v5088 = vxor.u32 %v5050, 2147483648
        %v5089 = vxor.u32 %v5055, 2147483648
        %v5090 = vxor.u32 %v5060, 2147483648
        %v5091 = vxor.u32 %v5065, 2147483648
        %v5092 = vxor.u32 %v5070, 2147483648
        %v5093 = vxor.u32 %v5075, 2147483648
        %v5094 = vxor.u32 %v5080, 2147483648
        %v5095 = vxor.u32 %v5085, 2147483648
        %v5096 = vmul.f32 %v5088, 1.442695
        %v5097 = vpow.pop %v5096
        %v5098 = vmul.f32 %v5089, 1.442695
        %v5099 = vpow.pop %v5098
        %v5100 = vmul.f32 %v5090, 1.442695
        %v5101 = vpow.pop %v5100
        %v5102 = vmul.f32 %v5091, 1.442695
        %v5103 = vpow.pop %v5102
        %v5104 = vmul.f32 %v5092, 1.442695
        %v5105 = vpow.pop %v5104
        %v5106 = vmul.f32 %v5093, 1.442695
        %v5107 = vpow.pop %v5106
        %v5108 = vmul.f32 %v5094, 1.442695
        %v5109 = vpow.pop %v5108
        %v5110 = vmul.f32 %v5095, 1.442695
        %v5111 = vpow.pop %v5110
        %v5112 = vadd.f32 %v5097, 1.0
        %v5113 = vadd.f32 %v5099, 1.0
        %v5114 = vadd.f32 %v5101, 1.0
        %v5115 = vadd.f32 %v5103, 1.0
        %v5116 = vadd.f32 %v5105, 1.0
        %v5117 = vadd.f32 %v5107, 1.0
        %v5118 = vadd.f32 %v5109, 1.0
        %v5119 = vadd.f32 %v5111, 1.0
        %v5120 = vrcp.pop %v5112
        %v5121 = vmul.f32 1.0, %v5120
        %v5122 = vrcp.pop %v5113
        %v5123 = vmul.f32 1.0, %v5122
        %v5124 = vrcp.pop %v5114
        %v5125 = vmul.f32 1.0, %v5124
        %v5126 = vrcp.pop %v5115
        %v5127 = vmul.f32 1.0, %v5126
        %v5128 = vrcp.pop %v5116
        %v5129 = vmul.f32 1.0, %v5128
        %v5130 = vrcp.pop %v5117
        %v5131 = vmul.f32 1.0, %v5130
        %v5132 = vrcp.pop %v5118
        %v5133 = vmul.f32 1.0, %v5132
        %v5134 = vrcp.pop %v5119
        %v5135 = vmul.f32 1.0, %v5134
        %v5136 = vmul.f32 %v5050, %v5121
        %v5137 = vmul.f32 %v5055, %v5123
        %v5138 = vmul.f32 %v5060, %v5125
        %v5139 = vmul.f32 %v5065, %v5127
        %v5140 = vmul.f32 %v5070, %v5129
        %v5141 = vmul.f32 %v5075, %v5131
        %v5142 = vmul.f32 %v5080, %v5133
        %v5143 = vmul.f32 %v5085, %v5135
        %s5144 = scalar_lea.vmem %s5, 64
        %v5145 = vld [vmem:[%s5144] sm:$0xff]
        %v5146 = vld [vmem:[%s5144 + $0x8] sm:$0xff]
        %v5147 = vld [vmem:[%s5144 + $0x10] sm:$0xff]
        %v5148 = vld [vmem:[%s5144 + $0x18] sm:$0xff]
        %v5149 = vld [vmem:[%s5144 + $0x20] sm:$0xff]
        %v5150 = vld [vmem:[%s5144 + $0x28] sm:$0xff]
        %v5151 = vld [vmem:[%s5144 + $0x30] sm:$0xff]
        %v5152 = vld [vmem:[%s5144 + $0x38] sm:$0xff]
        %s5153 = scalar_lea.vmem %s6, 1
        %v5154 = vld [vmem:[%s5153] sm:$0x1]
        %v5156 = vlaneseq
        %v5157 = vshrl.u32 %v5156, 7
        %v5158 = vsub.s32 0, %v5157
        %v5159 = vrot.slane %v5154, %v5158
        %v5162 = vsel %vm2367, %v5136, 0
        %v5165 = vsel %vm2367, %v5137, 0
        %v5168 = vsel %vm2367, %v5138, 0
        %v5171 = vsel %vm2367, %v5139, 0
        %v5174 = vsel %vm2367, %v5140, 0
        %v5177 = vsel %vm2367, %v5141, 0
        %v5180 = vsel %vm2367, %v5142, 0
        %v5183 = vsel %vm2367, %v5143, 0
        %5185 = vmatprep.subr.mxu0 0.0
        %5186 = vmatpush1.msra.mxu0 0.0
        %5187 = vmatprep.subr.mxu0 0.0
        %5188 = vmatpush1.msra.mxu0 0.0
        %5189 = vmatprep.subr.mxu0 0.0
        %5190 = vmatpush1.msra.mxu0 0.0
        %5191 = vmatprep.subr.mxu0 0.0
        %5192 = vmatpush1.msra.mxu0 0.0
        %5193 = vmatprep.subr.mxu0 0.0
        %5194 = vmatpush1.msra.mxu0 0.0
        %5195 = vmatprep.subr.mxu0 0.0
        %5196 = vmatpush1.msra.mxu0 0.0
        %5197 = vmatprep.subr.mxu0 0.0
        %5198 = vmatpush1.msra.mxu0 0.0
        %5199 = vmatprep.subr.mxu0 0.0
        %5200 = vmatpush1.msra.mxu0 0.0
        %5201 = vmatprep.subr.mxu0 0.0
        %5202 = vmatpush1.msra.mxu0 %v5152
        %5203 = vmatprep.subr.mxu0 0.0
        %5204 = vmatpush1.msra.mxu0 %v5151
        %5205 = vmatprep.subr.mxu0 0.0
        %5206 = vmatpush1.msra.mxu0 %v5150
        %5207 = vmatprep.subr.mxu0 0.0
        %5208 = vmatpush1.msra.mxu0 %v5149
        %5209 = vmatprep.subr.mxu0 0.0
        %5210 = vmatpush1.msra.mxu0 %v5148
        %5211 = vmatprep.subr.mxu0 0.0
        %5212 = vmatpush1.msra.mxu0 %v5147
        %5213 = vmatprep.subr.mxu0 0.0
        %5214 = vmatpush1.msra.mxu0 %v5146
        %5215 = vmatprep.subr.mxu0 0.0
        %5216 = vmatpush1.msra.mxu0 %v5145
        %5217 = vmatprep.subr.mxu0 0.0
        %5218 = vmatpush2.msra.mxu0 0.0
        %5219 = vmatprep.subr.mxu0 0.0
        %5220 = vmatpush2.msra.mxu0 0.0
        %5221 = vmatprep.subr.mxu0 0.0
        %5222 = vmatpush2.msra.mxu0 0.0
        %5223 = vmatprep.subr.mxu0 0.0
        %5224 = vmatpush2.msra.mxu0 0.0
        %5225 = vmatprep.subr.mxu0 0.0
        %5226 = vmatpush2.msra.mxu0 0.0
        %5227 = vmatprep.subr.mxu0 0.0
        %5228 = vmatpush2.msra.mxu0 0.0
        %5229 = vmatprep.subr.mxu0 0.0
        %5230 = vmatpush2.msra.mxu0 0.0
        %5231 = vmatprep.subr.mxu0 0.0
        %5232 = vmatpush2.msra.mxu0 0.0
        %5233 = vmatprep.subr.mxu0 0.0
        %5234 = vmatpush2.msra.mxu0 0.0
        %5235 = vmatprep.subr.mxu0 0.0
        %5236 = vmatpush2.msra.mxu0 0.0
        %5237 = vmatprep.subr.mxu0 0.0
        %5238 = vmatpush2.msra.mxu0 0.0
        %5239 = vmatprep.subr.mxu0 0.0
        %5240 = vmatpush2.msra.mxu0 0.0
        %5241 = vmatprep.subr.mxu0 0.0
        %5242 = vmatpush2.msra.mxu0 0.0
        %5243 = vmatprep.subr.mxu0 0.0
        %5244 = vmatpush2.msra.mxu0 0.0
        %5245 = vmatprep.subr.mxu0 0.0
        %5246 = vmatpush2.msra.mxu0 0.0
        %5247 = vmatprep.subr.mxu0 0.0
        %5248 = vmatpush2.msra.mxu0 0.0
        %5249 = vmatprep.mubr.f32.mxu0 0.0
        %5250 = vmatmul.mubr.f32.gmra.mxu0 %v5162
        %v5251 = vpop.f32.mrf.mxu0
        %v5252 = vadd.f32 %v5159, %v5251
        %v5253 = vpop.f32.mrf.mxu0
        %5254 = vmatprep.mubr.f32.mxu0 0.0
        %5255 = vmatmul.mubr.f32.gmra.mxu0 %v5165
        %v5256 = vpop.f32.mrf.mxu0
        %v5257 = vadd.f32 %v5159, %v5256
        %v5258 = vpop.f32.mrf.mxu0
        %5259 = vmatprep.mubr.f32.mxu0 0.0
        %5260 = vmatmul.mubr.f32.gmra.mxu0 %v5168
        %v5261 = vpop.f32.mrf.mxu0
        %v5262 = vadd.f32 %v5159, %v5261
        %v5263 = vpop.f32.mrf.mxu0
        %5264 = vmatprep.mubr.f32.mxu0 0.0
        %5265 = vmatmul.mubr.f32.gmra.mxu0 %v5171
        %v5266 = vpop.f32.mrf.mxu0
        %v5267 = vadd.f32 %v5159, %v5266
        %v5268 = vpop.f32.mrf.mxu0
        %5269 = vmatprep.mubr.f32.mxu0 0.0
        %5270 = vmatmul.mubr.f32.gmra.mxu0 %v5174
        %v5271 = vpop.f32.mrf.mxu0
        %v5272 = vadd.f32 %v5159, %v5271
        %v5273 = vpop.f32.mrf.mxu0
        %5274 = vmatprep.mubr.f32.mxu0 0.0
        %5275 = vmatmul.mubr.f32.gmra.mxu0 %v5177
        %v5276 = vpop.f32.mrf.mxu0
        %v5277 = vadd.f32 %v5159, %v5276
        %v5278 = vpop.f32.mrf.mxu0
        %5279 = vmatprep.mubr.f32.mxu0 0.0
        %5280 = vmatmul.mubr.f32.gmra.mxu0 %v5180
        %v5281 = vpop.f32.mrf.mxu0
        %v5282 = vadd.f32 %v5159, %v5281
        %v5283 = vpop.f32.mrf.mxu0
        %5284 = vmatprep.mubr.f32.mxu0 0.0
        %5285 = vmatmul.mubr.f32.gmra.mxu0 %v5183
        %v5286 = vpop.f32.mrf.mxu0
        %v5287 = vadd.f32 %v5159, %v5286
        %v5288 = vpop.f32.mrf.mxu0
        %5289 = vdwg.mxu0
        %v5290 = vadd.f32 %v4441, 0.5
        %v5291 = vadd.f32 %v4442, 0.5
        %v5292 = vadd.f32 %v4443, 0.5
        %v5293 = vadd.f32 %v4444, 0.5
        %v5294 = vadd.f32 %v4445, 0.5
        %v5295 = vadd.f32 %v4446, 0.5
        %v5296 = vadd.f32 %v4447, 0.5
        %v5297 = vadd.f32 %v4448, 0.5
        %v5298 = vmul.f32 %v5290, 16.0
        %v5299 = vmul.f32 %v5291, 16.0
        %v5300 = vmul.f32 %v5292, 16.0
        %v5301 = vmul.f32 %v5293, 16.0
        %v5302 = vmul.f32 %v5294, 16.0
        %v5303 = vmul.f32 %v5295, 16.0
        %v5304 = vmul.f32 %v5296, 16.0
        %v5305 = vmul.f32 %v5297, 16.0
        %v5306 = vadd.f32 %v4425, 0.5
        %v5307 = vadd.f32 %v4426, 0.5
        %v5308 = vadd.f32 %v4427, 0.5
        %v5309 = vadd.f32 %v4428, 0.5
        %v5310 = vadd.f32 %v4429, 0.5
        %v5311 = vadd.f32 %v4430, 0.5
        %v5312 = vadd.f32 %v4431, 0.5
        %v5313 = vadd.f32 %v4432, 0.5
        %v5314 = vmul.f32 %v5306, 16.0
        %v5315 = vmul.f32 %v5307, 16.0
        %v5316 = vmul.f32 %v5308, 16.0
        %v5317 = vmul.f32 %v5309, 16.0
        %v5318 = vmul.f32 %v5310, 16.0
        %v5319 = vmul.f32 %v5311, 16.0
        %v5320 = vmul.f32 %v5312, 16.0
        %v5321 = vmul.f32 %v5313, 16.0
        %v5322 = vsel %vm3808, %v5298, 0.0
        %v5323 = vsel %vm3808, %v5299, 0.0
        %v5324 = vsel %vm3808, %v5300, 0.0
        %v5325 = vsel %vm3808, %v5301, 0.0
        %v5326 = vsel %vm3808, %v5302, 0.0
        %v5327 = vsel %vm3808, %v5303, 0.0
        %v5328 = vsel %vm3808, %v5304, 0.0
        %v5329 = vsel %vm3808, %v5305, 0.0
        %v5330 = vsel %vm3843, %v5314, 0.0
        %v5331 = vsel %vm3843, %v5315, 0.0
        %v5332 = vsel %vm3843, %v5316, 0.0
        %v5333 = vsel %vm3843, %v5317, 0.0
        %v5334 = vsel %vm3843, %v5318, 0.0
        %v5335 = vsel %vm3843, %v5319, 0.0
        %v5336 = vsel %vm3843, %v5320, 0.0
        %v5337 = vsel %vm3843, %v5321, 0.0
        %v5338 = vadd.f32 %v5322, %v5330
        %v5339 = vadd.f32 %v5323, %v5331
        %v5340 = vadd.f32 %v5324, %v5332
        %v5341 = vadd.f32 %v5325, %v5333
        %v5342 = vadd.f32 %v5326, %v5334
        %v5343 = vadd.f32 %v5327, %v5335
        %v5344 = vadd.f32 %v5328, %v5336
        %v5345 = vadd.f32 %v5329, %v5337
        %v5346 = vxor.u32 %v5252, 2147483648
        %v5347 = vxor.u32 %v5257, 2147483648
        %v5348 = vxor.u32 %v5262, 2147483648
        %v5349 = vxor.u32 %v5267, 2147483648
        %v5350 = vxor.u32 %v5272, 2147483648
        %v5351 = vxor.u32 %v5277, 2147483648
        %v5352 = vxor.u32 %v5282, 2147483648
        %v5353 = vxor.u32 %v5287, 2147483648
        %v5354 = vmul.f32 %v5346, 1.442695
        %v5355 = vpow.pop %v5354
        %v5356 = vmul.f32 %v5347, 1.442695
        %v5357 = vpow.pop %v5356
        %v5358 = vmul.f32 %v5348, 1.442695
        %v5359 = vpow.pop %v5358
        %v5360 = vmul.f32 %v5349, 1.442695
        %v5361 = vpow.pop %v5360
        %v5362 = vmul.f32 %v5350, 1.442695
        %v5363 = vpow.pop %v5362
        %v5364 = vmul.f32 %v5351, 1.442695
        %v5365 = vpow.pop %v5364
        %v5366 = vmul.f32 %v5352, 1.442695
        %v5367 = vpow.pop %v5366
        %v5368 = vmul.f32 %v5353, 1.442695
        %v5369 = vpow.pop %v5368
        %v5370 = vadd.f32 %v5355, 1.0
        %v5371 = vadd.f32 %v5357, 1.0
        %v5372 = vadd.f32 %v5359, 1.0
        %v5373 = vadd.f32 %v5361, 1.0
        %v5374 = vadd.f32 %v5363, 1.0
        %v5375 = vadd.f32 %v5365, 1.0
        %v5376 = vadd.f32 %v5367, 1.0
        %v5377 = vadd.f32 %v5369, 1.0
        %v5378 = vrcp.pop %v5370
        %v5379 = vmul.f32 1.0, %v5378
        %v5380 = vrcp.pop %v5371
        %v5381 = vmul.f32 1.0, %v5380
        %v5382 = vrcp.pop %v5372
        %v5383 = vmul.f32 1.0, %v5382
        %v5384 = vrcp.pop %v5373
        %v5385 = vmul.f32 1.0, %v5384
        %v5386 = vrcp.pop %v5374
        %v5387 = vmul.f32 1.0, %v5386
        %v5388 = vrcp.pop %v5375
        %v5389 = vmul.f32 1.0, %v5388
        %v5390 = vrcp.pop %v5376
        %v5391 = vmul.f32 1.0, %v5390
        %v5392 = vrcp.pop %v5377
        %v5393 = vmul.f32 1.0, %v5392
        %v5394 = vadd.f32 %v5252, %v5338
        %v5395 = vadd.f32 %v5257, %v5339
        %v5396 = vadd.f32 %v5262, %v5340
        %v5397 = vadd.f32 %v5267, %v5341
        %v5398 = vadd.f32 %v5272, %v5342
        %v5399 = vadd.f32 %v5277, %v5343
        %v5400 = vadd.f32 %v5282, %v5344
        %v5401 = vadd.f32 %v5287, %v5345
        %v5402 = vsel %vm4133, %v5379, %v5394
        %v5403 = vsel %vm4133, %v5381, %v5395
        %v5404 = vsel %vm4133, %v5383, %v5396
        %v5405 = vsel %vm4133, %v5385, %v5397
        %v5406 = vsel %vm4133, %v5387, %v5398
        %v5407 = vsel %vm4133, %v5389, %v5399
        %v5408 = vsel %vm4133, %v5391, %v5400
        %v5409 = vsel %vm4133, %v5393, %v5401
        %5410 = vst [vmem:[%s271 + $0x100] sm:$0xff] %v5402
        %5411 = vst [vmem:[%s271 + $0x108] sm:$0xff] %v5403
        %5412 = vst [vmem:[%s271 + $0x110] sm:$0xff] %v5404
        %5413 = vst [vmem:[%s271 + $0x118] sm:$0xff] %v5405
        %5414 = vst [vmem:[%s271 + $0x120] sm:$0xff] %v5406
        %5415 = vst [vmem:[%s271 + $0x128] sm:$0xff] %v5407
        %5416 = vst [vmem:[%s271 + $0x130] sm:$0xff] %v5408
        %5417 = vst [vmem:[%s271 + $0x138] sm:$0xff] %v5409
        %v5418 = vld [vmem:[%s276 + $0x140] sm:$0xff]
        %v5419 = vld [vmem:[%s276 + $0x148] sm:$0xff]
        %s5420 = scalar_lea.vmem %s1, 64
        %v5421 = vld [vmem:[%s5420] sm:$0xff]
        %v5422 = vld [vmem:[%s5420 + $0x8] sm:$0xff]
        %v5423 = vld [vmem:[%s5420 + $0x10] sm:$0xff]
        %v5424 = vld [vmem:[%s5420 + $0x18] sm:$0xff]
        %s5425 = scalar_lea.vmem %s2, 2
        %v5426 = vld [vmem:[%s5425] sm:$0x1]
        %v5428 = vlaneseq
        %v5429 = vshrl.u32 %v5428, 7
        %v5430 = vsub.s32 0, %v5429
        %v5431 = vrot.slane %v5426, %v5430
        %v5434 = vsel %vm325, %v5418, 0
        %v5437 = vsel %vm325, %v5419, 0
        %5439 = vmatprep.subr.mxu0 0.0
        %5440 = vmatpush1.msra.mxu0 0.0
        %5441 = vmatprep.subr.mxu0 0.0
        %5442 = vmatpush1.msra.mxu0 0.0
        %5443 = vmatprep.subr.mxu0 0.0
        %5444 = vmatpush1.msra.mxu0 0.0
        %5445 = vmatprep.subr.mxu0 0.0
        %5446 = vmatpush1.msra.mxu0 0.0
        %5447 = vmatprep.subr.mxu0 0.0
        %5448 = vmatpush1.msra.mxu0 0.0
        %5449 = vmatprep.subr.mxu0 0.0
        %5450 = vmatpush1.msra.mxu0 0.0
        %5451 = vmatprep.subr.mxu0 0.0
        %5452 = vmatpush1.msra.mxu0 0.0
        %5453 = vmatprep.subr.mxu0 0.0
        %5454 = vmatpush1.msra.mxu0 0.0
        %5455 = vmatprep.subr.mxu0 0.0
        %5456 = vmatpush1.msra.mxu0 0.0
        %5457 = vmatprep.subr.mxu0 0.0
        %5458 = vmatpush1.msra.mxu0 0.0
        %5459 = vmatprep.subr.mxu0 0.0
        %5460 = vmatpush1.msra.mxu0 0.0
        %5461 = vmatprep.subr.mxu0 0.0
        %5462 = vmatpush1.msra.mxu0 0.0
        %5463 = vmatprep.subr.mxu0 0.0
        %5464 = vmatpush1.msra.mxu0 %v5424
        %5465 = vmatprep.subr.mxu0 0.0
        %5466 = vmatpush1.msra.mxu0 %v5423
        %5467 = vmatprep.subr.mxu0 0.0
        %5468 = vmatpush1.msra.mxu0 %v5422
        %5469 = vmatprep.subr.mxu0 0.0
        %5470 = vmatpush1.msra.mxu0 %v5421
        %5471 = vmatprep.subr.mxu0 0.0
        %5472 = vmatpush2.msra.mxu0 0.0
        %5473 = vmatprep.subr.mxu0 0.0
        %5474 = vmatpush2.msra.mxu0 0.0
        %5475 = vmatprep.subr.mxu0 0.0
        %5476 = vmatpush2.msra.mxu0 0.0
        %5477 = vmatprep.subr.mxu0 0.0
        %5478 = vmatpush2.msra.mxu0 0.0
        %5479 = vmatprep.subr.mxu0 0.0
        %5480 = vmatpush2.msra.mxu0 0.0
        %5481 = vmatprep.subr.mxu0 0.0
        %5482 = vmatpush2.msra.mxu0 0.0
        %5483 = vmatprep.subr.mxu0 0.0
        %5484 = vmatpush2.msra.mxu0 0.0
        %5485 = vmatprep.subr.mxu0 0.0
        %5486 = vmatpush2.msra.mxu0 0.0
        %5487 = vmatprep.subr.mxu0 0.0
        %5488 = vmatpush2.msra.mxu0 0.0
        %5489 = vmatprep.subr.mxu0 0.0
        %5490 = vmatpush2.msra.mxu0 0.0
        %5491 = vmatprep.subr.mxu0 0.0
        %5492 = vmatpush2.msra.mxu0 0.0
        %5493 = vmatprep.subr.mxu0 0.0
        %5494 = vmatpush2.msra.mxu0 0.0
        %5495 = vmatprep.subr.mxu0 0.0
        %5496 = vmatpush2.msra.mxu0 0.0
        %5497 = vmatprep.subr.mxu0 0.0
        %5498 = vmatpush2.msra.mxu0 0.0
        %5499 = vmatprep.subr.mxu0 0.0
        %5500 = vmatpush2.msra.mxu0 0.0
        %5501 = vmatprep.subr.mxu0 0.0
        %5502 = vmatpush2.msra.mxu0 0.0
        %5503 = vmatprep.mubr.f32.mxu0 0.0
        %5504 = vmatmul.mubr.f32.gmra.mxu0 %v5434
        %v5505 = vpop.f32.mrf.mxu0
        %v5506 = vadd.f32 %v5431, %v5505
        %v5507 = vpop.f32.mrf.mxu0
        %5508 = vmatprep.mubr.f32.mxu0 0.0
        %5509 = vmatmul.mubr.f32.gmra.mxu0 %v5437
        %v5510 = vpop.f32.mrf.mxu0
        %v5511 = vadd.f32 %v5431, %v5510
        %v5512 = vpop.f32.mrf.mxu0
        %5513 = vdwg.mxu0
        %v5514 = vxor.u32 %v5506, 2147483648
        %v5515 = vxor.u32 %v5511, 2147483648
        %v5516 = vmul.f32 %v5514, 1.442695
        %v5517 = vpow.pop %v5516
        %v5518 = vmul.f32 %v5515, 1.442695
        %v5519 = vpow.pop %v5518
        %v5520 = vadd.f32 %v5517, 1.0
        %v5521 = vadd.f32 %v5519, 1.0
        %v5522 = vrcp.pop %v5520
        %v5523 = vmul.f32 1.0, %v5522
        %v5524 = vrcp.pop %v5521
        %v5525 = vmul.f32 1.0, %v5524
        %v5526 = vmul.f32 %v5506, %v5523
        %v5527 = vmul.f32 %v5511, %v5525
        %5528 = vst.msk [vmem:[#allocation4] sm:$0xff] %vm325, 0.0
        %5529 = vst.msk [vmem:[#allocation4 + $0x18] sm:$0xff] %vm325, 0.0
        %5530 = vst.msk [vmem:[#allocation4 + $0x8] sm:$0xff] %vm325, %v5526
        %5531 = vst.msk [vmem:[#allocation4 + $0x10] sm:$0xff] %vm325, %v5527
        %v5532 = vrcp.pop 4.0
        %v5533 = vmul.f32 %v942, %v5532
        %v5534 = vmul.f32 %v943, %v5532
        %v5535 = vfloor.f32 %v5533
        %v5536 = vfloor.f32 %v5534
        %v5537 = vmul.f32 %v5535, 4.0
        %v5538 = vmul.f32 %v5536, 4.0
        %v5539 = vsub.f32 %v942, %v5537
        %v5540 = vsub.f32 %v943, %v5538
        %vm5541 = vcmp.ne.f32.partialorder %v5539, 0.0
        %vm5542 = vcmp.ne.f32.partialorder %v5540, 0.0
        %v5543 = vsel %vm5541, 1, 0
        %v5544 = vsel %vm5542, 1, 0
        %v5545 = vcvt.s32.f32 %v5543
        %v5546 = vcvt.s32.f32 %v5544
        %vm5547 = vcmp.ne.f32.partialorder %v5539, 3.0
        %vm5548 = vcmp.ne.f32.partialorder %v5540, 3.0
        %v5549 = vsel %vm5547, 1, 0
        %v5550 = vsel %vm5548, 1, 0
        %v5551 = vcvt.s32.f32 %v5549
        %v5552 = vcvt.s32.f32 %v5550
        %v5553 = vld [vmem:[#allocation4 + $0x3] sm:$0xff]
        %v5554 = vld [vmem:[#allocation4 + $0xb] sm:$0xff]
        %v5555 = vmul.f32 %v5553, %v5545
        %v5556 = vmul.f32 %v5554, %v5546
        %v5557 = vld [vmem:[#allocation4 + $0x4] sm:$0xff]
        %v5558 = vld [vmem:[#allocation4 + $0xc] sm:$0xff]
        %v5559 = vld [vmem:[#allocation4 + $0x5] sm:$0xff]
        %v5560 = vld [vmem:[#allocation4 + $0xd] sm:$0xff]
        %v5561 = vmul.f32 %v5559, %v5551
        %v5562 = vmul.f32 %v5560, %v5552
        %v5563 = vld [vmem:[#allocation4 + $0x7] sm:$0xff]
        %v5564 = vld [vmem:[#allocation4 + $0xf] sm:$0xff]
        %v5565 = vmul.f32 %v5563, %v5545
        %v5566 = vmul.f32 %v5564, %v5546
        %v5567 = vld [vmem:[#allocation4 + $0x8] sm:$0xff]
        %v5568 = vld [vmem:[#allocation4 + $0x10] sm:$0xff]
        %v5569 = vld [vmem:[#allocation4 + $0x9] sm:$0xff]
        %v5570 = vld [vmem:[#allocation4 + $0x11] sm:$0xff]
        %v5571 = vmul.f32 %v5569, %v5551
        %v5572 = vmul.f32 %v5570, %v5552
        %v5573 = vld [vmem:[#allocation4 + $0x13] sm:$0xff]
        %v5574 = vmul.f32 %v5554, %v5545
        %v5575 = vmul.f32 %v5573, %v5546
        %v5576 = vld [vmem:[#allocation4 + $0x14] sm:$0xff]
        %v5577 = vld [vmem:[#allocation4 + $0x15] sm:$0xff]
        %v5578 = vmul.f32 %v5560, %v5551
        %v5579 = vmul.f32 %v5577, %v5552
        %5582 = vrot.lane.b32.xlu0 %v5557, 32
        %v5583 = vpop.permute.xlu0 %5582
        %5584 = vrot.lane.b32.xlu0 %v5558, 32
        %v5585 = vpop.permute.xlu0 %5584
        %5590 = vrot.lane.b32.xlu0 %v5561, 64
        %v5591 = vpop.permute.xlu0 %5590
        %5592 = vrot.lane.b32.xlu0 %v5562, 64
        %v5593 = vpop.permute.xlu0 %5592
        %5598 = vrot.lane.b32.xlu0 %v5565, 96
        %v5599 = vpop.permute.xlu0 %5598
        %5600 = vrot.lane.b32.xlu0 %v5566, 96
        %v5601 = vpop.permute.xlu0 %5600
        %5606 = vrot.lane.b32.xlu0 %v5571, 32
        %v5607 = vpop.permute.xlu0 %5606
        %5608 = vrot.lane.b32.xlu0 %v5572, 32
        %v5609 = vpop.permute.xlu0 %5608
        %5614 = vrot.lane.b32.xlu0 %v5574, 64
        %v5615 = vpop.permute.xlu0 %5614
        %5616 = vrot.lane.b32.xlu0 %v5575, 64
        %v5617 = vpop.permute.xlu0 %5616
        %5621 = vrot.lane.b32.xlu0 %v5558, 96
        %v5622 = vpop.permute.xlu0 %5621
        %5623 = vrot.lane.b32.xlu0 %v5576, 96
        %v5624 = vpop.permute.xlu0 %5623
        %v5627 = vsel %vm325, %v5555, %v5583
        %v5628 = vsel %vm325, %v5556, %v5585
        %v5629 = vsel %vm2367, %v5627, %v5591
        %v5630 = vsel %vm2367, %v5628, %v5593
        %v5631 = vsel %vm2400, %v5629, %v5599
        %v5632 = vsel %vm2400, %v5630, %v5601
        %v5633 = vsel %vm325, %v5567, %v5607
        %v5634 = vsel %vm325, %v5568, %v5609
        %v5635 = vsel %vm2367, %v5633, %v5615
        %v5636 = vsel %vm2367, %v5634, %v5617
        %v5637 = vsel %vm2400, %v5635, %v5622
        %v5638 = vsel %vm2400, %v5636, %v5624
        %s5639 = scalar_lea.vmem %s3, 576
        %v5640 = vld [vmem:[%s5639] sm:$0xff]
        %v5641 = vld [vmem:[%s5639 + $0x8] sm:$0xff]
        %v5642 = vld [vmem:[%s5639 + $0x10] sm:$0xff]
        %v5643 = vld [vmem:[%s5639 + $0x18] sm:$0xff]
        %v5644 = vld [vmem:[%s5639 + $0x20] sm:$0xff]
        %v5645 = vld [vmem:[%s5639 + $0x28] sm:$0xff]
        %v5646 = vld [vmem:[%s5639 + $0x30] sm:$0xff]
        %v5647 = vld [vmem:[%s5639 + $0x38] sm:$0xff]
        %v5648 = vld [vmem:[%s5639 + $0x40] sm:$0xff]
        %v5649 = vld [vmem:[%s5639 + $0x48] sm:$0xff]
        %v5650 = vld [vmem:[%s5639 + $0x50] sm:$0xff]
        %v5651 = vld [vmem:[%s5639 + $0x58] sm:$0xff]
        %v5652 = vld [vmem:[%s5639 + $0x60] sm:$0xff]
        %v5653 = vld [vmem:[%s5639 + $0x68] sm:$0xff]
        %v5654 = vld [vmem:[%s5639 + $0x70] sm:$0xff]
        %v5655 = vld [vmem:[%s5639 + $0x78] sm:$0xff]
        %v5656 = vld [vmem:[%s5639 + $0x80] sm:$0xff]
        %v5657 = vld [vmem:[%s5639 + $0x88] sm:$0xff]
        %v5658 = vld [vmem:[%s5639 + $0x90] sm:$0xff]
        %v5659 = vld [vmem:[%s5639 + $0x98] sm:$0xff]
        %v5660 = vld [vmem:[%s5639 + $0xa0] sm:$0xff]
        %v5661 = vld [vmem:[%s5639 + $0xa8] sm:$0xff]
        %v5662 = vld [vmem:[%s5639 + $0xb0] sm:$0xff]
        %v5663 = vld [vmem:[%s5639 + $0xb8] sm:$0xff]
        %v5664 = vld [vmem:[%s5639 + $0xc0] sm:$0xff]
        %v5665 = vld [vmem:[%s5639 + $0xc8] sm:$0xff]
        %v5666 = vld [vmem:[%s5639 + $0xd0] sm:$0xff]
        %v5667 = vld [vmem:[%s5639 + $0xd8] sm:$0xff]
        %v5668 = vld [vmem:[%s5639 + $0xe0] sm:$0xff]
        %v5669 = vld [vmem:[%s5639 + $0xe8] sm:$0xff]
        %v5670 = vld [vmem:[%s5639 + $0xf0] sm:$0xff]
        %v5671 = vld [vmem:[%s5639 + $0xf8] sm:$0xff]
        %v5672 = vld [vmem:[%s5639 + $0x100] sm:$0xff]
        %v5673 = vld [vmem:[%s5639 + $0x108] sm:$0xff]
        %v5674 = vld [vmem:[%s5639 + $0x110] sm:$0xff]
        %v5675 = vld [vmem:[%s5639 + $0x118] sm:$0xff]
        %s5676 = scalar_lea.vmem %s4, 2
        %v5677 = vld [vmem:[%s5676] sm:$0x1]
        %v5679 = vlaneseq
        %v5680 = vshrl.u32 %v5679, 7
        %v5681 = vsub.s32 0, %v5680
        %v5682 = vrot.slane %v5677, %v5681
        %v5685 = vsel %vm325, %v5578, 0
        %v5688 = vsel %vm325, %v5579, 0
        %5690 = vmatprep.subr.mxu0 0.0
        %5691 = vmatpush1.msra.mxu0 %v5655
        %5692 = vmatprep.subr.mxu0 0.0
        %5693 = vmatpush1.msra.mxu0 %v5654
        %5694 = vmatprep.subr.mxu0 0.0
        %5695 = vmatpush1.msra.mxu0 %v5653
        %5696 = vmatprep.subr.mxu0 0.0
        %5697 = vmatpush1.msra.mxu0 %v5652
        %5698 = vmatprep.subr.mxu0 0.0
        %5699 = vmatpush1.msra.mxu0 %v5651
        %5700 = vmatprep.subr.mxu0 0.0
        %5701 = vmatpush1.msra.mxu0 %v5650
        %5702 = vmatprep.subr.mxu0 0.0
        %5703 = vmatpush1.msra.mxu0 %v5649
        %5704 = vmatprep.subr.mxu0 0.0
        %5705 = vmatpush1.msra.mxu0 %v5648
        %5706 = vmatprep.subr.mxu0 0.0
        %5707 = vmatpush1.msra.mxu0 %v5647
        %5708 = vmatprep.subr.mxu0 0.0
        %5709 = vmatpush1.msra.mxu0 %v5646
        %5710 = vmatprep.subr.mxu0 0.0
        %5711 = vmatpush1.msra.mxu0 %v5645
        %5712 = vmatprep.subr.mxu0 0.0
        %5713 = vmatpush1.msra.mxu0 %v5644
        %5714 = vmatprep.subr.mxu0 0.0
        %5715 = vmatpush1.msra.mxu0 %v5643
        %5716 = vmatprep.subr.mxu0 0.0
        %5717 = vmatpush1.msra.mxu0 %v5642
        %5718 = vmatprep.subr.mxu0 0.0
        %5719 = vmatpush1.msra.mxu0 %v5641
        %5720 = vmatprep.subr.mxu0 0.0
        %5721 = vmatpush1.msra.mxu0 %v5640
        %5722 = vmatprep.subr.mxu0 0.0
        %5723 = vmatpush2.msra.mxu0 %v5671
        %5724 = vmatprep.subr.mxu0 0.0
        %5725 = vmatpush2.msra.mxu0 %v5670
        %5726 = vmatprep.subr.mxu0 0.0
        %5727 = vmatpush2.msra.mxu0 %v5669
        %5728 = vmatprep.subr.mxu0 0.0
        %5729 = vmatpush2.msra.mxu0 %v5668
        %5730 = vmatprep.subr.mxu0 0.0
        %5731 = vmatpush2.msra.mxu0 %v5667
        %5732 = vmatprep.subr.mxu0 0.0
        %5733 = vmatpush2.msra.mxu0 %v5666
        %5734 = vmatprep.subr.mxu0 0.0
        %5735 = vmatpush2.msra.mxu0 %v5665
        %5736 = vmatprep.subr.mxu0 0.0
        %5737 = vmatpush2.msra.mxu0 %v5664
        %5738 = vmatprep.subr.mxu0 0.0
        %5739 = vmatpush2.msra.mxu0 %v5663
        %5740 = vmatprep.subr.mxu0 0.0
        %5741 = vmatpush2.msra.mxu0 %v5662
        %5742 = vmatprep.subr.mxu0 0.0
        %5743 = vmatpush2.msra.mxu0 %v5661
        %5744 = vmatprep.subr.mxu0 0.0
        %5745 = vmatpush2.msra.mxu0 %v5660
        %5746 = vmatprep.subr.mxu0 0.0
        %5747 = vmatpush2.msra.mxu0 %v5659
        %5748 = vmatprep.subr.mxu0 0.0
        %5749 = vmatpush2.msra.mxu0 %v5658
        %5750 = vmatprep.subr.mxu0 0.0
        %5751 = vmatpush2.msra.mxu0 %v5657
        %5752 = vmatprep.subr.mxu0 0.0
        %5753 = vmatpush2.msra.mxu0 %v5656
        %5754 = vmatprep.mubr.f32.mxu0 %v5637
        %5755 = vmatmul.mubr.f32.gmra.mxu0 %v5631
        %v5756 = vpop.f32.mrf.mxu0
        %v5757 = vadd.f32 %v5682, %v5756
        %v5758 = vpop.f32.mrf.mxu0
        %5759 = vmatprep.mubr.f32.mxu0 %v5638
        %5760 = vmatmul.mubr.f32.gmra.mxu0 %v5632
        %v5761 = vpop.f32.mrf.mxu0
        %v5762 = vadd.f32 %v5682, %v5761
        %v5763 = vpop.f32.mrf.mxu0
        %5764 = vdwg.mxu0
        %5765 = vmatprep.subr.mxu0 0.0
        %5766 = vmatpush1.msra.mxu0 0.0
        %5767 = vmatprep.subr.mxu0 0.0
        %5768 = vmatpush1.msra.mxu0 0.0
        %5769 = vmatprep.subr.mxu0 0.0
        %5770 = vmatpush1.msra.mxu0 0.0
        %5771 = vmatprep.subr.mxu0 0.0
        %5772 = vmatpush1.msra.mxu0 0.0
        %5773 = vmatprep.subr.mxu0 0.0
        %5774 = vmatpush1.msra.mxu0 0.0
        %5775 = vmatprep.subr.mxu0 0.0
        %5776 = vmatpush1.msra.mxu0 0.0
        %5777 = vmatprep.subr.mxu0 0.0
        %5778 = vmatpush1.msra.mxu0 0.0
        %5779 = vmatprep.subr.mxu0 0.0
        %5780 = vmatpush1.msra.mxu0 0.0
        %5781 = vmatprep.subr.mxu0 0.0
        %5782 = vmatpush1.msra.mxu0 0.0
        %5783 = vmatprep.subr.mxu0 0.0
        %5784 = vmatpush1.msra.mxu0 0.0
        %5785 = vmatprep.subr.mxu0 0.0
        %5786 = vmatpush1.msra.mxu0 0.0
        %5787 = vmatprep.subr.mxu0 0.0
        %5788 = vmatpush1.msra.mxu0 0.0
        %5789 = vmatprep.subr.mxu0 0.0
        %5790 = vmatpush1.msra.mxu0 %v5675
        %5791 = vmatprep.subr.mxu0 0.0
        %5792 = vmatpush1.msra.mxu0 %v5674
        %5793 = vmatprep.subr.mxu0 0.0
        %5794 = vmatpush1.msra.mxu0 %v5673
        %5795 = vmatprep.subr.mxu0 0.0
        %5796 = vmatpush1.msra.mxu0 %v5672
        %5797 = vmatprep.subr.mxu0 0.0
        %5798 = vmatpush2.msra.mxu0 0.0
        %5799 = vmatprep.subr.mxu0 0.0
        %5800 = vmatpush2.msra.mxu0 0.0
        %5801 = vmatprep.subr.mxu0 0.0
        %5802 = vmatpush2.msra.mxu0 0.0
        %5803 = vmatprep.subr.mxu0 0.0
        %5804 = vmatpush2.msra.mxu0 0.0
        %5805 = vmatprep.subr.mxu0 0.0
        %5806 = vmatpush2.msra.mxu0 0.0
        %5807 = vmatprep.subr.mxu0 0.0
        %5808 = vmatpush2.msra.mxu0 0.0
        %5809 = vmatprep.subr.mxu0 0.0
        %5810 = vmatpush2.msra.mxu0 0.0
        %5811 = vmatprep.subr.mxu0 0.0
        %5812 = vmatpush2.msra.mxu0 0.0
        %5813 = vmatprep.subr.mxu0 0.0
        %5814 = vmatpush2.msra.mxu0 0.0
        %5815 = vmatprep.subr.mxu0 0.0
        %5816 = vmatpush2.msra.mxu0 0.0
        %5817 = vmatprep.subr.mxu0 0.0
        %5818 = vmatpush2.msra.mxu0 0.0
        %5819 = vmatprep.subr.mxu0 0.0
        %5820 = vmatpush2.msra.mxu0 0.0
        %5821 = vmatprep.subr.mxu0 0.0
        %5822 = vmatpush2.msra.mxu0 0.0
        %5823 = vmatprep.subr.mxu0 0.0
        %5824 = vmatpush2.msra.mxu0 0.0
        %5825 = vmatprep.subr.mxu0 0.0
        %5826 = vmatpush2.msra.mxu0 0.0
        %5827 = vmatprep.subr.mxu0 0.0
        %5828 = vmatpush2.msra.mxu0 0.0
        %5829 = vmatprep.mubr.f32.mxu0 0.0
        %5830 = vmatmul.mubr.f32.gmra.mxu0 %v5685
        %v5831 = vpop.f32.mrf.mxu0
        %v5832 = vadd.f32 %v5757, %v5831
        %v5833 = vpop.f32.mrf.mxu0
        %5834 = vmatprep.mubr.f32.mxu0 0.0
        %5835 = vmatmul.mubr.f32.gmra.mxu0 %v5688
        %v5836 = vpop.f32.mrf.mxu0
        %v5837 = vadd.f32 %v5762, %v5836
        %v5838 = vpop.f32.mrf.mxu0
        %5839 = vdwg.mxu0
        %v5840 = vxor.u32 %v5832, 2147483648
        %v5841 = vxor.u32 %v5837, 2147483648
        %v5842 = vmul.f32 %v5840, 1.442695
        %v5843 = vpow.pop %v5842
        %v5844 = vmul.f32 %v5841, 1.442695
        %v5845 = vpow.pop %v5844
        %v5846 = vadd.f32 %v5843, 1.0
        %v5847 = vadd.f32 %v5845, 1.0
        %v5848 = vrcp.pop %v5846
        %v5849 = vmul.f32 1.0, %v5848
        %v5850 = vrcp.pop %v5847
        %v5851 = vmul.f32 1.0, %v5850
        %v5852 = vmul.f32 %v5832, %v5849
        %v5853 = vmul.f32 %v5837, %v5851
        %s5854 = scalar_lea.vmem %s5, 128
        %v5855 = vld [vmem:[%s5854] sm:$0xff]
        %v5856 = vld [vmem:[%s5854 + $0x8] sm:$0xff]
        %v5857 = vld [vmem:[%s5854 + $0x10] sm:$0xff]
        %v5858 = vld [vmem:[%s5854 + $0x18] sm:$0xff]
        %v5859 = vld [vmem:[%s5854 + $0x20] sm:$0xff]
        %v5860 = vld [vmem:[%s5854 + $0x28] sm:$0xff]
        %v5861 = vld [vmem:[%s5854 + $0x30] sm:$0xff]
        %v5862 = vld [vmem:[%s5854 + $0x38] sm:$0xff]
        %s5863 = scalar_lea.vmem %s6, 2
        %v5864 = vld [vmem:[%s5863] sm:$0x1]
        %v5866 = vlaneseq
        %v5867 = vshrl.u32 %v5866, 7
        %v5868 = vsub.s32 0, %v5867
        %v5869 = vrot.slane %v5864, %v5868
        %v5872 = vsel %vm2367, %v5852, 0
        %v5875 = vsel %vm2367, %v5853, 0
        %5877 = vmatprep.subr.mxu0 0.0
        %5878 = vmatpush1.msra.mxu0 0.0
        %5879 = vmatprep.subr.mxu0 0.0
        %5880 = vmatpush1.msra.mxu0 0.0
        %5881 = vmatprep.subr.mxu0 0.0
        %5882 = vmatpush1.msra.mxu0 0.0
        %5883 = vmatprep.subr.mxu0 0.0
        %5884 = vmatpush1.msra.mxu0 0.0
        %5885 = vmatprep.subr.mxu0 0.0
        %5886 = vmatpush1.msra.mxu0 0.0
        %5887 = vmatprep.subr.mxu0 0.0
        %5888 = vmatpush1.msra.mxu0 0.0
        %5889 = vmatprep.subr.mxu0 0.0
        %5890 = vmatpush1.msra.mxu0 0.0
        %5891 = vmatprep.subr.mxu0 0.0
        %5892 = vmatpush1.msra.mxu0 0.0
        %5893 = vmatprep.subr.mxu0 0.0
        %5894 = vmatpush1.msra.mxu0 %v5862
        %5895 = vmatprep.subr.mxu0 0.0
        %5896 = vmatpush1.msra.mxu0 %v5861
        %5897 = vmatprep.subr.mxu0 0.0
        %5898 = vmatpush1.msra.mxu0 %v5860
        %5899 = vmatprep.subr.mxu0 0.0
        %5900 = vmatpush1.msra.mxu0 %v5859
        %5901 = vmatprep.subr.mxu0 0.0
        %5902 = vmatpush1.msra.mxu0 %v5858
        %5903 = vmatprep.subr.mxu0 0.0
        %5904 = vmatpush1.msra.mxu0 %v5857
        %5905 = vmatprep.subr.mxu0 0.0
        %5906 = vmatpush1.msra.mxu0 %v5856
        %5907 = vmatprep.subr.mxu0 0.0
        %5908 = vmatpush1.msra.mxu0 %v5855
        %5909 = vmatprep.subr.mxu0 0.0
        %5910 = vmatpush2.msra.mxu0 0.0
        %5911 = vmatprep.subr.mxu0 0.0
        %5912 = vmatpush2.msra.mxu0 0.0
        %5913 = vmatprep.subr.mxu0 0.0
        %5914 = vmatpush2.msra.mxu0 0.0
        %5915 = vmatprep.subr.mxu0 0.0
        %5916 = vmatpush2.msra.mxu0 0.0
        %5917 = vmatprep.subr.mxu0 0.0
        %5918 = vmatpush2.msra.mxu0 0.0
        %5919 = vmatprep.subr.mxu0 0.0
        %5920 = vmatpush2.msra.mxu0 0.0
        %5921 = vmatprep.subr.mxu0 0.0
        %5922 = vmatpush2.msra.mxu0 0.0
        %5923 = vmatprep.subr.mxu0 0.0
        %5924 = vmatpush2.msra.mxu0 0.0
        %5925 = vmatprep.subr.mxu0 0.0
        %5926 = vmatpush2.msra.mxu0 0.0
        %5927 = vmatprep.subr.mxu0 0.0
        %5928 = vmatpush2.msra.mxu0 0.0
        %5929 = vmatprep.subr.mxu0 0.0
        %5930 = vmatpush2.msra.mxu0 0.0
        %5931 = vmatprep.subr.mxu0 0.0
        %5932 = vmatpush2.msra.mxu0 0.0
        %5933 = vmatprep.subr.mxu0 0.0
        %5934 = vmatpush2.msra.mxu0 0.0
        %5935 = vmatprep.subr.mxu0 0.0
        %5936 = vmatpush2.msra.mxu0 0.0
        %5937 = vmatprep.subr.mxu0 0.0
        %5938 = vmatpush2.msra.mxu0 0.0
        %5939 = vmatprep.subr.mxu0 0.0
        %5940 = vmatpush2.msra.mxu0 0.0
        %5941 = vmatprep.mubr.f32.mxu0 0.0
        %5942 = vmatmul.mubr.f32.gmra.mxu0 %v5872
        %v5943 = vpop.f32.mrf.mxu0
        %v5944 = vadd.f32 %v5869, %v5943
        %v5945 = vpop.f32.mrf.mxu0
        %5946 = vmatprep.mubr.f32.mxu0 0.0
        %5947 = vmatmul.mubr.f32.gmra.mxu0 %v5875
        %v5948 = vpop.f32.mrf.mxu0
        %v5949 = vadd.f32 %v5869, %v5948
        %v5950 = vpop.f32.mrf.mxu0
        %5951 = vdwg.mxu0
        %v5952 = vadd.f32 %v5539, 0.5
        %v5953 = vadd.f32 %v5540, 0.5
        %v5954 = vmul.f32 %v5952, 32.0
        %v5955 = vmul.f32 %v5953, 32.0
        %v5956 = vadd.f32 %v5535, 0.5
        %v5957 = vadd.f32 %v5536, 0.5
        %v5958 = vmul.f32 %v5956, 32.0
        %v5959 = vmul.f32 %v5957, 32.0
        %v5960 = vsel %vm3808, %v5954, 0.0
        %v5961 = vsel %vm3808, %v5955, 0.0
        %v5962 = vsel %vm3843, %v5958, 0.0
        %v5963 = vsel %vm3843, %v5959, 0.0
        %v5964 = vadd.f32 %v5960, %v5962
        %v5965 = vadd.f32 %v5961, %v5963
        %v5966 = vxor.u32 %v5944, 2147483648
        %v5967 = vxor.u32 %v5949, 2147483648
        %v5968 = vmul.f32 %v5966, 1.442695
        %v5969 = vpow.pop %v5968
        %v5970 = vmul.f32 %v5967, 1.442695
        %v5971 = vpow.pop %v5970
        %v5972 = vadd.f32 %v5969, 1.0
        %v5973 = vadd.f32 %v5971, 1.0
        %v5974 = vrcp.pop %v5972
        %v5975 = vmul.f32 1.0, %v5974
        %v5976 = vrcp.pop %v5973
        %v5977 = vmul.f32 1.0, %v5976
        %v5978 = vadd.f32 %v5944, %v5964
        %v5979 = vadd.f32 %v5949, %v5965
        %v5980 = vsel %vm4133, %v5975, %v5978
        %v5981 = vsel %vm4133, %v5977, %v5979
        %5982 = vst [vmem:[%s271 + $0x140] sm:$0xff] %v5980
        %5983 = vst [vmem:[%s271 + $0x148] sm:$0xff] %v5981
        %s5984 = sand.u32 %s181, 1
        %s5985 = scalar_lea.sflag [#allocation6], %s5984
        %s5986 = sand.u32 %s181, 1
        %s5987 = smul.addr %s5986, 336
        %s5988 = scalar_lea.vmem [#allocation5], %s5987
        // Predicated region
        $region49: #{tpu_custom_call.1} parent=47 // pred_check
          %p5989 = pneg %p191
        $region50: #{tpu_custom_call.1} parent=47 // pred_check_branch
          %5991 = sbr.rel (%p5989) target = $region52
        $region51: #{tpu_custom_call.1} parent=47 // pred_region
          %s5993 = ssub.s32 5376, 5376
          %5994 = vsyncadd %s5985, %s5993
          %s5995 = smul.addr %s21, 42
          %s5996 = smul.addr %s5995, 128
          %s5997 = scalar_lea.hbm %s7, %s5996
          %s5998 = sshll.u32 %s5988, 4
          %s5999 = int_to_ptr.vmem [resolvable:$true] %s5998
          %6004 = dma.vmem_to_hbm [thread:$0]  %s5999, 5376, %s5997, %s5985, 128, 128, 8
        $region52: #{tpu_custom_call.1} parent=47 // pred_fallthru
          _
      $region48: #{tpu_custom_call.1} parent=5 // pred_fallthru
        _
      %p6005 = scmp.le.s32.totalorder 2, %s16
      // Predicated region
      $region53: #{tpu_custom_call.1} parent=5 // pred_check
        %p6006 = pneg %p6005
      $region54: #{tpu_custom_call.1} parent=5 // pred_check_branch
        %6008 = sbr.rel (%p6006) target = $region56
      $region55: #{tpu_custom_call.1} parent=5 // pred_region
        %s6009 = ssub.s32 %s16, 2
        // Predicated region
        $region57: #{tpu_custom_call.1} parent=55 // pred_check
          %p6010 = pneg %p197
        $region58: #{tpu_custom_call.1} parent=55 // pred_check_branch
          %6012 = sbr.rel (%p6010) target = $region60
        $region59: #{tpu_custom_call.1} parent=55 // pred_region
          %s6013 = sand.u32 %s182, 1
          %s6014 = scalar_lea.sflag [#allocation6], %s6013
          %s6015 = sand.u32 %s182, 1
          %s6016 = smul.addr %s6015, 336
          %s6017 = scalar_lea.vmem [#allocation5], %s6016
          %6018 = dma.done %s6014, 5376
        $region60: #{tpu_custom_call.1} parent=55 // pred_fallthru
          _
      $region56: #{tpu_custom_call.1} parent=5 // pred_fallthru
        _
    $region6: #{tpu_custom_call.1} parent=1 // loop_footer
      %s20 = sadd.s32 1, %s16
    $region7: #{tpu_custom_call.1} parent=1 // loop_footer_branch
      %15 = sbr.rel target = $region3
    $region8: #{tpu_custom_call.1} parent=1 // loop_exit
      _
    %6019 = vsyncpa [#allocation6], 1
    %s6020 = scalar_lea.sflag [#allocation6], 1
    %6021 = vsyncpa %s6020, 1

</llo_original>
